<compile_context>
chip_gen: v5e
topology: v5e:2x2
jax: 0.10.0
libtpu: 0.0.40
codegen_flags: <defaults>
</compile_context>

<pallas_src>
import jax
import jax.numpy as jnp
from jax import lax
from jax.experimental import pallas as pl
from jax.experimental.pallas import tpu as pltpu
import numpy as np


def basic_block_kernel(xp_ref, w1_ref, b1_ref, w2_ref, b2_ref,
                       a1_ref, a2_ref, o_ref):
    """One batch-chunk (bt images) per grid step, flattened into the matmul M dim.

    xp_ref : (bt, H+2, W+2, Cin)   input chunk, pre-padded for conv1 (padding=1)
    w1_ref : (9*Cin, Chid)         conv1 weights, im2col layout (dh, dw, cin)-major
    b1_ref : (1, Chid)             conv1 bias
    w2_ref : (9*Chid, Cpad)        conv2 weights, output channels zero-padded to 128
    b2_ref : (1, Cpad)             conv2 bias (zero-padded)
    a1_ref : (1,) SMEM             PReLU1 shared alpha
    a2_ref : (1,) SMEM             PReLU2 shared alpha
    o_ref  : (1, bt*Ho*Wo, Cpad)   lane-dense output block (Cpad multiple of 128)
    """
    bt, Hp, Wp, Cin = xp_ref.shape
    H, W = Hp - 2, Wp - 2
    Ho, Wo = H - 2, W - 2
    Chid = w1_ref.shape[1]
    Cpad = o_ref.shape[2]

    # ---- conv1 (3x3, padding=1 via pre-padded input): single im2col matmul ----
    # Build (bt*H*W, 9*Cin) patch matrix with ONE concat + ONE reshape
    # (instead of 9 slice+reshape relayouts feeding 9 K=Cin dots).
    p1 = jnp.concatenate(
        [xp_ref[:, dh:dh + H, dw:dw + W, :]
         for dh in range(3) for dw in range(3)],
        axis=3,
    ).reshape(bt * H * W, 9 * Cin)
    # NOTE: bf16 feeds (v6e/v7x) are possible here; kept f32 to hold 1e-3 accuracy.
    h1 = jnp.dot(p1, w1_ref[...], preferred_element_type=jnp.float32)
    h1 = h1 + b1_ref[...]
    a1 = a1_ref[0]
    h1 = jnp.where(h1 >= 0, h1, h1 * a1)              # PReLU (single shared param)
    h1 = h1.reshape(bt, H, W, Chid)                   # value only, no VMEM scratch

    # ---- conv2 (3x3, padding=0): single im2col matmul, N padded to 128 ----
    p2 = jnp.concatenate(
        [h1[:, dh:dh + Ho, dw:dw + Wo, :]
         for dh in range(3) for dw in range(3)],
        axis=3,
    ).reshape(bt * Ho * Wo, 9 * Chid)
    y = jnp.dot(p2, w2_ref[...], preferred_element_type=jnp.float32)
    y = y + b2_ref[...]
    a2 = a2_ref[0]
    y = jnp.where(y >= 0, y, y * a2)                  # PReLU (single shared param)
    o_ref[...] = y.reshape(1, bt * Ho * Wo, Cpad)     # unmasked 128-lane stores


@jax.jit
def basic_block_pallas(x_nchw, params):
    """Forward of BasicBlock (conv3x3 p=1 -> PReLU -> conv3x3 p=0 -> PReLU)."""
    w1, b1, a1, w2, b2, a2 = params                   # w1/w2 in HWIO layout
    B, Cin, H, W = x_nchw.shape
    Chid = w1.shape[-1]
    Cout = w2.shape[-1]
    Ho, Wo = H - 2, W - 2
    Cpad = ((Cout + 127) // 128) * 128                # lane-dense output width

    # >=2 parallel grid steps (keeps both v7x TensorCores busy) while flattening
    # each step's batch chunk into the matmul M dimension inside the kernel.
    num_tiles = 2 if (B >= 2 and B % 2 == 0) else 1
    bt = B // num_tiles

    # glue (fused under jit): NCHW -> NHWC, spatial pad of 1 for conv1
    x_nhwc = jnp.transpose(x_nchw, (0, 2, 3, 1)).astype(jnp.float32)
    xp = jnp.pad(x_nhwc, ((0, 0), (1, 1), (1, 1), (0, 0)))

    # weights in im2col layout; conv2 weights/bias zero-padded on output channels
    w1m = w1.reshape(9 * Cin, Chid).astype(jnp.float32)
    b1m = b1.reshape(1, Chid).astype(jnp.float32)
    w2m = jnp.pad(w2.reshape(9 * Chid, Cout).astype(jnp.float32),
                  ((0, 0), (0, Cpad - Cout)))
    b2m = jnp.pad(b2.reshape(1, Cout).astype(jnp.float32),
                  ((0, 0), (0, Cpad - Cout)))
    a1s = a1.reshape(1).astype(jnp.float32)
    a2s = a2.reshape(1).astype(jnp.float32)

    out = pl.pallas_call(
        basic_block_kernel,
        out_shape=jax.ShapeDtypeStruct((num_tiles, bt * Ho * Wo, Cpad),
                                       jnp.float32),
        grid_spec=pltpu.PrefetchScalarGridSpec(
            num_scalar_prefetch=0,
            grid=(num_tiles,),
            in_specs=[
                pl.BlockSpec((bt, H + 2, W + 2, Cin), lambda t: (t, 0, 0, 0)),
                pl.BlockSpec((9 * Cin, Chid), lambda t: (0, 0)),
                pl.BlockSpec((1, Chid), lambda t: (0, 0)),
                pl.BlockSpec((9 * Chid, Cpad), lambda t: (0, 0)),
                pl.BlockSpec((1, Cpad), lambda t: (0, 0)),
                pl.BlockSpec(memory_space=pltpu.MemorySpace.SMEM),
                pl.BlockSpec(memory_space=pltpu.MemorySpace.SMEM),
            ],
            out_specs=pl.BlockSpec((1, bt * Ho * Wo, Cpad),
                                   lambda t: (t, 0, 0)),
        ),
        compiler_params=pltpu.CompilerParams(
            dimension_semantics=("parallel",)),
    )(xp, w1m, b1m, w2m, b2m, a1s, a2s)

    # back to NCHW to match the PyTorch module output layout (fused under jit)
    out = out.reshape(B, Ho, Wo, Cpad)[..., :Cout]
    return jnp.transpose(out, (0, 3, 1, 2))


def basic_block_ref(x_nchw, params):
    """Pure-JAX reference mirroring the PyTorch forward (for verification)."""
    w1, b1, a1, w2, b2, a2 = params
    dn = ('NCHW', 'HWIO', 'NCHW')
    y = lax.conv_general_dilated(x_nchw, w1, (1, 1), ((1, 1), (1, 1)),
                                 dimension_numbers=dn)
    y = y + b1.reshape(1, -1, 1, 1)
    y = jnp.where(y >= 0, y, a1 * y)
    y = lax.conv_general_dilated(y, w2, (1, 1), ((0, 0), (0, 0)),
                                 dimension_numbers=dn)
    y = y + b2.reshape(1, -1, 1, 1)
    y = jnp.where(y >= 0, y, a2 * y)
    return y


def init_params(key, in_depth, hidden_depth, out_depth):
    k1, k2, k3, k4 = jax.random.split(key, 4)
    # conv weights stored in HWIO (PyTorch OIHW transposed)
    w1 = jax.random.normal(k1, (3, 3, in_depth, hidden_depth), jnp.float32) * 0.1
    b1 = jax.random.normal(k2, (hidden_depth,), jnp.float32) * 0.05
    w2 = jax.random.normal(k3, (3, 3, hidden_depth, out_depth), jnp.float32) * 0.1
    b2 = jax.random.normal(k4, (out_depth,), jnp.float32) * 0.05
    # nn.PReLU() default: a single shared parameter initialized to 0.25
    a1 = jnp.array(0.25, dtype=jnp.float32)
    a2 = jnp.array(0.25, dtype=jnp.float32)
    return (w1, b1, a1, w2, b2, a2)


if __name__ == "__main__":
    key = jax.random.PRNGKey(0)
    kx, kp = jax.random.split(key)

    B, Cin, H, W = 2, 4, 16, 16
    Chid, Cout = 8, 8

    x = jax.random.normal(kx, (B, Cin, H, W), jnp.float32)   # NCHW like PyTorch
    params = init_params(kp, Cin, Chid, Cout)

    out = jax.block_until_ready(basic_block_pallas(x, params))
    ref = jax.block_until_ready(basic_block_ref(x, params))

    assert out.shape == (B, Cout, H - 2, W - 2), out.shape
    np.testing.assert_allclose(np.asarray(out), np.asarray(ref),
                               atol=1e-3, rtol=1e-3)
    print("KERNEL_OK")
</pallas_src>

<mosaic_0001>
module attributes {stable_mosaic.version = 11 : i64} {
  func.func @basic_block_kernel(%arg0: i32, %arg1: memref<1x18x18x4xf32, #tpu.memory_space<vmem>>, %arg2: memref<36x8xf32, #tpu.memory_space<vmem>>, %arg3: memref<1x8xf32, #tpu.memory_space<vmem>>, %arg4: memref<72x128xf32, #tpu.memory_space<vmem>>, %arg5: memref<1x128xf32, #tpu.memory_space<vmem>>, %arg6: memref<1xf32, #tpu.memory_space<smem>>, %arg7: memref<1xf32, #tpu.memory_space<smem>>, %arg8: memref<1x196x128xf32, #tpu.memory_space<vmem>>) attributes {dimension_semantics = [#tpu.dimension_semantics<parallel>], iteration_bounds = array<i64: 2>, scalar_prefetch = 0 : i64, scratch_operands = 0 : i64, tpu.core_type = #tpu.core_type<tc>, window_params = [{transform_indices = @transform_0, window_bounds = array<i64: 1, 18, 18, 4>}, {pipeline_mode = #tpu.pipeline_mode<synchronous>, transform_indices = @transform_1, window_bounds = array<i64: 36, 8>}, {pipeline_mode = #tpu.pipeline_mode<synchronous>, transform_indices = @transform_2, window_bounds = array<i64: 1, 8>}, {pipeline_mode = #tpu.pipeline_mode<synchronous>, transform_indices = @transform_3, window_bounds = array<i64: 72, 128>}, {pipeline_mode = #tpu.pipeline_mode<synchronous>, transform_indices = @transform_4, window_bounds = array<i64: 1, 128>}, {transform_indices = @transform_5, window_bounds = array<i64: 1>}, {transform_indices = @transform_6, window_bounds = array<i64: 1>}, {transform_indices = @transform_7, window_bounds = array<i64: 1, 196, 128>}]} {
    %c0 = arith.constant 0 : index
    %c0_0 = arith.constant 0 : index
    %c0_1 = arith.constant 0 : index
    %c0_2 = arith.constant 0 : index
    %0 = vector.load %arg1[%c0, %c0_0, %c0_1, %c0_2] : memref<1x18x18x4xf32, #tpu.memory_space<vmem>>, vector<1x16x16x4xf32>
    %c0_3 = arith.constant 0 : index
    %c0_4 = arith.constant 0 : index
    %c1 = arith.constant 1 : index
    %c0_5 = arith.constant 0 : index
    %1 = vector.load %arg1[%c0_3, %c0_4, %c1, %c0_5] : memref<1x18x18x4xf32, #tpu.memory_space<vmem>>, vector<1x16x16x4xf32>
    %c0_6 = arith.constant 0 : index
    %c0_7 = arith.constant 0 : index
    %c2 = arith.constant 2 : index
    %c0_8 = arith.constant 0 : index
    %2 = vector.load %arg1[%c0_6, %c0_7, %c2, %c0_8] : memref<1x18x18x4xf32, #tpu.memory_space<vmem>>, vector<1x16x16x4xf32>
    %c0_9 = arith.constant 0 : index
    %c1_10 = arith.constant 1 : index
    %c0_11 = arith.constant 0 : index
    %c0_12 = arith.constant 0 : index
    %3 = vector.load %arg1[%c0_9, %c1_10, %c0_11, %c0_12] : memref<1x18x18x4xf32, #tpu.memory_space<vmem>>, vector<1x16x16x4xf32>
    %c0_13 = arith.constant 0 : index
    %c1_14 = arith.constant 1 : index
    %c1_15 = arith.constant 1 : index
    %c0_16 = arith.constant 0 : index
    %4 = vector.load %arg1[%c0_13, %c1_14, %c1_15, %c0_16] : memref<1x18x18x4xf32, #tpu.memory_space<vmem>>, vector<1x16x16x4xf32>
    %c0_17 = arith.constant 0 : index
    %c1_18 = arith.constant 1 : index
    %c2_19 = arith.constant 2 : index
    %c0_20 = arith.constant 0 : index
    %5 = vector.load %arg1[%c0_17, %c1_18, %c2_19, %c0_20] : memref<1x18x18x4xf32, #tpu.memory_space<vmem>>, vector<1x16x16x4xf32>
    %c0_21 = arith.constant 0 : index
    %c2_22 = arith.constant 2 : index
    %c0_23 = arith.constant 0 : index
    %c0_24 = arith.constant 0 : index
    %6 = vector.load %arg1[%c0_21, %c2_22, %c0_23, %c0_24] : memref<1x18x18x4xf32, #tpu.memory_space<vmem>>, vector<1x16x16x4xf32>
    %c0_25 = arith.constant 0 : index
    %c2_26 = arith.constant 2 : index
    %c1_27 = arith.constant 1 : index
    %c0_28 = arith.constant 0 : index
    %7 = vector.load %arg1[%c0_25, %c2_26, %c1_27, %c0_28] : memref<1x18x18x4xf32, #tpu.memory_space<vmem>>, vector<1x16x16x4xf32>
    %c0_29 = arith.constant 0 : index
    %c2_30 = arith.constant 2 : index
    %c2_31 = arith.constant 2 : index
    %c0_32 = arith.constant 0 : index
    %8 = vector.load %arg1[%c0_29, %c2_30, %c2_31, %c0_32] : memref<1x18x18x4xf32, #tpu.memory_space<vmem>>, vector<1x16x16x4xf32>
    %9 = tpu.concatenate %0, %1, %2, %3, %4, %5, %6, %7, %8 in 3 : vector<1x16x16x4xf32>, vector<1x16x16x4xf32>, vector<1x16x16x4xf32>, vector<1x16x16x4xf32>, vector<1x16x16x4xf32>, vector<1x16x16x4xf32>, vector<1x16x16x4xf32>, vector<1x16x16x4xf32>, vector<1x16x16x4xf32> -> vector<1x16x16x36xf32>
    %10 = vector.shape_cast %9 : vector<1x16x16x36xf32> to vector<256x36xf32>
    %c0_33 = arith.constant 0 : index
    %c0_34 = arith.constant 0 : index
    %11 = vector.load %arg2[%c0_33, %c0_34] : memref<36x8xf32, #tpu.memory_space<vmem>>, vector<36x8xf32>
    %cst = arith.constant dense<0.000000e+00> : vector<256x8xf32>
    %12 = tpu.matmul %10, %11, %cst {dimension_numbers = #tpu.dot_dimension_numbers<[1], [0], [0], [1], [0, 0, 1, 1], [], []>} : vector<256x36xf32>, vector<36x8xf32>, vector<256x8xf32> -> vector<256x8xf32>
    %c0_35 = arith.constant 0 : index
    %c0_36 = arith.constant 0 : index
    %13 = vector.load %arg3[%c0_35, %c0_36] : memref<1x8xf32, #tpu.memory_space<vmem>>, vector<1x8xf32>
    %14 = vector.broadcast %13 : vector<1x8xf32> to vector<256x8xf32>
    %15 = arith.addf %12, %14 : vector<256x8xf32>
    %c0_37 = arith.constant 0 : index
    %16 = memref.load %arg6[%c0_37] : memref<1xf32, #tpu.memory_space<smem>>
    %cst_38 = arith.constant 0.000000e+00 : f32
    %17 = vector.broadcast %cst_38 : f32 to vector<256x8xf32>
    %18 = arith.cmpf oge, %15, %17 : vector<256x8xf32>
    %19 = vector.broadcast %16 : f32 to vector<256x8xf32>
    %20 = arith.mulf %15, %19 : vector<256x8xf32>
    %21 = arith.select %18, %15, %20 : vector<256x8xi1>, vector<256x8xf32>
    %22 = vector.shape_cast %21 : vector<256x8xf32> to vector<1x16x16x8xf32>
    %23 = vector.extract_strided_slice %22 {offsets = [0, 0, 0, 0], sizes = [1, 14, 14, 8], strides = [1, 1, 1, 1]} : vector<1x16x16x8xf32> to vector<1x14x14x8xf32>
    %24 = vector.extract_strided_slice %22 {offsets = [0, 0, 1, 0], sizes = [1, 14, 14, 8], strides = [1, 1, 1, 1]} : vector<1x16x16x8xf32> to vector<1x14x14x8xf32>
    %25 = vector.extract_strided_slice %22 {offsets = [0, 0, 2, 0], sizes = [1, 14, 14, 8], strides = [1, 1, 1, 1]} : vector<1x16x16x8xf32> to vector<1x14x14x8xf32>
    %26 = vector.extract_strided_slice %22 {offsets = [0, 1, 0, 0], sizes = [1, 14, 14, 8], strides = [1, 1, 1, 1]} : vector<1x16x16x8xf32> to vector<1x14x14x8xf32>
    %27 = vector.extract_strided_slice %22 {offsets = [0, 1, 1, 0], sizes = [1, 14, 14, 8], strides = [1, 1, 1, 1]} : vector<1x16x16x8xf32> to vector<1x14x14x8xf32>
    %28 = vector.extract_strided_slice %22 {offsets = [0, 1, 2, 0], sizes = [1, 14, 14, 8], strides = [1, 1, 1, 1]} : vector<1x16x16x8xf32> to vector<1x14x14x8xf32>
    %29 = vector.extract_strided_slice %22 {offsets = [0, 2, 0, 0], sizes = [1, 14, 14, 8], strides = [1, 1, 1, 1]} : vector<1x16x16x8xf32> to vector<1x14x14x8xf32>
    %30 = vector.extract_strided_slice %22 {offsets = [0, 2, 1, 0], sizes = [1, 14, 14, 8], strides = [1, 1, 1, 1]} : vector<1x16x16x8xf32> to vector<1x14x14x8xf32>
    %31 = vector.extract_strided_slice %22 {offsets = [0, 2, 2, 0], sizes = [1, 14, 14, 8], strides = [1, 1, 1, 1]} : vector<1x16x16x8xf32> to vector<1x14x14x8xf32>
    %32 = tpu.concatenate %23, %24, %25, %26, %27, %28, %29, %30, %31 in 3 : vector<1x14x14x8xf32>, vector<1x14x14x8xf32>, vector<1x14x14x8xf32>, vector<1x14x14x8xf32>, vector<1x14x14x8xf32>, vector<1x14x14x8xf32>, vector<1x14x14x8xf32>, vector<1x14x14x8xf32>, vector<1x14x14x8xf32> -> vector<1x14x14x72xf32>
    %33 = vector.shape_cast %32 : vector<1x14x14x72xf32> to vector<196x72xf32>
    %c0_39 = arith.constant 0 : index
    %c0_40 = arith.constant 0 : index
    %34 = vector.load %arg4[%c0_39, %c0_40] : memref<72x128xf32, #tpu.memory_space<vmem>>, vector<72x128xf32>
    %cst_41 = arith.constant dense<0.000000e+00> : vector<196x128xf32>
    %35 = tpu.matmul %33, %34, %cst_41 {dimension_numbers = #tpu.dot_dimension_numbers<[1], [0], [0], [1], [0, 0, 1, 1], [], []>} : vector<196x72xf32>, vector<72x128xf32>, vector<196x128xf32> -> vector<196x128xf32>
    %c0_42 = arith.constant 0 : index
    %c0_43 = arith.constant 0 : index
    %36 = vector.load %arg5[%c0_42, %c0_43] : memref<1x128xf32, #tpu.memory_space<vmem>>, vector<1x128xf32>
    %37 = vector.broadcast %36 : vector<1x128xf32> to vector<196x128xf32>
    %38 = arith.addf %35, %37 : vector<196x128xf32>
    %c0_44 = arith.constant 0 : index
    %39 = memref.load %arg7[%c0_44] : memref<1xf32, #tpu.memory_space<smem>>
    %cst_45 = arith.constant 0.000000e+00 : f32
    %40 = vector.broadcast %cst_45 : f32 to vector<196x128xf32>
    %41 = arith.cmpf oge, %38, %40 : vector<196x128xf32>
    %42 = vector.broadcast %39 : f32 to vector<196x128xf32>
    %43 = arith.mulf %38, %42 : vector<196x128xf32>
    %44 = arith.select %41, %38, %43 : vector<196x128xi1>, vector<196x128xf32>
    %45 = vector.shape_cast %44 : vector<196x128xf32> to vector<1x196x128xf32>
    %c0_46 = arith.constant 0 : index
    %c0_47 = arith.constant 0 : index
    %c0_48 = arith.constant 0 : index
    %46 = vector.load %arg8[%c0_46, %c0_47, %c0_48] : memref<1x196x128xf32, #tpu.memory_space<vmem>>, vector<1x196x128xf32>
    tpu.vector_store %arg8[%c0_46, %c0_47, %c0_48], %45 {strides = array<i32>} : memref<1x196x128xf32, #tpu.memory_space<vmem>>, vector<1x196x128xf32>,
    return
  }
  func.func @transform_0(%arg0: i32) -> (i32, i32, i32, i32) {
    %c0_i32 = arith.constant 0 : i32
    %c0_i32_0 = arith.constant 0 : i32
    %c0_i32_1 = arith.constant 0 : i32
    %c0_i32_2 = arith.constant 0 : i32
    return %arg0, %c0_i32, %c0_i32_0, %c0_i32_1 : i32, i32, i32, i32
  }
  func.func @transform_1(%arg0: i32) -> (i32, i32) {
    %c0_i32 = arith.constant 0 : i32
    %c0_i32_0 = arith.constant 0 : i32
    %c0_i32_1 = arith.constant 0 : i32
    return %c0_i32, %c0_i32_0 : i32, i32
  }
  func.func @transform_2(%arg0: i32) -> (i32, i32) {
    %c0_i32 = arith.constant 0 : i32
    %c0_i32_0 = arith.constant 0 : i32
    %c0_i32_1 = arith.constant 0 : i32
    return %c0_i32, %c0_i32_0 : i32, i32
  }
  func.func @transform_3(%arg0: i32) -> (i32, i32) {
    %c0_i32 = arith.constant 0 : i32
    %c0_i32_0 = arith.constant 0 : i32
    %c0_i32_1 = arith.constant 0 : i32
    return %c0_i32, %c0_i32_0 : i32, i32
  }
  func.func @transform_4(%arg0: i32) -> (i32, i32) {
    %c0_i32 = arith.constant 0 : i32
    %c0_i32_0 = arith.constant 0 : i32
    %c0_i32_1 = arith.constant 0 : i32
    return %c0_i32, %c0_i32_0 : i32, i32
  }
  func.func @transform_5(%arg0: i32) -> i32 {
    %c0_i32 = arith.constant 0 : i32
    %c0_i32_0 = arith.constant 0 : i32
    return %c0_i32 : i32
  }
  func.func @transform_6(%arg0: i32) -> i32 {
    %c0_i32 = arith.constant 0 : i32
    %c0_i32_0 = arith.constant 0 : i32
    return %c0_i32 : i32
  }
  func.func @transform_7(%arg0: i32) -> (i32, i32, i32) {
    %c0_i32 = arith.constant 0 : i32
    %c0_i32_0 = arith.constant 0 : i32
    %c0_i32_1 = arith.constant 0 : i32
    return %arg0, %c0_i32, %c0_i32_0 : i32, i32, i32
  }
}

</mosaic_0001>

<llo_original>
// kernel: basic_block_pallas.1
$region0: #{basic_block_pallas.1}
  #allocation0 [shape = 'u32[]', space=smem, size = 0x4, offset = 0x4, fixed_abs, tag = 'smem constant byte address 0x4 - core index']
  #allocation1 [shape = 'u32[72,128]{1,0:T(1,128)}', space=vmem, size = 0x9000, scoped, tag = 'internal scratch']
  #allocation2 [shape = 'f32[1]{0:T(128)S(6)}', space=smem, size = 0x200, scoped, tag = 'scoped memory for basic_block_pallas.1']
  #allocation3 [shape = 'f32[1]{0:T(128)S(6)}', space=smem, size = 0x200, scoped, tag = 'scoped memory for basic_block_pallas.1']
  %s0 = inlined_call_operand.vmem [shape: f32[2,18,18,4], index: 0, kind: input, shape index: {}]
  %s1 = inlined_call_operand.vmem [shape: f32[36,8], index: 1, kind: input, shape index: {}]
  %s2 = inlined_call_operand.vmem [shape: f32[1,8], index: 2, kind: input, shape index: {}]
  %s3 = inlined_call_operand.vmem [shape: f32[72,128], index: 3, kind: input, shape index: {}]
  %s4 = inlined_call_operand.vmem [shape: f32[1,128], index: 4, kind: input, shape index: {}]
  %s5 = inlined_call_operand.<no memory space> [shape: f32[1], index: 5, kind: input, shape index: {}]
  %s6 = inlined_call_operand.<no memory space> [shape: f32[1], index: 6, kind: input, shape index: {}]
  %s7 = inlined_call_operand.vmem [shape: f32[2,196,128], index: 7, kind: output, shape index: {}]
  %s8 = sld [smem:[#allocation0]]
  $region61: #{basic_block_pallas.1} parent=0
    _
  %s10 = ssub.s32 1, %s8
  %s11 = scalar_select 0, %s10, %s8
  %12 = sst [smem:[#allocation2]] %s5
  %13 = sst [smem:[#allocation3]] %s6
  loop: start=0, step=1, limit=4
  $region2: #{basic_block_pallas.1} parent=0 // loop_pre_header
    _
  $region3: #{basic_block_pallas.1} parent=0 // loop_header
    %s15 = sphi 0, %s19
    %p16 = scmp.ge.s32.totalorder %s15, 4
    %s25 = sphi 0, %s27
    %s28 = sphi 0, %s25
    %s29 = sphi 0, %s28
    %s45 = sphi 0, %s29
    %s49 = sphi 0, %s49
    %s51 = sphi 0, %s49
    %s52 = sphi 0, %s51
    %s66 = sphi 0, %s52
    %s70 = sphi 0, %s70
    %s72 = sphi 0, %s70
    %s73 = sphi 0, %s72
    %s87 = sphi 0, %s73
    %s91 = sphi 0, %s91
    %s93 = sphi 0, %s91
    %s94 = sphi 0, %s93
    %s108 = sphi 0, %s94
    %s112 = sphi 0, %s112
    %s114 = sphi 0, %s112
    %s115 = sphi 0, %s114
    %s129 = sphi 0, %s115
    %s133 = sphi 0, %s133
    %s135 = sphi 0, %s133
    %s136 = sphi 0, %s135
    %s150 = sphi 0, %s136
    %s154 = sphi 0, %s154
    %s156 = sphi 0, %s154
    %s157 = sphi 0, %s156
    %s171 = sphi 0, %s157
    %s177 = sphi 0, %s179
    %s180 = sphi 0, %s177
    %s181 = sphi 0, %s180
    %s197 = sphi 0, %s181
  $region4: #{basic_block_pallas.1} parent=0 // loop_header_branch
    %18 = sbr.rel (%p16) target = $region8
  $region5: #{basic_block_pallas.1} parent=0 // loop_body
    %s20 = ssub.s32 %s15, 1
    %s21 = ssub.s32 %s15, 2
    %s22 = sadd.s32 %s15, 1
    %s23 = ssub.s32 %s15, %s22
    %p24 = scmp.eq.s32.totalorder %s23, 0
    %s26 = sadd.s32 %s25, 1
    %s27 = scalar_select %p24, %s25, %s26
    %p30 = pneg %p24
    %p31 = scmp.eq.s32.totalorder %s15, 1
    %p32 = por %p30, %p31
    %p33 = scmp.ne.s32.totalorder %s25, %s28
    %p34 = scmp.eq.s32.totalorder %s15, 0
    %p35 = por %p33, %p34
    %p36 = scmp.ne.s32.totalorder %s25, %s28
    %p37 = scmp.eq.s32.totalorder %s20, 1
    %p38 = por %p36, %p37
    %p39 = scmp.ne.s32.totalorder %s28, %s29
    %p40 = scmp.eq.s32.totalorder %s20, 0
    %p41 = por %p39, %p40
    %p42 = scmp.ne.s32.totalorder %s28, %s29
    %p43 = scmp.eq.s32.totalorder %s21, 1
    %p44 = por %p42, %p43
    %p46 = scmp.ne.s32.totalorder %s29, %s45
    %p47 = scmp.eq.s32.totalorder %s21, 0
    %p48 = por %p46, %p47
    %s50 = sadd.s32 %s49, 1
    %p53 = scmp.eq.s32.totalorder %s15, 1
    %p54 = scmp.ne.s32.totalorder %s49, %s51
    %p55 = scmp.eq.s32.totalorder %s15, 0
    %p56 = por %p54, %p55
    %p57 = scmp.ne.s32.totalorder %s49, %s51
    %p58 = scmp.eq.s32.totalorder %s20, 1
    %p59 = por %p57, %p58
    %p60 = scmp.ne.s32.totalorder %s51, %s52
    %p61 = scmp.eq.s32.totalorder %s20, 0
    %p62 = por %p60, %p61
    %p63 = scmp.ne.s32.totalorder %s51, %s52
    %p64 = scmp.eq.s32.totalorder %s21, 1
    %p65 = por %p63, %p64
    %p67 = scmp.ne.s32.totalorder %s52, %s66
    %p68 = scmp.eq.s32.totalorder %s21, 0
    %p69 = por %p67, %p68
    %s71 = sadd.s32 %s70, 1
    %p74 = scmp.eq.s32.totalorder %s15, 1
    %p75 = scmp.ne.s32.totalorder %s70, %s72
    %p76 = scmp.eq.s32.totalorder %s15, 0
    %p77 = por %p75, %p76
    %p78 = scmp.ne.s32.totalorder %s70, %s72
    %p79 = scmp.eq.s32.totalorder %s20, 1
    %p80 = por %p78, %p79
    %p81 = scmp.ne.s32.totalorder %s72, %s73
    %p82 = scmp.eq.s32.totalorder %s20, 0
    %p83 = por %p81, %p82
    %p84 = scmp.ne.s32.totalorder %s72, %s73
    %p85 = scmp.eq.s32.totalorder %s21, 1
    %p86 = por %p84, %p85
    %p88 = scmp.ne.s32.totalorder %s73, %s87
    %p89 = scmp.eq.s32.totalorder %s21, 0
    %p90 = por %p88, %p89
    %s92 = sadd.s32 %s91, 1
    %p95 = scmp.eq.s32.totalorder %s15, 1
    %p96 = scmp.ne.s32.totalorder %s91, %s93
    %p97 = scmp.eq.s32.totalorder %s15, 0
    %p98 = por %p96, %p97
    %p99 = scmp.ne.s32.totalorder %s91, %s93
    %p100 = scmp.eq.s32.totalorder %s20, 1
    %p101 = por %p99, %p100
    %p102 = scmp.ne.s32.totalorder %s93, %s94
    %p103 = scmp.eq.s32.totalorder %s20, 0
    %p104 = por %p102, %p103
    %p105 = scmp.ne.s32.totalorder %s93, %s94
    %p106 = scmp.eq.s32.totalorder %s21, 1
    %p107 = por %p105, %p106
    %p109 = scmp.ne.s32.totalorder %s94, %s108
    %p110 = scmp.eq.s32.totalorder %s21, 0
    %p111 = por %p109, %p110
    %s113 = sadd.s32 %s112, 1
    %p116 = scmp.eq.s32.totalorder %s15, 1
    %p117 = scmp.ne.s32.totalorder %s112, %s114
    %p118 = scmp.eq.s32.totalorder %s15, 0
    %p119 = por %p117, %p118
    %p120 = scmp.ne.s32.totalorder %s112, %s114
    %p121 = scmp.eq.s32.totalorder %s20, 1
    %p122 = por %p120, %p121
    %p123 = scmp.ne.s32.totalorder %s114, %s115
    %p124 = scmp.eq.s32.totalorder %s20, 0
    %p125 = por %p123, %p124
    %p126 = scmp.ne.s32.totalorder %s114, %s115
    %p127 = scmp.eq.s32.totalorder %s21, 1
    %p128 = por %p126, %p127
    %p130 = scmp.ne.s32.totalorder %s115, %s129
    %p131 = scmp.eq.s32.totalorder %s21, 0
    %p132 = por %p130, %p131
    %s134 = sadd.s32 %s133, 1
    %p137 = scmp.eq.s32.totalorder %s15, 1
    %p138 = scmp.ne.s32.totalorder %s133, %s135
    %p139 = scmp.eq.s32.totalorder %s15, 0
    %p140 = por %p138, %p139
    %p141 = scmp.ne.s32.totalorder %s133, %s135
    %p142 = scmp.eq.s32.totalorder %s20, 1
    %p143 = por %p141, %p142
    %p144 = scmp.ne.s32.totalorder %s135, %s136
    %p145 = scmp.eq.s32.totalorder %s20, 0
    %p146 = por %p144, %p145
    %p147 = scmp.ne.s32.totalorder %s135, %s136
    %p148 = scmp.eq.s32.totalorder %s21, 1
    %p149 = por %p147, %p148
    %p151 = scmp.ne.s32.totalorder %s136, %s150
    %p152 = scmp.eq.s32.totalorder %s21, 0
    %p153 = por %p151, %p152
    %s155 = sadd.s32 %s154, 1
    %p158 = scmp.eq.s32.totalorder %s15, 1
    %p159 = scmp.ne.s32.totalorder %s154, %s156
    %p160 = scmp.eq.s32.totalorder %s15, 0
    %p161 = por %p159, %p160
    %p162 = scmp.ne.s32.totalorder %s154, %s156
    %p163 = scmp.eq.s32.totalorder %s20, 1
    %p164 = por %p162, %p163
    %p165 = scmp.ne.s32.totalorder %s156, %s157
    %p166 = scmp.eq.s32.totalorder %s20, 0
    %p167 = por %p165, %p166
    %p168 = scmp.ne.s32.totalorder %s156, %s157
    %p169 = scmp.eq.s32.totalorder %s21, 1
    %p170 = por %p168, %p169
    %p172 = scmp.ne.s32.totalorder %s157, %s171
    %p173 = scmp.eq.s32.totalorder %s21, 0
    %p174 = por %p172, %p173
    %s175 = ssub.s32 %s15, %s22
    %p176 = scmp.eq.s32.totalorder %s175, 0
    %s178 = sadd.s32 %s177, 1
    %s179 = scalar_select %p176, %s177, %s178
    %p182 = pneg %p176
    %p183 = scmp.eq.s32.totalorder %s15, 1
    %p184 = por %p182, %p183
    %p185 = scmp.ne.s32.totalorder %s177, %s180
    %p186 = scmp.eq.s32.totalorder %s15, 0
    %p187 = por %p185, %p186
    %p188 = scmp.ne.s32.totalorder %s177, %s180
    %p189 = scmp.eq.s32.totalorder %s20, 1
    %p190 = por %p188, %p189
    %p191 = scmp.ne.s32.totalorder %s180, %s181
    %p192 = scmp.eq.s32.totalorder %s20, 0
    %p193 = por %p191, %p192
    %p194 = scmp.ne.s32.totalorder %s180, %s181
    %p195 = scmp.eq.s32.totalorder %s21, 1
    %p196 = por %p194, %p195
    %p198 = scmp.ne.s32.totalorder %s181, %s197
    %p199 = scmp.eq.s32.totalorder %s21, 0
    %p200 = por %p198, %p199
    %p201 = scmp.le.s32.totalorder 1, %s15
    %p202 = scmp.lt.s32.totalorder %s15, 3
    %p203 = pnand %p201, %p202
    %p204 = pneg %p203
    // Predicated region
    $region9: #{basic_block_pallas.1} parent=5 // pred_check
      _
    $region10: #{basic_block_pallas.1} parent=5 // pred_check_branch
      %206 = sbr.rel (%p203) target = $region12
    $region11: #{basic_block_pallas.1} parent=5 // pred_region
      %s207 = ssub.s32 %s15, 1
      // Predicated region
      $region13: #{basic_block_pallas.1} parent=11 // pred_check
        %p208 = pneg %p62
      $region14: #{basic_block_pallas.1} parent=11 // pred_check_branch
        %210 = sbr.rel (%p208) target = $region16
      $region15: #{basic_block_pallas.1} parent=11 // pred_region
        _
      $region16: #{basic_block_pallas.1} parent=11 // pred_fallthru
        _
      // Predicated region
      $region17: #{basic_block_pallas.1} parent=11 // pred_check
        %p211 = pneg %p83
      $region18: #{basic_block_pallas.1} parent=11 // pred_check_branch
        %213 = sbr.rel (%p211) target = $region20
      $region19: #{basic_block_pallas.1} parent=11 // pred_region
        _
      $region20: #{basic_block_pallas.1} parent=11 // pred_fallthru
        _
      // Predicated region
      $region21: #{basic_block_pallas.1} parent=11 // pred_check
        %p214 = pneg %p104
      $region22: #{basic_block_pallas.1} parent=11 // pred_check_branch
        %216 = sbr.rel (%p214) target = $region24
      $region23: #{basic_block_pallas.1} parent=11 // pred_region
        _
      $region24: #{basic_block_pallas.1} parent=11 // pred_fallthru
        _
      // Predicated region
      $region25: #{basic_block_pallas.1} parent=11 // pred_check
        %p217 = pneg %p125
      $region26: #{basic_block_pallas.1} parent=11 // pred_check_branch
        %219 = sbr.rel (%p217) target = $region28
      $region27: #{basic_block_pallas.1} parent=11 // pred_region
        _
      $region28: #{basic_block_pallas.1} parent=11 // pred_fallthru
        _
      // Predicated region
      $region29: #{basic_block_pallas.1} parent=11 // pred_check
        %p220 = pneg %p146
      $region30: #{basic_block_pallas.1} parent=11 // pred_check_branch
        %222 = sbr.rel (%p220) target = $region32
      $region31: #{basic_block_pallas.1} parent=11 // pred_region
        _
      $region32: #{basic_block_pallas.1} parent=11 // pred_fallthru
        _
      // Predicated region
      $region33: #{basic_block_pallas.1} parent=11 // pred_check
        %p223 = pneg %p167
      $region34: #{basic_block_pallas.1} parent=11 // pred_check_branch
        %225 = sbr.rel (%p223) target = $region36
      $region35: #{basic_block_pallas.1} parent=11 // pred_region
        _
      $region36: #{basic_block_pallas.1} parent=11 // pred_fallthru
        _
    $region12: #{basic_block_pallas.1} parent=5 // pred_fallthru
      _
    %p226 = scmp.lt.s32.totalorder %s15, 2
    // Predicated region
    $region37: #{basic_block_pallas.1} parent=5 // pred_check
      %p227 = pneg %p226
    $region38: #{basic_block_pallas.1} parent=5 // pred_check_branch
      %229 = sbr.rel (%p227) target = $region40
    $region39: #{basic_block_pallas.1} parent=5 // pred_region
      // Predicated region
      $region41: #{basic_block_pallas.1} parent=39 // pred_check
        %p230 = pneg %p35
      $region42: #{basic_block_pallas.1} parent=39 // pred_check_branch
        %232 = sbr.rel (%p230) target = $region44
      $region43: #{basic_block_pallas.1} parent=39 // pred_region
        %p233 = scmp.lt.s32.totalorder %s15, 1
        %s234 = scalar_select %p233, %s15, 1
        %s235 = smul.addr %s234, 54
        %s236 = smul.addr %s235, 8
        %s237 = scalar_lea.vmem %s0, %s236
      $region44: #{basic_block_pallas.1} parent=39 // pred_fallthru
        _
    $region40: #{basic_block_pallas.1} parent=5 // pred_fallthru
      _
    %p238 = scmp.le.s32.totalorder 1, %s15
    %p239 = scmp.lt.s32.totalorder %s15, 3
    %p240 = pnand %p238, %p239
    %p241 = pneg %p240
    // Predicated region
    $region45: #{basic_block_pallas.1} parent=5 // pred_check
      _
    $region46: #{basic_block_pallas.1} parent=5 // pred_check_branch
      %243 = sbr.rel (%p240) target = $region48
    $region47: #{basic_block_pallas.1} parent=5 // pred_region
      %s244 = ssub.s32 %s15, 1
      %p245 = scmp.lt.s32.totalorder %s20, 1
      %s246 = scalar_select %p245, %s20, 1
      %s247 = smul.addr %s246, 54
      %s248 = smul.addr %s247, 8
      %s249 = scalar_lea.vmem %s0, %s248
      %p250 = pneg %p41
      %p251 = pneg %p38
      %p252 = pneg %p62
      %p253 = pneg %p59
      %p254 = pneg %p83
      %p255 = pneg %p80
      %p256 = pneg %p104
      %p257 = pneg %p101
      %p258 = pneg %p125
      %p259 = pneg %p122
      %p260 = pneg %p146
      %p261 = pneg %p143
      %p262 = pneg %p167
      %p263 = pneg %p164
      %p264 = pneg %p193
      %p265 = pneg %p190
      %p266 = scmp.lt.s32.totalorder %s20, 1
      %s267 = scalar_select %p266, %s20, 1
      %s268 = smul.addr %s267, 25
      %s269 = smul.addr %s268, 8
      %s270 = scalar_lea.vmem %s7, %s269
      %p271 = scmp.lt.s32.totalorder %s20, 1
      %s272 = scalar_select %p271, %s20, 1
      %s273 = smul.addr %s272, 54
      %s274 = smul.addr %s273, 8
      %s275 = scalar_lea.vmem %s0, %s274
      %p276 = scmp.lt.s32.totalorder %s20, 1
      %s277 = scalar_select %p276, %s20, 1
      %s278 = smul.addr %s277, 25
      %s279 = smul.addr %s278, 8
      %s280 = scalar_lea.vmem %s7, %s279
      %v281 = vld [vmem:[%s275] sm:$0xff]
      %v282 = vld [vmem:[%s275 + $0x8] sm:$0xff]
      %v283 = vld [vmem:[%s275 + $0x18] sm:$0xff]
      %v284 = vld [vmem:[%s275 + $0x20] sm:$0xff]
      %v285 = vld [vmem:[%s275 + $0x30] sm:$0xff]
      %v286 = vld [vmem:[%s275 + $0x38] sm:$0xff]
      %v287 = vld [vmem:[%s275 + $0x48] sm:$0xff]
      %v288 = vld [vmem:[%s275 + $0x50] sm:$0xff]
      %v289 = vld [vmem:[%s275 + $0x60] sm:$0xff]
      %v290 = vld [vmem:[%s275 + $0x68] sm:$0xff]
      %v291 = vld [vmem:[%s275 + $0x78] sm:$0xff]
      %v292 = vld [vmem:[%s275 + $0x80] sm:$0xff]
      %v293 = vld [vmem:[%s275 + $0x90] sm:$0xff]
      %v294 = vld [vmem:[%s275 + $0x98] sm:$0xff]
      %v295 = vld [vmem:[%s275 + $0xa8] sm:$0xff]
      %v296 = vld [vmem:[%s275 + $0xb0] sm:$0xff]
      %v297 = vld [vmem:[%s275 + $0xc0] sm:$0xff]
      %v298 = vld [vmem:[%s275 + $0xc8] sm:$0xff]
      %v299 = vld [vmem:[%s275 + $0xd8] sm:$0xff]
      %v300 = vld [vmem:[%s275 + $0xe0] sm:$0xff]
      %v301 = vld [vmem:[%s275 + $0xf0] sm:$0xff]
      %v302 = vld [vmem:[%s275 + $0xf8] sm:$0xff]
      %v303 = vld [vmem:[%s275 + $0x108] sm:$0xff]
      %v304 = vld [vmem:[%s275 + $0x110] sm:$0xff]
      %v305 = vld [vmem:[%s275 + $0x120] sm:$0xff]
      %v306 = vld [vmem:[%s275 + $0x128] sm:$0xff]
      %v307 = vld [vmem:[%s275 + $0x138] sm:$0xff]
      %v308 = vld [vmem:[%s275 + $0x140] sm:$0xff]
      %v309 = vld [vmem:[%s275 + $0x150] sm:$0xff]
      %v310 = vld [vmem:[%s275 + $0x158] sm:$0xff]
      %v311 = vld [vmem:[%s275 + $0x168] sm:$0xff]
      %v312 = vld [vmem:[%s275 + $0x170] sm:$0xff]
      %v313 = vld [vmem:[%s275 + $0x1] sm:$0xff]
      %v314 = vld [vmem:[%s275 + $0x9] sm:$0xff]
      %v315 = vld [vmem:[%s275 + $0x19] sm:$0xff]
      %v316 = vld [vmem:[%s275 + $0x21] sm:$0xff]
      %v317 = vld [vmem:[%s275 + $0x31] sm:$0xff]
      %v318 = vld [vmem:[%s275 + $0x39] sm:$0xff]
      %v319 = vld [vmem:[%s275 + $0x49] sm:$0xff]
      %v320 = vld [vmem:[%s275 + $0x51] sm:$0xff]
      %v321 = vld [vmem:[%s275 + $0x61] sm:$0xff]
      %v322 = vld [vmem:[%s275 + $0x69] sm:$0xff]
      %v323 = vld [vmem:[%s275 + $0x79] sm:$0xff]
      %v324 = vld [vmem:[%s275 + $0x81] sm:$0xff]
      %v325 = vld [vmem:[%s275 + $0x91] sm:$0xff]
      %v326 = vld [vmem:[%s275 + $0x99] sm:$0xff]
      %v327 = vld [vmem:[%s275 + $0xa9] sm:$0xff]
      %v328 = vld [vmem:[%s275 + $0xb1] sm:$0xff]
      %v329 = vld [vmem:[%s275 + $0xc1] sm:$0xff]
      %v330 = vld [vmem:[%s275 + $0xc9] sm:$0xff]
      %v331 = vld [vmem:[%s275 + $0xd9] sm:$0xff]
      %v332 = vld [vmem:[%s275 + $0xe1] sm:$0xff]
      %v333 = vld [vmem:[%s275 + $0xf1] sm:$0xff]
      %v334 = vld [vmem:[%s275 + $0xf9] sm:$0xff]
      %v335 = vld [vmem:[%s275 + $0x109] sm:$0xff]
      %v336 = vld [vmem:[%s275 + $0x111] sm:$0xff]
      %v337 = vld [vmem:[%s275 + $0x121] sm:$0xff]
      %v338 = vld [vmem:[%s275 + $0x129] sm:$0xff]
      %v339 = vld [vmem:[%s275 + $0x139] sm:$0xff]
      %v340 = vld [vmem:[%s275 + $0x141] sm:$0xff]
      %v341 = vld [vmem:[%s275 + $0x151] sm:$0xff]
      %v342 = vld [vmem:[%s275 + $0x159] sm:$0xff]
      %v343 = vld [vmem:[%s275 + $0x169] sm:$0xff]
      %v344 = vld [vmem:[%s275 + $0x171] sm:$0xff]
      %v345 = vld [vmem:[%s275 + $0x2] sm:$0xff]
      %v346 = vld [vmem:[%s275 + $0xa] sm:$0xff]
      %v347 = vld [vmem:[%s275 + $0x1a] sm:$0xff]
      %v348 = vld [vmem:[%s275 + $0x22] sm:$0xff]
      %v349 = vld [vmem:[%s275 + $0x32] sm:$0xff]
      %v350 = vld [vmem:[%s275 + $0x3a] sm:$0xff]
      %v351 = vld [vmem:[%s275 + $0x4a] sm:$0xff]
      %v352 = vld [vmem:[%s275 + $0x52] sm:$0xff]
      %v353 = vld [vmem:[%s275 + $0x62] sm:$0xff]
      %v354 = vld [vmem:[%s275 + $0x6a] sm:$0xff]
      %v355 = vld [vmem:[%s275 + $0x7a] sm:$0xff]
      %v356 = vld [vmem:[%s275 + $0x82] sm:$0xff]
      %v357 = vld [vmem:[%s275 + $0x92] sm:$0xff]
      %v358 = vld [vmem:[%s275 + $0x9a] sm:$0xff]
      %v359 = vld [vmem:[%s275 + $0xaa] sm:$0xff]
      %v360 = vld [vmem:[%s275 + $0xb2] sm:$0xff]
      %v361 = vld [vmem:[%s275 + $0xc2] sm:$0xff]
      %v362 = vld [vmem:[%s275 + $0xca] sm:$0xff]
      %v363 = vld [vmem:[%s275 + $0xda] sm:$0xff]
      %v364 = vld [vmem:[%s275 + $0xe2] sm:$0xff]
      %v365 = vld [vmem:[%s275 + $0xf2] sm:$0xff]
      %v366 = vld [vmem:[%s275 + $0xfa] sm:$0xff]
      %v367 = vld [vmem:[%s275 + $0x10a] sm:$0xff]
      %v368 = vld [vmem:[%s275 + $0x112] sm:$0xff]
      %v369 = vld [vmem:[%s275 + $0x122] sm:$0xff]
      %v370 = vld [vmem:[%s275 + $0x12a] sm:$0xff]
      %v371 = vld [vmem:[%s275 + $0x13a] sm:$0xff]
      %v372 = vld [vmem:[%s275 + $0x142] sm:$0xff]
      %v373 = vld [vmem:[%s275 + $0x152] sm:$0xff]
      %v374 = vld [vmem:[%s275 + $0x15a] sm:$0xff]
      %v375 = vld [vmem:[%s275 + $0x16a] sm:$0xff]
      %v376 = vld [vmem:[%s275 + $0x172] sm:$0xff]
      %s377 = scalar_lea.vmem %s275, 24
      %v378 = vld [vmem:[%s377] sm:$0xff]
      %v379 = vld [vmem:[%s377 + $0x8] sm:$0xff]
      %v380 = vld [vmem:[%s377 + $0x18] sm:$0xff]
      %v381 = vld [vmem:[%s377 + $0x20] sm:$0xff]
      %v382 = vld [vmem:[%s377 + $0x30] sm:$0xff]
      %v383 = vld [vmem:[%s377 + $0x38] sm:$0xff]
      %v384 = vld [vmem:[%s377 + $0x48] sm:$0xff]
      %v385 = vld [vmem:[%s377 + $0x50] sm:$0xff]
      %v386 = vld [vmem:[%s377 + $0x60] sm:$0xff]
      %v387 = vld [vmem:[%s377 + $0x68] sm:$0xff]
      %v388 = vld [vmem:[%s377 + $0x78] sm:$0xff]
      %v389 = vld [vmem:[%s377 + $0x80] sm:$0xff]
      %v390 = vld [vmem:[%s377 + $0x90] sm:$0xff]
      %v391 = vld [vmem:[%s377 + $0x98] sm:$0xff]
      %v392 = vld [vmem:[%s377 + $0xa8] sm:$0xff]
      %v393 = vld [vmem:[%s377 + $0xb0] sm:$0xff]
      %v394 = vld [vmem:[%s377 + $0xc0] sm:$0xff]
      %v395 = vld [vmem:[%s377 + $0xc8] sm:$0xff]
      %v396 = vld [vmem:[%s377 + $0xd8] sm:$0xff]
      %v397 = vld [vmem:[%s377 + $0xe0] sm:$0xff]
      %v398 = vld [vmem:[%s377 + $0xf0] sm:$0xff]
      %v399 = vld [vmem:[%s377 + $0xf8] sm:$0xff]
      %v400 = vld [vmem:[%s377 + $0x108] sm:$0xff]
      %v401 = vld [vmem:[%s377 + $0x110] sm:$0xff]
      %v402 = vld [vmem:[%s377 + $0x120] sm:$0xff]
      %v403 = vld [vmem:[%s377 + $0x128] sm:$0xff]
      %v404 = vld [vmem:[%s377 + $0x138] sm:$0xff]
      %v405 = vld [vmem:[%s377 + $0x140] sm:$0xff]
      %v406 = vld [vmem:[%s377 + $0x150] sm:$0xff]
      %v407 = vld [vmem:[%s377 + $0x158] sm:$0xff]
      %v408 = vld [vmem:[%s377 + $0x168] sm:$0xff]
      %v409 = vld [vmem:[%s377 + $0x170] sm:$0xff]
      %v410 = vld [vmem:[%s377 + $0x1] sm:$0xff]
      %v411 = vld [vmem:[%s377 + $0x9] sm:$0xff]
      %v412 = vld [vmem:[%s377 + $0x19] sm:$0xff]
      %v413 = vld [vmem:[%s377 + $0x21] sm:$0xff]
      %v414 = vld [vmem:[%s377 + $0x31] sm:$0xff]
      %v415 = vld [vmem:[%s377 + $0x39] sm:$0xff]
      %v416 = vld [vmem:[%s377 + $0x49] sm:$0xff]
      %v417 = vld [vmem:[%s377 + $0x51] sm:$0xff]
      %v418 = vld [vmem:[%s377 + $0x61] sm:$0xff]
      %v419 = vld [vmem:[%s377 + $0x69] sm:$0xff]
      %v420 = vld [vmem:[%s377 + $0x79] sm:$0xff]
      %v421 = vld [vmem:[%s377 + $0x81] sm:$0xff]
      %v422 = vld [vmem:[%s377 + $0x91] sm:$0xff]
      %v423 = vld [vmem:[%s377 + $0x99] sm:$0xff]
      %v424 = vld [vmem:[%s377 + $0xa9] sm:$0xff]
      %v425 = vld [vmem:[%s377 + $0xb1] sm:$0xff]
      %v426 = vld [vmem:[%s377 + $0xc1] sm:$0xff]
      %v427 = vld [vmem:[%s377 + $0xc9] sm:$0xff]
      %v428 = vld [vmem:[%s377 + $0xd9] sm:$0xff]
      %v429 = vld [vmem:[%s377 + $0xe1] sm:$0xff]
      %v430 = vld [vmem:[%s377 + $0xf1] sm:$0xff]
      %v431 = vld [vmem:[%s377 + $0xf9] sm:$0xff]
      %v432 = vld [vmem:[%s377 + $0x109] sm:$0xff]
      %v433 = vld [vmem:[%s377 + $0x111] sm:$0xff]
      %v434 = vld [vmem:[%s377 + $0x121] sm:$0xff]
      %v435 = vld [vmem:[%s377 + $0x129] sm:$0xff]
      %v436 = vld [vmem:[%s377 + $0x139] sm:$0xff]
      %v437 = vld [vmem:[%s377 + $0x141] sm:$0xff]
      %v438 = vld [vmem:[%s377 + $0x151] sm:$0xff]
      %v439 = vld [vmem:[%s377 + $0x159] sm:$0xff]
      %v440 = vld [vmem:[%s377 + $0x169] sm:$0xff]
      %v441 = vld [vmem:[%s377 + $0x171] sm:$0xff]
      %v442 = vld [vmem:[%s377 + $0x2] sm:$0xff]
      %v443 = vld [vmem:[%s377 + $0xa] sm:$0xff]
      %v444 = vld [vmem:[%s377 + $0x1a] sm:$0xff]
      %v445 = vld [vmem:[%s377 + $0x22] sm:$0xff]
      %v446 = vld [vmem:[%s377 + $0x32] sm:$0xff]
      %v447 = vld [vmem:[%s377 + $0x3a] sm:$0xff]
      %v448 = vld [vmem:[%s377 + $0x4a] sm:$0xff]
      %v449 = vld [vmem:[%s377 + $0x52] sm:$0xff]
      %v450 = vld [vmem:[%s377 + $0x62] sm:$0xff]
      %v451 = vld [vmem:[%s377 + $0x6a] sm:$0xff]
      %v452 = vld [vmem:[%s377 + $0x7a] sm:$0xff]
      %v453 = vld [vmem:[%s377 + $0x82] sm:$0xff]
      %v454 = vld [vmem:[%s377 + $0x92] sm:$0xff]
      %v455 = vld [vmem:[%s377 + $0x9a] sm:$0xff]
      %v456 = vld [vmem:[%s377 + $0xaa] sm:$0xff]
      %v457 = vld [vmem:[%s377 + $0xb2] sm:$0xff]
      %v458 = vld [vmem:[%s377 + $0xc2] sm:$0xff]
      %v459 = vld [vmem:[%s377 + $0xca] sm:$0xff]
      %v460 = vld [vmem:[%s377 + $0xda] sm:$0xff]
      %v461 = vld [vmem:[%s377 + $0xe2] sm:$0xff]
      %v462 = vld [vmem:[%s377 + $0xf2] sm:$0xff]
      %v463 = vld [vmem:[%s377 + $0xfa] sm:$0xff]
      %v464 = vld [vmem:[%s377 + $0x10a] sm:$0xff]
      %v465 = vld [vmem:[%s377 + $0x112] sm:$0xff]
      %v466 = vld [vmem:[%s377 + $0x122] sm:$0xff]
      %v467 = vld [vmem:[%s377 + $0x12a] sm:$0xff]
      %v468 = vld [vmem:[%s377 + $0x13a] sm:$0xff]
      %v469 = vld [vmem:[%s377 + $0x142] sm:$0xff]
      %v470 = vld [vmem:[%s377 + $0x152] sm:$0xff]
      %v471 = vld [vmem:[%s377 + $0x15a] sm:$0xff]
      %v472 = vld [vmem:[%s377 + $0x16a] sm:$0xff]
      %v473 = vld [vmem:[%s377 + $0x172] sm:$0xff]
      %s474 = scalar_lea.vmem %s275, 48
      %v475 = vld [vmem:[%s474] sm:$0xff]
      %v476 = vld [vmem:[%s474 + $0x8] sm:$0xff]
      %v477 = vld [vmem:[%s474 + $0x18] sm:$0xff]
      %v478 = vld [vmem:[%s474 + $0x20] sm:$0xff]
      %v479 = vld [vmem:[%s474 + $0x30] sm:$0xff]
      %v480 = vld [vmem:[%s474 + $0x38] sm:$0xff]
      %v481 = vld [vmem:[%s474 + $0x48] sm:$0xff]
      %v482 = vld [vmem:[%s474 + $0x50] sm:$0xff]
      %v483 = vld [vmem:[%s474 + $0x60] sm:$0xff]
      %v484 = vld [vmem:[%s474 + $0x68] sm:$0xff]
      %v485 = vld [vmem:[%s474 + $0x78] sm:$0xff]
      %v486 = vld [vmem:[%s474 + $0x80] sm:$0xff]
      %v487 = vld [vmem:[%s474 + $0x90] sm:$0xff]
      %v488 = vld [vmem:[%s474 + $0x98] sm:$0xff]
      %v489 = vld [vmem:[%s474 + $0xa8] sm:$0xff]
      %v490 = vld [vmem:[%s474 + $0xb0] sm:$0xff]
      %v491 = vld [vmem:[%s474 + $0xc0] sm:$0xff]
      %v492 = vld [vmem:[%s474 + $0xc8] sm:$0xff]
      %v493 = vld [vmem:[%s474 + $0xd8] sm:$0xff]
      %v494 = vld [vmem:[%s474 + $0xe0] sm:$0xff]
      %v495 = vld [vmem:[%s474 + $0xf0] sm:$0xff]
      %v496 = vld [vmem:[%s474 + $0xf8] sm:$0xff]
      %v497 = vld [vmem:[%s474 + $0x108] sm:$0xff]
      %v498 = vld [vmem:[%s474 + $0x110] sm:$0xff]
      %v499 = vld [vmem:[%s474 + $0x120] sm:$0xff]
      %v500 = vld [vmem:[%s474 + $0x128] sm:$0xff]
      %v501 = vld [vmem:[%s474 + $0x138] sm:$0xff]
      %v502 = vld [vmem:[%s474 + $0x140] sm:$0xff]
      %v503 = vld [vmem:[%s474 + $0x150] sm:$0xff]
      %v504 = vld [vmem:[%s474 + $0x158] sm:$0xff]
      %v505 = vld [vmem:[%s474 + $0x168] sm:$0xff]
      %v506 = vld [vmem:[%s474 + $0x170] sm:$0xff]
      %v507 = vld [vmem:[%s474 + $0x1] sm:$0xff]
      %v508 = vld [vmem:[%s474 + $0x9] sm:$0xff]
      %v509 = vld [vmem:[%s474 + $0x19] sm:$0xff]
      %v510 = vld [vmem:[%s474 + $0x21] sm:$0xff]
      %v511 = vld [vmem:[%s474 + $0x31] sm:$0xff]
      %v512 = vld [vmem:[%s474 + $0x39] sm:$0xff]
      %v513 = vld [vmem:[%s474 + $0x49] sm:$0xff]
      %v514 = vld [vmem:[%s474 + $0x51] sm:$0xff]
      %v515 = vld [vmem:[%s474 + $0x61] sm:$0xff]
      %v516 = vld [vmem:[%s474 + $0x69] sm:$0xff]
      %v517 = vld [vmem:[%s474 + $0x79] sm:$0xff]
      %v518 = vld [vmem:[%s474 + $0x81] sm:$0xff]
      %v519 = vld [vmem:[%s474 + $0x91] sm:$0xff]
      %v520 = vld [vmem:[%s474 + $0x99] sm:$0xff]
      %v521 = vld [vmem:[%s474 + $0xa9] sm:$0xff]
      %v522 = vld [vmem:[%s474 + $0xb1] sm:$0xff]
      %v523 = vld [vmem:[%s474 + $0xc1] sm:$0xff]
      %v524 = vld [vmem:[%s474 + $0xc9] sm:$0xff]
      %v525 = vld [vmem:[%s474 + $0xd9] sm:$0xff]
      %v526 = vld [vmem:[%s474 + $0xe1] sm:$0xff]
      %v527 = vld [vmem:[%s474 + $0xf1] sm:$0xff]
      %v528 = vld [vmem:[%s474 + $0xf9] sm:$0xff]
      %v529 = vld [vmem:[%s474 + $0x109] sm:$0xff]
      %v530 = vld [vmem:[%s474 + $0x111] sm:$0xff]
      %v531 = vld [vmem:[%s474 + $0x121] sm:$0xff]
      %v532 = vld [vmem:[%s474 + $0x129] sm:$0xff]
      %v533 = vld [vmem:[%s474 + $0x139] sm:$0xff]
      %v534 = vld [vmem:[%s474 + $0x141] sm:$0xff]
      %v535 = vld [vmem:[%s474 + $0x151] sm:$0xff]
      %v536 = vld [vmem:[%s474 + $0x159] sm:$0xff]
      %v537 = vld [vmem:[%s474 + $0x169] sm:$0xff]
      %v538 = vld [vmem:[%s474 + $0x171] sm:$0xff]
      %v539 = vld [vmem:[%s474 + $0x2] sm:$0xff]
      %v540 = vld [vmem:[%s474 + $0xa] sm:$0xff]
      %v541 = vld [vmem:[%s474 + $0x1a] sm:$0xff]
      %v542 = vld [vmem:[%s474 + $0x22] sm:$0xff]
      %v543 = vld [vmem:[%s474 + $0x32] sm:$0xff]
      %v544 = vld [vmem:[%s474 + $0x3a] sm:$0xff]
      %v545 = vld [vmem:[%s474 + $0x4a] sm:$0xff]
      %v546 = vld [vmem:[%s474 + $0x52] sm:$0xff]
      %v547 = vld [vmem:[%s474 + $0x62] sm:$0xff]
      %v548 = vld [vmem:[%s474 + $0x6a] sm:$0xff]
      %v549 = vld [vmem:[%s474 + $0x7a] sm:$0xff]
      %v550 = vld [vmem:[%s474 + $0x82] sm:$0xff]
      %v551 = vld [vmem:[%s474 + $0x92] sm:$0xff]
      %v552 = vld [vmem:[%s474 + $0x9a] sm:$0xff]
      %v553 = vld [vmem:[%s474 + $0xaa] sm:$0xff]
      %v554 = vld [vmem:[%s474 + $0xb2] sm:$0xff]
      %v555 = vld [vmem:[%s474 + $0xc2] sm:$0xff]
      %v556 = vld [vmem:[%s474 + $0xca] sm:$0xff]
      %v557 = vld [vmem:[%s474 + $0xda] sm:$0xff]
      %v558 = vld [vmem:[%s474 + $0xe2] sm:$0xff]
      %v559 = vld [vmem:[%s474 + $0xf2] sm:$0xff]
      %v560 = vld [vmem:[%s474 + $0xfa] sm:$0xff]
      %v561 = vld [vmem:[%s474 + $0x10a] sm:$0xff]
      %v562 = vld [vmem:[%s474 + $0x112] sm:$0xff]
      %v563 = vld [vmem:[%s474 + $0x122] sm:$0xff]
      %v564 = vld [vmem:[%s474 + $0x12a] sm:$0xff]
      %v565 = vld [vmem:[%s474 + $0x13a] sm:$0xff]
      %v566 = vld [vmem:[%s474 + $0x142] sm:$0xff]
      %v567 = vld [vmem:[%s474 + $0x152] sm:$0xff]
      %v568 = vld [vmem:[%s474 + $0x15a] sm:$0xff]
      %v569 = vld [vmem:[%s474 + $0x16a] sm:$0xff]
      %v570 = vld [vmem:[%s474 + $0x172] sm:$0xff]
      %603 = vrot.lane.b32.xlu0 %v313, 4
      %v604 = vpop.permute.xlu0 %603
      %605 = vrot.lane.b32.xlu0 %v314, 4
      %v606 = vpop.permute.xlu0 %605
      %607 = vrot.lane.b32.xlu0 %v315, 4
      %v608 = vpop.permute.xlu0 %607
      %609 = vrot.lane.b32.xlu0 %v316, 4
      %v610 = vpop.permute.xlu0 %609
      %611 = vrot.lane.b32.xlu0 %v317, 4
      %v612 = vpop.permute.xlu0 %611
      %613 = vrot.lane.b32.xlu0 %v318, 4
      %v614 = vpop.permute.xlu0 %613
      %615 = vrot.lane.b32.xlu0 %v319, 4
      %v616 = vpop.permute.xlu0 %615
      %617 = vrot.lane.b32.xlu0 %v320, 4
      %v618 = vpop.permute.xlu0 %617
      %619 = vrot.lane.b32.xlu0 %v321, 4
      %v620 = vpop.permute.xlu0 %619
      %621 = vrot.lane.b32.xlu0 %v322, 4
      %v622 = vpop.permute.xlu0 %621
      %623 = vrot.lane.b32.xlu0 %v323, 4
      %v624 = vpop.permute.xlu0 %623
      %625 = vrot.lane.b32.xlu0 %v324, 4
      %v626 = vpop.permute.xlu0 %625
      %627 = vrot.lane.b32.xlu0 %v325, 4
      %v628 = vpop.permute.xlu0 %627
      %629 = vrot.lane.b32.xlu0 %v326, 4
      %v630 = vpop.permute.xlu0 %629
      %631 = vrot.lane.b32.xlu0 %v327, 4
      %v632 = vpop.permute.xlu0 %631
      %633 = vrot.lane.b32.xlu0 %v328, 4
      %v634 = vpop.permute.xlu0 %633
      %635 = vrot.lane.b32.xlu0 %v329, 4
      %v636 = vpop.permute.xlu0 %635
      %637 = vrot.lane.b32.xlu0 %v330, 4
      %v638 = vpop.permute.xlu0 %637
      %639 = vrot.lane.b32.xlu0 %v331, 4
      %v640 = vpop.permute.xlu0 %639
      %641 = vrot.lane.b32.xlu0 %v332, 4
      %v642 = vpop.permute.xlu0 %641
      %643 = vrot.lane.b32.xlu0 %v333, 4
      %v644 = vpop.permute.xlu0 %643
      %645 = vrot.lane.b32.xlu0 %v334, 4
      %v646 = vpop.permute.xlu0 %645
      %647 = vrot.lane.b32.xlu0 %v335, 4
      %v648 = vpop.permute.xlu0 %647
      %649 = vrot.lane.b32.xlu0 %v336, 4
      %v650 = vpop.permute.xlu0 %649
      %651 = vrot.lane.b32.xlu0 %v337, 4
      %v652 = vpop.permute.xlu0 %651
      %653 = vrot.lane.b32.xlu0 %v338, 4
      %v654 = vpop.permute.xlu0 %653
      %655 = vrot.lane.b32.xlu0 %v339, 4
      %v656 = vpop.permute.xlu0 %655
      %657 = vrot.lane.b32.xlu0 %v340, 4
      %v658 = vpop.permute.xlu0 %657
      %659 = vrot.lane.b32.xlu0 %v341, 4
      %v660 = vpop.permute.xlu0 %659
      %661 = vrot.lane.b32.xlu0 %v342, 4
      %v662 = vpop.permute.xlu0 %661
      %663 = vrot.lane.b32.xlu0 %v343, 4
      %v664 = vpop.permute.xlu0 %663
      %665 = vrot.lane.b32.xlu0 %v344, 4
      %v666 = vpop.permute.xlu0 %665
      %731 = vrot.lane.b32.xlu0 %v345, 8
      %v732 = vpop.permute.xlu0 %731
      %733 = vrot.lane.b32.xlu0 %v346, 8
      %v734 = vpop.permute.xlu0 %733
      %735 = vrot.lane.b32.xlu0 %v347, 8
      %v736 = vpop.permute.xlu0 %735
      %737 = vrot.lane.b32.xlu0 %v348, 8
      %v738 = vpop.permute.xlu0 %737
      %739 = vrot.lane.b32.xlu0 %v349, 8
      %v740 = vpop.permute.xlu0 %739
      %741 = vrot.lane.b32.xlu0 %v350, 8
      %v742 = vpop.permute.xlu0 %741
      %743 = vrot.lane.b32.xlu0 %v351, 8
      %v744 = vpop.permute.xlu0 %743
      %745 = vrot.lane.b32.xlu0 %v352, 8
      %v746 = vpop.permute.xlu0 %745
      %747 = vrot.lane.b32.xlu0 %v353, 8
      %v748 = vpop.permute.xlu0 %747
      %749 = vrot.lane.b32.xlu0 %v354, 8
      %v750 = vpop.permute.xlu0 %749
      %751 = vrot.lane.b32.xlu0 %v355, 8
      %v752 = vpop.permute.xlu0 %751
      %753 = vrot.lane.b32.xlu0 %v356, 8
      %v754 = vpop.permute.xlu0 %753
      %755 = vrot.lane.b32.xlu0 %v357, 8
      %v756 = vpop.permute.xlu0 %755
      %757 = vrot.lane.b32.xlu0 %v358, 8
      %v758 = vpop.permute.xlu0 %757
      %759 = vrot.lane.b32.xlu0 %v359, 8
      %v760 = vpop.permute.xlu0 %759
      %761 = vrot.lane.b32.xlu0 %v360, 8
      %v762 = vpop.permute.xlu0 %761
      %763 = vrot.lane.b32.xlu0 %v361, 8
      %v764 = vpop.permute.xlu0 %763
      %765 = vrot.lane.b32.xlu0 %v362, 8
      %v766 = vpop.permute.xlu0 %765
      %767 = vrot.lane.b32.xlu0 %v363, 8
      %v768 = vpop.permute.xlu0 %767
      %769 = vrot.lane.b32.xlu0 %v364, 8
      %v770 = vpop.permute.xlu0 %769
      %771 = vrot.lane.b32.xlu0 %v365, 8
      %v772 = vpop.permute.xlu0 %771
      %773 = vrot.lane.b32.xlu0 %v366, 8
      %v774 = vpop.permute.xlu0 %773
      %775 = vrot.lane.b32.xlu0 %v367, 8
      %v776 = vpop.permute.xlu0 %775
      %777 = vrot.lane.b32.xlu0 %v368, 8
      %v778 = vpop.permute.xlu0 %777
      %779 = vrot.lane.b32.xlu0 %v369, 8
      %v780 = vpop.permute.xlu0 %779
      %781 = vrot.lane.b32.xlu0 %v370, 8
      %v782 = vpop.permute.xlu0 %781
      %783 = vrot.lane.b32.xlu0 %v371, 8
      %v784 = vpop.permute.xlu0 %783
      %785 = vrot.lane.b32.xlu0 %v372, 8
      %v786 = vpop.permute.xlu0 %785
      %787 = vrot.lane.b32.xlu0 %v373, 8
      %v788 = vpop.permute.xlu0 %787
      %789 = vrot.lane.b32.xlu0 %v374, 8
      %v790 = vpop.permute.xlu0 %789
      %791 = vrot.lane.b32.xlu0 %v375, 8
      %v792 = vpop.permute.xlu0 %791
      %793 = vrot.lane.b32.xlu0 %v376, 8
      %v794 = vpop.permute.xlu0 %793
      %859 = vrot.lane.b32.xlu0 %v378, 12
      %v860 = vpop.permute.xlu0 %859
      %861 = vrot.lane.b32.xlu0 %v379, 12
      %v862 = vpop.permute.xlu0 %861
      %863 = vrot.lane.b32.xlu0 %v380, 12
      %v864 = vpop.permute.xlu0 %863
      %865 = vrot.lane.b32.xlu0 %v381, 12
      %v866 = vpop.permute.xlu0 %865
      %867 = vrot.lane.b32.xlu0 %v382, 12
      %v868 = vpop.permute.xlu0 %867
      %869 = vrot.lane.b32.xlu0 %v383, 12
      %v870 = vpop.permute.xlu0 %869
      %871 = vrot.lane.b32.xlu0 %v384, 12
      %v872 = vpop.permute.xlu0 %871
      %873 = vrot.lane.b32.xlu0 %v385, 12
      %v874 = vpop.permute.xlu0 %873
      %875 = vrot.lane.b32.xlu0 %v386, 12
      %v876 = vpop.permute.xlu0 %875
      %877 = vrot.lane.b32.xlu0 %v387, 12
      %v878 = vpop.permute.xlu0 %877
      %879 = vrot.lane.b32.xlu0 %v388, 12
      %v880 = vpop.permute.xlu0 %879
      %881 = vrot.lane.b32.xlu0 %v389, 12
      %v882 = vpop.permute.xlu0 %881
      %883 = vrot.lane.b32.xlu0 %v390, 12
      %v884 = vpop.permute.xlu0 %883
      %885 = vrot.lane.b32.xlu0 %v391, 12
      %v886 = vpop.permute.xlu0 %885
      %887 = vrot.lane.b32.xlu0 %v392, 12
      %v888 = vpop.permute.xlu0 %887
      %889 = vrot.lane.b32.xlu0 %v393, 12
      %v890 = vpop.permute.xlu0 %889
      %891 = vrot.lane.b32.xlu0 %v394, 12
      %v892 = vpop.permute.xlu0 %891
      %893 = vrot.lane.b32.xlu0 %v395, 12
      %v894 = vpop.permute.xlu0 %893
      %895 = vrot.lane.b32.xlu0 %v396, 12
      %v896 = vpop.permute.xlu0 %895
      %897 = vrot.lane.b32.xlu0 %v397, 12
      %v898 = vpop.permute.xlu0 %897
      %899 = vrot.lane.b32.xlu0 %v398, 12
      %v900 = vpop.permute.xlu0 %899
      %901 = vrot.lane.b32.xlu0 %v399, 12
      %v902 = vpop.permute.xlu0 %901
      %903 = vrot.lane.b32.xlu0 %v400, 12
      %v904 = vpop.permute.xlu0 %903
      %905 = vrot.lane.b32.xlu0 %v401, 12
      %v906 = vpop.permute.xlu0 %905
      %907 = vrot.lane.b32.xlu0 %v402, 12
      %v908 = vpop.permute.xlu0 %907
      %909 = vrot.lane.b32.xlu0 %v403, 12
      %v910 = vpop.permute.xlu0 %909
      %911 = vrot.lane.b32.xlu0 %v404, 12
      %v912 = vpop.permute.xlu0 %911
      %913 = vrot.lane.b32.xlu0 %v405, 12
      %v914 = vpop.permute.xlu0 %913
      %915 = vrot.lane.b32.xlu0 %v406, 12
      %v916 = vpop.permute.xlu0 %915
      %917 = vrot.lane.b32.xlu0 %v407, 12
      %v918 = vpop.permute.xlu0 %917
      %919 = vrot.lane.b32.xlu0 %v408, 12
      %v920 = vpop.permute.xlu0 %919
      %921 = vrot.lane.b32.xlu0 %v409, 12
      %v922 = vpop.permute.xlu0 %921
      %987 = vrot.lane.b32.xlu0 %v410, 16
      %v988 = vpop.permute.xlu0 %987
      %989 = vrot.lane.b32.xlu0 %v411, 16
      %v990 = vpop.permute.xlu0 %989
      %991 = vrot.lane.b32.xlu0 %v412, 16
      %v992 = vpop.permute.xlu0 %991
      %993 = vrot.lane.b32.xlu0 %v413, 16
      %v994 = vpop.permute.xlu0 %993
      %995 = vrot.lane.b32.xlu0 %v414, 16
      %v996 = vpop.permute.xlu0 %995
      %997 = vrot.lane.b32.xlu0 %v415, 16
      %v998 = vpop.permute.xlu0 %997
      %999 = vrot.lane.b32.xlu0 %v416, 16
      %v1000 = vpop.permute.xlu0 %999
      %1001 = vrot.lane.b32.xlu0 %v417, 16
      %v1002 = vpop.permute.xlu0 %1001
      %1003 = vrot.lane.b32.xlu0 %v418, 16
      %v1004 = vpop.permute.xlu0 %1003
      %1005 = vrot.lane.b32.xlu0 %v419, 16
      %v1006 = vpop.permute.xlu0 %1005
      %1007 = vrot.lane.b32.xlu0 %v420, 16
      %v1008 = vpop.permute.xlu0 %1007
      %1009 = vrot.lane.b32.xlu0 %v421, 16
      %v1010 = vpop.permute.xlu0 %1009
      %1011 = vrot.lane.b32.xlu0 %v422, 16
      %v1012 = vpop.permute.xlu0 %1011
      %1013 = vrot.lane.b32.xlu0 %v423, 16
      %v1014 = vpop.permute.xlu0 %1013
      %1015 = vrot.lane.b32.xlu0 %v424, 16
      %v1016 = vpop.permute.xlu0 %1015
      %1017 = vrot.lane.b32.xlu0 %v425, 16
      %v1018 = vpop.permute.xlu0 %1017
      %1019 = vrot.lane.b32.xlu0 %v426, 16
      %v1020 = vpop.permute.xlu0 %1019
      %1021 = vrot.lane.b32.xlu0 %v427, 16
      %v1022 = vpop.permute.xlu0 %1021
      %1023 = vrot.lane.b32.xlu0 %v428, 16
      %v1024 = vpop.permute.xlu0 %1023
      %1025 = vrot.lane.b32.xlu0 %v429, 16
      %v1026 = vpop.permute.xlu0 %1025
      %1027 = vrot.lane.b32.xlu0 %v430, 16
      %v1028 = vpop.permute.xlu0 %1027
      %1029 = vrot.lane.b32.xlu0 %v431, 16
      %v1030 = vpop.permute.xlu0 %1029
      %1031 = vrot.lane.b32.xlu0 %v432, 16
      %v1032 = vpop.permute.xlu0 %1031
      %1033 = vrot.lane.b32.xlu0 %v433, 16
      %v1034 = vpop.permute.xlu0 %1033
      %1035 = vrot.lane.b32.xlu0 %v434, 16
      %v1036 = vpop.permute.xlu0 %1035
      %1037 = vrot.lane.b32.xlu0 %v435, 16
      %v1038 = vpop.permute.xlu0 %1037
      %1039 = vrot.lane.b32.xlu0 %v436, 16
      %v1040 = vpop.permute.xlu0 %1039
      %1041 = vrot.lane.b32.xlu0 %v437, 16
      %v1042 = vpop.permute.xlu0 %1041
      %1043 = vrot.lane.b32.xlu0 %v438, 16
      %v1044 = vpop.permute.xlu0 %1043
      %1045 = vrot.lane.b32.xlu0 %v439, 16
      %v1046 = vpop.permute.xlu0 %1045
      %1047 = vrot.lane.b32.xlu0 %v440, 16
      %v1048 = vpop.permute.xlu0 %1047
      %1049 = vrot.lane.b32.xlu0 %v441, 16
      %v1050 = vpop.permute.xlu0 %1049
      %1115 = vrot.lane.b32.xlu0 %v442, 20
      %v1116 = vpop.permute.xlu0 %1115
      %1117 = vrot.lane.b32.xlu0 %v443, 20
      %v1118 = vpop.permute.xlu0 %1117
      %1119 = vrot.lane.b32.xlu0 %v444, 20
      %v1120 = vpop.permute.xlu0 %1119
      %1121 = vrot.lane.b32.xlu0 %v445, 20
      %v1122 = vpop.permute.xlu0 %1121
      %1123 = vrot.lane.b32.xlu0 %v446, 20
      %v1124 = vpop.permute.xlu0 %1123
      %1125 = vrot.lane.b32.xlu0 %v447, 20
      %v1126 = vpop.permute.xlu0 %1125
      %1127 = vrot.lane.b32.xlu0 %v448, 20
      %v1128 = vpop.permute.xlu0 %1127
      %1129 = vrot.lane.b32.xlu0 %v449, 20
      %v1130 = vpop.permute.xlu0 %1129
      %1131 = vrot.lane.b32.xlu0 %v450, 20
      %v1132 = vpop.permute.xlu0 %1131
      %1133 = vrot.lane.b32.xlu0 %v451, 20
      %v1134 = vpop.permute.xlu0 %1133
      %1135 = vrot.lane.b32.xlu0 %v452, 20
      %v1136 = vpop.permute.xlu0 %1135
      %1137 = vrot.lane.b32.xlu0 %v453, 20
      %v1138 = vpop.permute.xlu0 %1137
      %1139 = vrot.lane.b32.xlu0 %v454, 20
      %v1140 = vpop.permute.xlu0 %1139
      %1141 = vrot.lane.b32.xlu0 %v455, 20
      %v1142 = vpop.permute.xlu0 %1141
      %1143 = vrot.lane.b32.xlu0 %v456, 20
      %v1144 = vpop.permute.xlu0 %1143
      %1145 = vrot.lane.b32.xlu0 %v457, 20
      %v1146 = vpop.permute.xlu0 %1145
      %1147 = vrot.lane.b32.xlu0 %v458, 20
      %v1148 = vpop.permute.xlu0 %1147
      %1149 = vrot.lane.b32.xlu0 %v459, 20
      %v1150 = vpop.permute.xlu0 %1149
      %1151 = vrot.lane.b32.xlu0 %v460, 20
      %v1152 = vpop.permute.xlu0 %1151
      %1153 = vrot.lane.b32.xlu0 %v461, 20
      %v1154 = vpop.permute.xlu0 %1153
      %1155 = vrot.lane.b32.xlu0 %v462, 20
      %v1156 = vpop.permute.xlu0 %1155
      %1157 = vrot.lane.b32.xlu0 %v463, 20
      %v1158 = vpop.permute.xlu0 %1157
      %1159 = vrot.lane.b32.xlu0 %v464, 20
      %v1160 = vpop.permute.xlu0 %1159
      %1161 = vrot.lane.b32.xlu0 %v465, 20
      %v1162 = vpop.permute.xlu0 %1161
      %1163 = vrot.lane.b32.xlu0 %v466, 20
      %v1164 = vpop.permute.xlu0 %1163
      %1165 = vrot.lane.b32.xlu0 %v467, 20
      %v1166 = vpop.permute.xlu0 %1165
      %1167 = vrot.lane.b32.xlu0 %v468, 20
      %v1168 = vpop.permute.xlu0 %1167
      %1169 = vrot.lane.b32.xlu0 %v469, 20
      %v1170 = vpop.permute.xlu0 %1169
      %1171 = vrot.lane.b32.xlu0 %v470, 20
      %v1172 = vpop.permute.xlu0 %1171
      %1173 = vrot.lane.b32.xlu0 %v471, 20
      %v1174 = vpop.permute.xlu0 %1173
      %1175 = vrot.lane.b32.xlu0 %v472, 20
      %v1176 = vpop.permute.xlu0 %1175
      %1177 = vrot.lane.b32.xlu0 %v473, 20
      %v1178 = vpop.permute.xlu0 %1177
      %1243 = vrot.lane.b32.xlu0 %v475, 24
      %v1244 = vpop.permute.xlu0 %1243
      %1245 = vrot.lane.b32.xlu0 %v476, 24
      %v1246 = vpop.permute.xlu0 %1245
      %1247 = vrot.lane.b32.xlu0 %v477, 24
      %v1248 = vpop.permute.xlu0 %1247
      %1249 = vrot.lane.b32.xlu0 %v478, 24
      %v1250 = vpop.permute.xlu0 %1249
      %1251 = vrot.lane.b32.xlu0 %v479, 24
      %v1252 = vpop.permute.xlu0 %1251
      %1253 = vrot.lane.b32.xlu0 %v480, 24
      %v1254 = vpop.permute.xlu0 %1253
      %1255 = vrot.lane.b32.xlu0 %v481, 24
      %v1256 = vpop.permute.xlu0 %1255
      %1257 = vrot.lane.b32.xlu0 %v482, 24
      %v1258 = vpop.permute.xlu0 %1257
      %1259 = vrot.lane.b32.xlu0 %v483, 24
      %v1260 = vpop.permute.xlu0 %1259
      %1261 = vrot.lane.b32.xlu0 %v484, 24
      %v1262 = vpop.permute.xlu0 %1261
      %1263 = vrot.lane.b32.xlu0 %v485, 24
      %v1264 = vpop.permute.xlu0 %1263
      %1265 = vrot.lane.b32.xlu0 %v486, 24
      %v1266 = vpop.permute.xlu0 %1265
      %1267 = vrot.lane.b32.xlu0 %v487, 24
      %v1268 = vpop.permute.xlu0 %1267
      %1269 = vrot.lane.b32.xlu0 %v488, 24
      %v1270 = vpop.permute.xlu0 %1269
      %1271 = vrot.lane.b32.xlu0 %v489, 24
      %v1272 = vpop.permute.xlu0 %1271
      %1273 = vrot.lane.b32.xlu0 %v490, 24
      %v1274 = vpop.permute.xlu0 %1273
      %1275 = vrot.lane.b32.xlu0 %v491, 24
      %v1276 = vpop.permute.xlu0 %1275
      %1277 = vrot.lane.b32.xlu0 %v492, 24
      %v1278 = vpop.permute.xlu0 %1277
      %1279 = vrot.lane.b32.xlu0 %v493, 24
      %v1280 = vpop.permute.xlu0 %1279
      %1281 = vrot.lane.b32.xlu0 %v494, 24
      %v1282 = vpop.permute.xlu0 %1281
      %1283 = vrot.lane.b32.xlu0 %v495, 24
      %v1284 = vpop.permute.xlu0 %1283
      %1285 = vrot.lane.b32.xlu0 %v496, 24
      %v1286 = vpop.permute.xlu0 %1285
      %1287 = vrot.lane.b32.xlu0 %v497, 24
      %v1288 = vpop.permute.xlu0 %1287
      %1289 = vrot.lane.b32.xlu0 %v498, 24
      %v1290 = vpop.permute.xlu0 %1289
      %1291 = vrot.lane.b32.xlu0 %v499, 24
      %v1292 = vpop.permute.xlu0 %1291
      %1293 = vrot.lane.b32.xlu0 %v500, 24
      %v1294 = vpop.permute.xlu0 %1293
      %1295 = vrot.lane.b32.xlu0 %v501, 24
      %v1296 = vpop.permute.xlu0 %1295
      %1297 = vrot.lane.b32.xlu0 %v502, 24
      %v1298 = vpop.permute.xlu0 %1297
      %1299 = vrot.lane.b32.xlu0 %v503, 24
      %v1300 = vpop.permute.xlu0 %1299
      %1301 = vrot.lane.b32.xlu0 %v504, 24
      %v1302 = vpop.permute.xlu0 %1301
      %1303 = vrot.lane.b32.xlu0 %v505, 24
      %v1304 = vpop.permute.xlu0 %1303
      %1305 = vrot.lane.b32.xlu0 %v506, 24
      %v1306 = vpop.permute.xlu0 %1305
      %1371 = vrot.lane.b32.xlu0 %v507, 28
      %v1372 = vpop.permute.xlu0 %1371
      %1373 = vrot.lane.b32.xlu0 %v508, 28
      %v1374 = vpop.permute.xlu0 %1373
      %1375 = vrot.lane.b32.xlu0 %v509, 28
      %v1376 = vpop.permute.xlu0 %1375
      %1377 = vrot.lane.b32.xlu0 %v510, 28
      %v1378 = vpop.permute.xlu0 %1377
      %1379 = vrot.lane.b32.xlu0 %v511, 28
      %v1380 = vpop.permute.xlu0 %1379
      %1381 = vrot.lane.b32.xlu0 %v512, 28
      %v1382 = vpop.permute.xlu0 %1381
      %1383 = vrot.lane.b32.xlu0 %v513, 28
      %v1384 = vpop.permute.xlu0 %1383
      %1385 = vrot.lane.b32.xlu0 %v514, 28
      %v1386 = vpop.permute.xlu0 %1385
      %1387 = vrot.lane.b32.xlu0 %v515, 28
      %v1388 = vpop.permute.xlu0 %1387
      %1389 = vrot.lane.b32.xlu0 %v516, 28
      %v1390 = vpop.permute.xlu0 %1389
      %1391 = vrot.lane.b32.xlu0 %v517, 28
      %v1392 = vpop.permute.xlu0 %1391
      %1393 = vrot.lane.b32.xlu0 %v518, 28
      %v1394 = vpop.permute.xlu0 %1393
      %1395 = vrot.lane.b32.xlu0 %v519, 28
      %v1396 = vpop.permute.xlu0 %1395
      %1397 = vrot.lane.b32.xlu0 %v520, 28
      %v1398 = vpop.permute.xlu0 %1397
      %1399 = vrot.lane.b32.xlu0 %v521, 28
      %v1400 = vpop.permute.xlu0 %1399
      %1401 = vrot.lane.b32.xlu0 %v522, 28
      %v1402 = vpop.permute.xlu0 %1401
      %1403 = vrot.lane.b32.xlu0 %v523, 28
      %v1404 = vpop.permute.xlu0 %1403
      %1405 = vrot.lane.b32.xlu0 %v524, 28
      %v1406 = vpop.permute.xlu0 %1405
      %1407 = vrot.lane.b32.xlu0 %v525, 28
      %v1408 = vpop.permute.xlu0 %1407
      %1409 = vrot.lane.b32.xlu0 %v526, 28
      %v1410 = vpop.permute.xlu0 %1409
      %1411 = vrot.lane.b32.xlu0 %v527, 28
      %v1412 = vpop.permute.xlu0 %1411
      %1413 = vrot.lane.b32.xlu0 %v528, 28
      %v1414 = vpop.permute.xlu0 %1413
      %1415 = vrot.lane.b32.xlu0 %v529, 28
      %v1416 = vpop.permute.xlu0 %1415
      %1417 = vrot.lane.b32.xlu0 %v530, 28
      %v1418 = vpop.permute.xlu0 %1417
      %1419 = vrot.lane.b32.xlu0 %v531, 28
      %v1420 = vpop.permute.xlu0 %1419
      %1421 = vrot.lane.b32.xlu0 %v532, 28
      %v1422 = vpop.permute.xlu0 %1421
      %1423 = vrot.lane.b32.xlu0 %v533, 28
      %v1424 = vpop.permute.xlu0 %1423
      %1425 = vrot.lane.b32.xlu0 %v534, 28
      %v1426 = vpop.permute.xlu0 %1425
      %1427 = vrot.lane.b32.xlu0 %v535, 28
      %v1428 = vpop.permute.xlu0 %1427
      %1429 = vrot.lane.b32.xlu0 %v536, 28
      %v1430 = vpop.permute.xlu0 %1429
      %1431 = vrot.lane.b32.xlu0 %v537, 28
      %v1432 = vpop.permute.xlu0 %1431
      %1433 = vrot.lane.b32.xlu0 %v538, 28
      %v1434 = vpop.permute.xlu0 %1433
      %1499 = vrot.lane.b32.xlu0 %v539, 32
      %v1500 = vpop.permute.xlu0 %1499
      %1501 = vrot.lane.b32.xlu0 %v540, 32
      %v1502 = vpop.permute.xlu0 %1501
      %1503 = vrot.lane.b32.xlu0 %v541, 32
      %v1504 = vpop.permute.xlu0 %1503
      %1505 = vrot.lane.b32.xlu0 %v542, 32
      %v1506 = vpop.permute.xlu0 %1505
      %1507 = vrot.lane.b32.xlu0 %v543, 32
      %v1508 = vpop.permute.xlu0 %1507
      %1509 = vrot.lane.b32.xlu0 %v544, 32
      %v1510 = vpop.permute.xlu0 %1509
      %1511 = vrot.lane.b32.xlu0 %v545, 32
      %v1512 = vpop.permute.xlu0 %1511
      %1513 = vrot.lane.b32.xlu0 %v546, 32
      %v1514 = vpop.permute.xlu0 %1513
      %1515 = vrot.lane.b32.xlu0 %v547, 32
      %v1516 = vpop.permute.xlu0 %1515
      %1517 = vrot.lane.b32.xlu0 %v548, 32
      %v1518 = vpop.permute.xlu0 %1517
      %1519 = vrot.lane.b32.xlu0 %v549, 32
      %v1520 = vpop.permute.xlu0 %1519
      %1521 = vrot.lane.b32.xlu0 %v550, 32
      %v1522 = vpop.permute.xlu0 %1521
      %1523 = vrot.lane.b32.xlu0 %v551, 32
      %v1524 = vpop.permute.xlu0 %1523
      %1525 = vrot.lane.b32.xlu0 %v552, 32
      %v1526 = vpop.permute.xlu0 %1525
      %1527 = vrot.lane.b32.xlu0 %v553, 32
      %v1528 = vpop.permute.xlu0 %1527
      %1529 = vrot.lane.b32.xlu0 %v554, 32
      %v1530 = vpop.permute.xlu0 %1529
      %1531 = vrot.lane.b32.xlu0 %v555, 32
      %v1532 = vpop.permute.xlu0 %1531
      %1533 = vrot.lane.b32.xlu0 %v556, 32
      %v1534 = vpop.permute.xlu0 %1533
      %1535 = vrot.lane.b32.xlu0 %v557, 32
      %v1536 = vpop.permute.xlu0 %1535
      %1537 = vrot.lane.b32.xlu0 %v558, 32
      %v1538 = vpop.permute.xlu0 %1537
      %1539 = vrot.lane.b32.xlu0 %v559, 32
      %v1540 = vpop.permute.xlu0 %1539
      %1541 = vrot.lane.b32.xlu0 %v560, 32
      %v1542 = vpop.permute.xlu0 %1541
      %1543 = vrot.lane.b32.xlu0 %v561, 32
      %v1544 = vpop.permute.xlu0 %1543
      %1545 = vrot.lane.b32.xlu0 %v562, 32
      %v1546 = vpop.permute.xlu0 %1545
      %1547 = vrot.lane.b32.xlu0 %v563, 32
      %v1548 = vpop.permute.xlu0 %1547
      %1549 = vrot.lane.b32.xlu0 %v564, 32
      %v1550 = vpop.permute.xlu0 %1549
      %1551 = vrot.lane.b32.xlu0 %v565, 32
      %v1552 = vpop.permute.xlu0 %1551
      %1553 = vrot.lane.b32.xlu0 %v566, 32
      %v1554 = vpop.permute.xlu0 %1553
      %1555 = vrot.lane.b32.xlu0 %v567, 32
      %v1556 = vpop.permute.xlu0 %1555
      %1557 = vrot.lane.b32.xlu0 %v568, 32
      %v1558 = vpop.permute.xlu0 %1557
      %1559 = vrot.lane.b32.xlu0 %v569, 32
      %v1560 = vpop.permute.xlu0 %1559
      %1561 = vrot.lane.b32.xlu0 %v570, 32
      %v1562 = vpop.permute.xlu0 %1561
      %vm1595 = vcmask 31744
      %v1596 = vsel %vm1595, %v281, %v604
      %v1597 = vsel %vm1595, %v282, %v606
      %v1598 = vsel %vm1595, %v283, %v608
      %v1599 = vsel %vm1595, %v284, %v610
      %v1600 = vsel %vm1595, %v285, %v612
      %v1601 = vsel %vm1595, %v286, %v614
      %v1602 = vsel %vm1595, %v287, %v616
      %v1603 = vsel %vm1595, %v288, %v618
      %v1604 = vsel %vm1595, %v289, %v620
      %v1605 = vsel %vm1595, %v290, %v622
      %v1606 = vsel %vm1595, %v291, %v624
      %v1607 = vsel %vm1595, %v292, %v626
      %v1608 = vsel %vm1595, %v293, %v628
      %v1609 = vsel %vm1595, %v294, %v630
      %v1610 = vsel %vm1595, %v295, %v632
      %v1611 = vsel %vm1595, %v296, %v634
      %v1612 = vsel %vm1595, %v297, %v636
      %v1613 = vsel %vm1595, %v298, %v638
      %v1614 = vsel %vm1595, %v299, %v640
      %v1615 = vsel %vm1595, %v300, %v642
      %v1616 = vsel %vm1595, %v301, %v644
      %v1617 = vsel %vm1595, %v302, %v646
      %v1618 = vsel %vm1595, %v303, %v648
      %v1619 = vsel %vm1595, %v304, %v650
      %v1620 = vsel %vm1595, %v305, %v652
      %v1621 = vsel %vm1595, %v306, %v654
      %v1622 = vsel %vm1595, %v307, %v656
      %v1623 = vsel %vm1595, %v308, %v658
      %v1624 = vsel %vm1595, %v309, %v660
      %v1625 = vsel %vm1595, %v310, %v662
      %v1626 = vsel %vm1595, %v311, %v664
      %v1627 = vsel %vm1595, %v312, %v666
      %vm1628 = vcmask 64512
      %v1629 = vsel %vm1628, %v1596, %v732
      %v1630 = vsel %vm1628, %v1597, %v734
      %v1631 = vsel %vm1628, %v1598, %v736
      %v1632 = vsel %vm1628, %v1599, %v738
      %v1633 = vsel %vm1628, %v1600, %v740
      %v1634 = vsel %vm1628, %v1601, %v742
      %v1635 = vsel %vm1628, %v1602, %v744
      %v1636 = vsel %vm1628, %v1603, %v746
      %v1637 = vsel %vm1628, %v1604, %v748
      %v1638 = vsel %vm1628, %v1605, %v750
      %v1639 = vsel %vm1628, %v1606, %v752
      %v1640 = vsel %vm1628, %v1607, %v754
      %v1641 = vsel %vm1628, %v1608, %v756
      %v1642 = vsel %vm1628, %v1609, %v758
      %v1643 = vsel %vm1628, %v1610, %v760
      %v1644 = vsel %vm1628, %v1611, %v762
      %v1645 = vsel %vm1628, %v1612, %v764
      %v1646 = vsel %vm1628, %v1613, %v766
      %v1647 = vsel %vm1628, %v1614, %v768
      %v1648 = vsel %vm1628, %v1615, %v770
      %v1649 = vsel %vm1628, %v1616, %v772
      %v1650 = vsel %vm1628, %v1617, %v774
      %v1651 = vsel %vm1628, %v1618, %v776
      %v1652 = vsel %vm1628, %v1619, %v778
      %v1653 = vsel %vm1628, %v1620, %v780
      %v1654 = vsel %vm1628, %v1621, %v782
      %v1655 = vsel %vm1628, %v1622, %v784
      %v1656 = vsel %vm1628, %v1623, %v786
      %v1657 = vsel %vm1628, %v1624, %v788
      %v1658 = vsel %vm1628, %v1625, %v790
      %v1659 = vsel %vm1628, %v1626, %v792
      %v1660 = vsel %vm1628, %v1627, %v794
      %vm1661 = vcmask 97280
      %v1662 = vsel %vm1661, %v1629, %v860
      %v1663 = vsel %vm1661, %v1630, %v862
      %v1664 = vsel %vm1661, %v1631, %v864
      %v1665 = vsel %vm1661, %v1632, %v866
      %v1666 = vsel %vm1661, %v1633, %v868
      %v1667 = vsel %vm1661, %v1634, %v870
      %v1668 = vsel %vm1661, %v1635, %v872
      %v1669 = vsel %vm1661, %v1636, %v874
      %v1670 = vsel %vm1661, %v1637, %v876
      %v1671 = vsel %vm1661, %v1638, %v878
      %v1672 = vsel %vm1661, %v1639, %v880
      %v1673 = vsel %vm1661, %v1640, %v882
      %v1674 = vsel %vm1661, %v1641, %v884
      %v1675 = vsel %vm1661, %v1642, %v886
      %v1676 = vsel %vm1661, %v1643, %v888
      %v1677 = vsel %vm1661, %v1644, %v890
      %v1678 = vsel %vm1661, %v1645, %v892
      %v1679 = vsel %vm1661, %v1646, %v894
      %v1680 = vsel %vm1661, %v1647, %v896
      %v1681 = vsel %vm1661, %v1648, %v898
      %v1682 = vsel %vm1661, %v1649, %v900
      %v1683 = vsel %vm1661, %v1650, %v902
      %v1684 = vsel %vm1661, %v1651, %v904
      %v1685 = vsel %vm1661, %v1652, %v906
      %v1686 = vsel %vm1661, %v1653, %v908
      %v1687 = vsel %vm1661, %v1654, %v910
      %v1688 = vsel %vm1661, %v1655, %v912
      %v1689 = vsel %vm1661, %v1656, %v914
      %v1690 = vsel %vm1661, %v1657, %v916
      %v1691 = vsel %vm1661, %v1658, %v918
      %v1692 = vsel %vm1661, %v1659, %v920
      %v1693 = vsel %vm1661, %v1660, %v922
      %vm1694 = vcmask 130048
      %v1695 = vsel %vm1694, %v1662, %v988
      %v1696 = vsel %vm1694, %v1663, %v990
      %v1697 = vsel %vm1694, %v1664, %v992
      %v1698 = vsel %vm1694, %v1665, %v994
      %v1699 = vsel %vm1694, %v1666, %v996
      %v1700 = vsel %vm1694, %v1667, %v998
      %v1701 = vsel %vm1694, %v1668, %v1000
      %v1702 = vsel %vm1694, %v1669, %v1002
      %v1703 = vsel %vm1694, %v1670, %v1004
      %v1704 = vsel %vm1694, %v1671, %v1006
      %v1705 = vsel %vm1694, %v1672, %v1008
      %v1706 = vsel %vm1694, %v1673, %v1010
      %v1707 = vsel %vm1694, %v1674, %v1012
      %v1708 = vsel %vm1694, %v1675, %v1014
      %v1709 = vsel %vm1694, %v1676, %v1016
      %v1710 = vsel %vm1694, %v1677, %v1018
      %v1711 = vsel %vm1694, %v1678, %v1020
      %v1712 = vsel %vm1694, %v1679, %v1022
      %v1713 = vsel %vm1694, %v1680, %v1024
      %v1714 = vsel %vm1694, %v1681, %v1026
      %v1715 = vsel %vm1694, %v1682, %v1028
      %v1716 = vsel %vm1694, %v1683, %v1030
      %v1717 = vsel %vm1694, %v1684, %v1032
      %v1718 = vsel %vm1694, %v1685, %v1034
      %v1719 = vsel %vm1694, %v1686, %v1036
      %v1720 = vsel %vm1694, %v1687, %v1038
      %v1721 = vsel %vm1694, %v1688, %v1040
      %v1722 = vsel %vm1694, %v1689, %v1042
      %v1723 = vsel %vm1694, %v1690, %v1044
      %v1724 = vsel %vm1694, %v1691, %v1046
      %v1725 = vsel %vm1694, %v1692, %v1048
      %v1726 = vsel %vm1694, %v1693, %v1050
      %vm1727 = vcmask 162816
      %v1728 = vsel %vm1727, %v1695, %v1116
      %v1729 = vsel %vm1727, %v1696, %v1118
      %v1730 = vsel %vm1727, %v1697, %v1120
      %v1731 = vsel %vm1727, %v1698, %v1122
      %v1732 = vsel %vm1727, %v1699, %v1124
      %v1733 = vsel %vm1727, %v1700, %v1126
      %v1734 = vsel %vm1727, %v1701, %v1128
      %v1735 = vsel %vm1727, %v1702, %v1130
      %v1736 = vsel %vm1727, %v1703, %v1132
      %v1737 = vsel %vm1727, %v1704, %v1134
      %v1738 = vsel %vm1727, %v1705, %v1136
      %v1739 = vsel %vm1727, %v1706, %v1138
      %v1740 = vsel %vm1727, %v1707, %v1140
      %v1741 = vsel %vm1727, %v1708, %v1142
      %v1742 = vsel %vm1727, %v1709, %v1144
      %v1743 = vsel %vm1727, %v1710, %v1146
      %v1744 = vsel %vm1727, %v1711, %v1148
      %v1745 = vsel %vm1727, %v1712, %v1150
      %v1746 = vsel %vm1727, %v1713, %v1152
      %v1747 = vsel %vm1727, %v1714, %v1154
      %v1748 = vsel %vm1727, %v1715, %v1156
      %v1749 = vsel %vm1727, %v1716, %v1158
      %v1750 = vsel %vm1727, %v1717, %v1160
      %v1751 = vsel %vm1727, %v1718, %v1162
      %v1752 = vsel %vm1727, %v1719, %v1164
      %v1753 = vsel %vm1727, %v1720, %v1166
      %v1754 = vsel %vm1727, %v1721, %v1168
      %v1755 = vsel %vm1727, %v1722, %v1170
      %v1756 = vsel %vm1727, %v1723, %v1172
      %v1757 = vsel %vm1727, %v1724, %v1174
      %v1758 = vsel %vm1727, %v1725, %v1176
      %v1759 = vsel %vm1727, %v1726, %v1178
      %vm1760 = vcmask 195584
      %v1761 = vsel %vm1760, %v1728, %v1244
      %v1762 = vsel %vm1760, %v1729, %v1246
      %v1763 = vsel %vm1760, %v1730, %v1248
      %v1764 = vsel %vm1760, %v1731, %v1250
      %v1765 = vsel %vm1760, %v1732, %v1252
      %v1766 = vsel %vm1760, %v1733, %v1254
      %v1767 = vsel %vm1760, %v1734, %v1256
      %v1768 = vsel %vm1760, %v1735, %v1258
      %v1769 = vsel %vm1760, %v1736, %v1260
      %v1770 = vsel %vm1760, %v1737, %v1262
      %v1771 = vsel %vm1760, %v1738, %v1264
      %v1772 = vsel %vm1760, %v1739, %v1266
      %v1773 = vsel %vm1760, %v1740, %v1268
      %v1774 = vsel %vm1760, %v1741, %v1270
      %v1775 = vsel %vm1760, %v1742, %v1272
      %v1776 = vsel %vm1760, %v1743, %v1274
      %v1777 = vsel %vm1760, %v1744, %v1276
      %v1778 = vsel %vm1760, %v1745, %v1278
      %v1779 = vsel %vm1760, %v1746, %v1280
      %v1780 = vsel %vm1760, %v1747, %v1282
      %v1781 = vsel %vm1760, %v1748, %v1284
      %v1782 = vsel %vm1760, %v1749, %v1286
      %v1783 = vsel %vm1760, %v1750, %v1288
      %v1784 = vsel %vm1760, %v1751, %v1290
      %v1785 = vsel %vm1760, %v1752, %v1292
      %v1786 = vsel %vm1760, %v1753, %v1294
      %v1787 = vsel %vm1760, %v1754, %v1296
      %v1788 = vsel %vm1760, %v1755, %v1298
      %v1789 = vsel %vm1760, %v1756, %v1300
      %v1790 = vsel %vm1760, %v1757, %v1302
      %v1791 = vsel %vm1760, %v1758, %v1304
      %v1792 = vsel %vm1760, %v1759, %v1306
      %vm1793 = vcmask 228352
      %v1794 = vsel %vm1793, %v1761, %v1372
      %v1795 = vsel %vm1793, %v1762, %v1374
      %v1796 = vsel %vm1793, %v1763, %v1376
      %v1797 = vsel %vm1793, %v1764, %v1378
      %v1798 = vsel %vm1793, %v1765, %v1380
      %v1799 = vsel %vm1793, %v1766, %v1382
      %v1800 = vsel %vm1793, %v1767, %v1384
      %v1801 = vsel %vm1793, %v1768, %v1386
      %v1802 = vsel %vm1793, %v1769, %v1388
      %v1803 = vsel %vm1793, %v1770, %v1390
      %v1804 = vsel %vm1793, %v1771, %v1392
      %v1805 = vsel %vm1793, %v1772, %v1394
      %v1806 = vsel %vm1793, %v1773, %v1396
      %v1807 = vsel %vm1793, %v1774, %v1398
      %v1808 = vsel %vm1793, %v1775, %v1400
      %v1809 = vsel %vm1793, %v1776, %v1402
      %v1810 = vsel %vm1793, %v1777, %v1404
      %v1811 = vsel %vm1793, %v1778, %v1406
      %v1812 = vsel %vm1793, %v1779, %v1408
      %v1813 = vsel %vm1793, %v1780, %v1410
      %v1814 = vsel %vm1793, %v1781, %v1412
      %v1815 = vsel %vm1793, %v1782, %v1414
      %v1816 = vsel %vm1793, %v1783, %v1416
      %v1817 = vsel %vm1793, %v1784, %v1418
      %v1818 = vsel %vm1793, %v1785, %v1420
      %v1819 = vsel %vm1793, %v1786, %v1422
      %v1820 = vsel %vm1793, %v1787, %v1424
      %v1821 = vsel %vm1793, %v1788, %v1426
      %v1822 = vsel %vm1793, %v1789, %v1428
      %v1823 = vsel %vm1793, %v1790, %v1430
      %v1824 = vsel %vm1793, %v1791, %v1432
      %v1825 = vsel %vm1793, %v1792, %v1434
      %vm1826 = vcmask 261120
      %v1827 = vsel %vm1826, %v1794, %v1500
      %v1828 = vsel %vm1826, %v1795, %v1502
      %v1829 = vsel %vm1826, %v1796, %v1504
      %v1830 = vsel %vm1826, %v1797, %v1506
      %v1831 = vsel %vm1826, %v1798, %v1508
      %v1832 = vsel %vm1826, %v1799, %v1510
      %v1833 = vsel %vm1826, %v1800, %v1512
      %v1834 = vsel %vm1826, %v1801, %v1514
      %v1835 = vsel %vm1826, %v1802, %v1516
      %v1836 = vsel %vm1826, %v1803, %v1518
      %v1837 = vsel %vm1826, %v1804, %v1520
      %v1838 = vsel %vm1826, %v1805, %v1522
      %v1839 = vsel %vm1826, %v1806, %v1524
      %v1840 = vsel %vm1826, %v1807, %v1526
      %v1841 = vsel %vm1826, %v1808, %v1528
      %v1842 = vsel %vm1826, %v1809, %v1530
      %v1843 = vsel %vm1826, %v1810, %v1532
      %v1844 = vsel %vm1826, %v1811, %v1534
      %v1845 = vsel %vm1826, %v1812, %v1536
      %v1846 = vsel %vm1826, %v1813, %v1538
      %v1847 = vsel %vm1826, %v1814, %v1540
      %v1848 = vsel %vm1826, %v1815, %v1542
      %v1849 = vsel %vm1826, %v1816, %v1544
      %v1850 = vsel %vm1826, %v1817, %v1546
      %v1851 = vsel %vm1826, %v1818, %v1548
      %v1852 = vsel %vm1826, %v1819, %v1550
      %v1853 = vsel %vm1826, %v1820, %v1552
      %v1854 = vsel %vm1826, %v1821, %v1554
      %v1855 = vsel %vm1826, %v1822, %v1556
      %v1856 = vsel %vm1826, %v1823, %v1558
      %v1857 = vsel %vm1826, %v1824, %v1560
      %v1858 = vsel %vm1826, %v1825, %v1562
      %v1859 = vld [vmem:[%s1] sm:$0xff]
      %v1860 = vld [vmem:[%s1 + $0x8] sm:$0xff]
      %v1861 = vld [vmem:[%s1 + $0x10] sm:$0xff]
      %v1862 = vld [vmem:[%s1 + $0x18] sm:$0xff]
      %v1863 = vld [vmem:[%s1 + $0x20] sm:$0xf]
      %v1864 = vld [vmem:[%s2] sm:$0x1]
      %v1866 = vperm.slane %v1864, 0
      %vm1868 = vcmask 293888
      %v1870 = vsel %vm1868, %v1827, 0
      %v1873 = vsel %vm1868, %v1828, 0
      %v1876 = vsel %vm1868, %v1829, 0
      %v1879 = vsel %vm1868, %v1830, 0
      %v1882 = vsel %vm1868, %v1831, 0
      %v1885 = vsel %vm1868, %v1832, 0
      %v1888 = vsel %vm1868, %v1833, 0
      %v1891 = vsel %vm1868, %v1834, 0
      %v1894 = vsel %vm1868, %v1835, 0
      %v1897 = vsel %vm1868, %v1836, 0
      %v1900 = vsel %vm1868, %v1837, 0
      %v1903 = vsel %vm1868, %v1838, 0
      %v1906 = vsel %vm1868, %v1839, 0
      %v1909 = vsel %vm1868, %v1840, 0
      %v1912 = vsel %vm1868, %v1841, 0
      %v1915 = vsel %vm1868, %v1842, 0
      %v1918 = vsel %vm1868, %v1843, 0
      %v1921 = vsel %vm1868, %v1844, 0
      %v1924 = vsel %vm1868, %v1845, 0
      %v1927 = vsel %vm1868, %v1846, 0
      %v1930 = vsel %vm1868, %v1847, 0
      %v1933 = vsel %vm1868, %v1848, 0
      %v1936 = vsel %vm1868, %v1849, 0
      %v1939 = vsel %vm1868, %v1850, 0
      %v1942 = vsel %vm1868, %v1851, 0
      %v1945 = vsel %vm1868, %v1852, 0
      %v1948 = vsel %vm1868, %v1853, 0
      %v1951 = vsel %vm1868, %v1854, 0
      %v1954 = vsel %vm1868, %v1855, 0
      %v1957 = vsel %vm1868, %v1856, 0
      %v1960 = vsel %vm1868, %v1857, 0
      %v1963 = vsel %vm1868, %v1858, 0
      %vm1965 = vcmask 1043456
      %v1967 = vsel %vm1965, %v1863, 0
      %1969 = vmatpush.msra.mxu0 0.0
      %1970 = vmatpush.msra.mxu0 0.0
      %1971 = vmatpush.msra.mxu0 0.0
      %1972 = vmatpush.msra.mxu0 0.0
      %1973 = vmatpush.msra.mxu0 0.0
      %1974 = vmatpush.msra.mxu0 0.0
      %1975 = vmatpush.msra.mxu0 0.0
      %1976 = vmatpush.msra.mxu0 0.0
      %1977 = vmatpush.msra.mxu0 0.0
      %1978 = vmatpush.msra.mxu0 0.0
      %1979 = vmatpush.msra.mxu0 0.0
      %1980 = vmatpush.msra.mxu0 %v1967
      %1981 = vmatpush.msra.mxu0 %v1862
      %1982 = vmatpush.msra.mxu0 %v1861
      %1983 = vmatpush.msra.mxu0 %v1860
      %1984 = vmatpush.msra.mxu0 %v1859
      %1985 = vmatmul.f32.gmra.mxu0 %v1870
      %v1986 = vpop.f32.mrf.mxu0
      %v1987 = vadd.f32 %v1866, %v1986
      %1988 = vmatmul.f32.gmra.mxu0 %v1873
      %v1989 = vpop.f32.mrf.mxu0
      %v1990 = vadd.f32 %v1866, %v1989
      %1991 = vmatmul.f32.gmra.mxu0 %v1876
      %v1992 = vpop.f32.mrf.mxu0
      %v1993 = vadd.f32 %v1866, %v1992
      %1994 = vmatmul.f32.gmra.mxu0 %v1879
      %v1995 = vpop.f32.mrf.mxu0
      %v1996 = vadd.f32 %v1866, %v1995
      %1997 = vmatmul.f32.gmra.mxu0 %v1882
      %v1998 = vpop.f32.mrf.mxu0
      %v1999 = vadd.f32 %v1866, %v1998
      %2000 = vmatmul.f32.gmra.mxu0 %v1885
      %v2001 = vpop.f32.mrf.mxu0
      %v2002 = vadd.f32 %v1866, %v2001
      %2003 = vmatmul.f32.gmra.mxu0 %v1888
      %v2004 = vpop.f32.mrf.mxu0
      %v2005 = vadd.f32 %v1866, %v2004
      %2006 = vmatmul.f32.gmra.mxu0 %v1891
      %v2007 = vpop.f32.mrf.mxu0
      %v2008 = vadd.f32 %v1866, %v2007
      %2009 = vmatmul.f32.gmra.mxu0 %v1894
      %v2010 = vpop.f32.mrf.mxu0
      %v2011 = vadd.f32 %v1866, %v2010
      %2012 = vmatmul.f32.gmra.mxu0 %v1897
      %v2013 = vpop.f32.mrf.mxu0
      %v2014 = vadd.f32 %v1866, %v2013
      %2015 = vmatmul.f32.gmra.mxu0 %v1900
      %v2016 = vpop.f32.mrf.mxu0
      %v2017 = vadd.f32 %v1866, %v2016
      %2018 = vmatmul.f32.gmra.mxu0 %v1903
      %v2019 = vpop.f32.mrf.mxu0
      %v2020 = vadd.f32 %v1866, %v2019
      %2021 = vmatmul.f32.gmra.mxu0 %v1906
      %v2022 = vpop.f32.mrf.mxu0
      %v2023 = vadd.f32 %v1866, %v2022
      %2024 = vmatmul.f32.gmra.mxu0 %v1909
      %v2025 = vpop.f32.mrf.mxu0
      %v2026 = vadd.f32 %v1866, %v2025
      %2027 = vmatmul.f32.gmra.mxu0 %v1912
      %v2028 = vpop.f32.mrf.mxu0
      %v2029 = vadd.f32 %v1866, %v2028
      %2030 = vmatmul.f32.gmra.mxu0 %v1915
      %v2031 = vpop.f32.mrf.mxu0
      %v2032 = vadd.f32 %v1866, %v2031
      %2033 = vmatmul.f32.gmra.mxu0 %v1918
      %v2034 = vpop.f32.mrf.mxu0
      %v2035 = vadd.f32 %v1866, %v2034
      %2036 = vmatmul.f32.gmra.mxu0 %v1921
      %v2037 = vpop.f32.mrf.mxu0
      %v2038 = vadd.f32 %v1866, %v2037
      %2039 = vmatmul.f32.gmra.mxu0 %v1924
      %v2040 = vpop.f32.mrf.mxu0
      %v2041 = vadd.f32 %v1866, %v2040
      %2042 = vmatmul.f32.gmra.mxu0 %v1927
      %v2043 = vpop.f32.mrf.mxu0
      %v2044 = vadd.f32 %v1866, %v2043
      %2045 = vmatmul.f32.gmra.mxu0 %v1930
      %v2046 = vpop.f32.mrf.mxu0
      %v2047 = vadd.f32 %v1866, %v2046
      %2048 = vmatmul.f32.gmra.mxu0 %v1933
      %v2049 = vpop.f32.mrf.mxu0
      %v2050 = vadd.f32 %v1866, %v2049
      %2051 = vmatmul.f32.gmra.mxu0 %v1936
      %v2052 = vpop.f32.mrf.mxu0
      %v2053 = vadd.f32 %v1866, %v2052
      %2054 = vmatmul.f32.gmra.mxu0 %v1939
      %v2055 = vpop.f32.mrf.mxu0
      %v2056 = vadd.f32 %v1866, %v2055
      %2057 = vmatmul.f32.gmra.mxu0 %v1942
      %v2058 = vpop.f32.mrf.mxu0
      %v2059 = vadd.f32 %v1866, %v2058
      %2060 = vmatmul.f32.gmra.mxu0 %v1945
      %v2061 = vpop.f32.mrf.mxu0
      %v2062 = vadd.f32 %v1866, %v2061
      %2063 = vmatmul.f32.gmra.mxu0 %v1948
      %v2064 = vpop.f32.mrf.mxu0
      %v2065 = vadd.f32 %v1866, %v2064
      %2066 = vmatmul.f32.gmra.mxu0 %v1951
      %v2067 = vpop.f32.mrf.mxu0
      %v2068 = vadd.f32 %v1866, %v2067
      %2069 = vmatmul.f32.gmra.mxu0 %v1954
      %v2070 = vpop.f32.mrf.mxu0
      %v2071 = vadd.f32 %v1866, %v2070
      %2072 = vmatmul.f32.gmra.mxu0 %v1957
      %v2073 = vpop.f32.mrf.mxu0
      %v2074 = vadd.f32 %v1866, %v2073
      %2075 = vmatmul.f32.gmra.mxu0 %v1960
      %v2076 = vpop.f32.mrf.mxu0
      %v2077 = vadd.f32 %v1866, %v2076
      %2078 = vmatmul.f32.gmra.mxu0 %v1963
      %v2079 = vpop.f32.mrf.mxu0
      %v2080 = vadd.f32 %v1866, %v2079
      %2081 = vdwg.mxu0
      %s2082 = sld [smem:[#allocation2]]
      %vm2083 = vcmp.ge.f32.partialorder %v1987, 0.0
      %vm2084 = vcmp.ge.f32.partialorder %v1990, 0.0
      %vm2085 = vcmp.ge.f32.partialorder %v1993, 0.0
      %vm2086 = vcmp.ge.f32.partialorder %v1996, 0.0
      %vm2087 = vcmp.ge.f32.partialorder %v1999, 0.0
      %vm2088 = vcmp.ge.f32.partialorder %v2002, 0.0
      %vm2089 = vcmp.ge.f32.partialorder %v2005, 0.0
      %vm2090 = vcmp.ge.f32.partialorder %v2008, 0.0
      %vm2091 = vcmp.ge.f32.partialorder %v2011, 0.0
      %vm2092 = vcmp.ge.f32.partialorder %v2014, 0.0
      %vm2093 = vcmp.ge.f32.partialorder %v2017, 0.0
      %vm2094 = vcmp.ge.f32.partialorder %v2020, 0.0
      %vm2095 = vcmp.ge.f32.partialorder %v2023, 0.0
      %vm2096 = vcmp.ge.f32.partialorder %v2026, 0.0
      %vm2097 = vcmp.ge.f32.partialorder %v2029, 0.0
      %vm2098 = vcmp.ge.f32.partialorder %v2032, 0.0
      %vm2099 = vcmp.ge.f32.partialorder %v2035, 0.0
      %vm2100 = vcmp.ge.f32.partialorder %v2038, 0.0
      %vm2101 = vcmp.ge.f32.partialorder %v2041, 0.0
      %vm2102 = vcmp.ge.f32.partialorder %v2044, 0.0
      %vm2103 = vcmp.ge.f32.partialorder %v2047, 0.0
      %vm2104 = vcmp.ge.f32.partialorder %v2050, 0.0
      %vm2105 = vcmp.ge.f32.partialorder %v2053, 0.0
      %vm2106 = vcmp.ge.f32.partialorder %v2056, 0.0
      %vm2107 = vcmp.ge.f32.partialorder %v2059, 0.0
      %vm2108 = vcmp.ge.f32.partialorder %v2062, 0.0
      %vm2109 = vcmp.ge.f32.partialorder %v2065, 0.0
      %vm2110 = vcmp.ge.f32.partialorder %v2068, 0.0
      %vm2111 = vcmp.ge.f32.partialorder %v2071, 0.0
      %vm2112 = vcmp.ge.f32.partialorder %v2074, 0.0
      %vm2113 = vcmp.ge.f32.partialorder %v2077, 0.0
      %vm2114 = vcmp.ge.f32.partialorder %v2080, 0.0
      %v2115 = vstv %s2082
      %v2116 = vmul.f32 %v1987, %v2115
      %v2117 = vmul.f32 %v1990, %v2115
      %v2118 = vmul.f32 %v1993, %v2115
      %v2119 = vmul.f32 %v1996, %v2115
      %v2120 = vmul.f32 %v1999, %v2115
      %v2121 = vmul.f32 %v2002, %v2115
      %v2122 = vmul.f32 %v2005, %v2115
      %v2123 = vmul.f32 %v2008, %v2115
      %v2124 = vmul.f32 %v2011, %v2115
      %v2125 = vmul.f32 %v2014, %v2115
      %v2126 = vmul.f32 %v2017, %v2115
      %v2127 = vmul.f32 %v2020, %v2115
      %v2128 = vmul.f32 %v2023, %v2115
      %v2129 = vmul.f32 %v2026, %v2115
      %v2130 = vmul.f32 %v2029, %v2115
      %v2131 = vmul.f32 %v2032, %v2115
      %v2132 = vmul.f32 %v2035, %v2115
      %v2133 = vmul.f32 %v2038, %v2115
      %v2134 = vmul.f32 %v2041, %v2115
      %v2135 = vmul.f32 %v2044, %v2115
      %v2136 = vmul.f32 %v2047, %v2115
      %v2137 = vmul.f32 %v2050, %v2115
      %v2138 = vmul.f32 %v2053, %v2115
      %v2139 = vmul.f32 %v2056, %v2115
      %v2140 = vmul.f32 %v2059, %v2115
      %v2141 = vmul.f32 %v2062, %v2115
      %v2142 = vmul.f32 %v2065, %v2115
      %v2143 = vmul.f32 %v2068, %v2115
      %v2144 = vmul.f32 %v2071, %v2115
      %v2145 = vmul.f32 %v2074, %v2115
      %v2146 = vmul.f32 %v2077, %v2115
      %v2147 = vmul.f32 %v2080, %v2115
      %v2148 = vsel %vm2083, %v1987, %v2116
      %v2149 = vsel %vm2084, %v1990, %v2117
      %v2150 = vsel %vm2085, %v1993, %v2118
      %v2151 = vsel %vm2086, %v1996, %v2119
      %v2152 = vsel %vm2087, %v1999, %v2120
      %v2153 = vsel %vm2088, %v2002, %v2121
      %v2154 = vsel %vm2089, %v2005, %v2122
      %v2155 = vsel %vm2090, %v2008, %v2123
      %v2156 = vsel %vm2091, %v2011, %v2124
      %v2157 = vsel %vm2092, %v2014, %v2125
      %v2158 = vsel %vm2093, %v2017, %v2126
      %v2159 = vsel %vm2094, %v2020, %v2127
      %v2160 = vsel %vm2095, %v2023, %v2128
      %v2161 = vsel %vm2096, %v2026, %v2129
      %v2162 = vsel %vm2097, %v2029, %v2130
      %v2163 = vsel %vm2098, %v2032, %v2131
      %v2164 = vsel %vm2099, %v2035, %v2132
      %v2165 = vsel %vm2100, %v2038, %v2133
      %v2166 = vsel %vm2101, %v2041, %v2134
      %v2167 = vsel %vm2102, %v2044, %v2135
      %v2168 = vsel %vm2103, %v2047, %v2136
      %v2169 = vsel %vm2104, %v2050, %v2137
      %v2170 = vsel %vm2105, %v2053, %v2138
      %v2171 = vsel %vm2106, %v2056, %v2139
      %v2172 = vsel %vm2107, %v2059, %v2140
      %v2173 = vsel %vm2108, %v2062, %v2141
      %v2174 = vsel %vm2109, %v2065, %v2142
      %v2175 = vsel %vm2110, %v2068, %v2143
      %v2176 = vsel %vm2111, %v2071, %v2144
      %v2177 = vsel %vm2112, %v2074, %v2145
      %v2178 = vsel %vm2113, %v2077, %v2146
      %v2179 = vsel %vm2114, %v2080, %v2147
      %vm2208 = vcmask 1046528
      %v2209 = vrot.slane %v2148, 1
      %v2210 = vrot.slane %v2149, 1
      %v2211 = vsel %vm2208, %v2209, %v2210
      %v2212 = vrot.slane %v2150, 1
      %v2213 = vrot.slane %v2151, 1
      %v2214 = vsel %vm2208, %v2212, %v2213
      %v2215 = vrot.slane %v2152, 1
      %v2216 = vrot.slane %v2153, 1
      %v2217 = vsel %vm2208, %v2215, %v2216
      %v2218 = vrot.slane %v2154, 1
      %v2219 = vrot.slane %v2155, 1
      %v2220 = vsel %vm2208, %v2218, %v2219
      %v2221 = vrot.slane %v2156, 1
      %v2222 = vrot.slane %v2157, 1
      %v2223 = vsel %vm2208, %v2221, %v2222
      %v2224 = vrot.slane %v2158, 1
      %v2225 = vrot.slane %v2159, 1
      %v2226 = vsel %vm2208, %v2224, %v2225
      %v2227 = vrot.slane %v2160, 1
      %v2228 = vrot.slane %v2161, 1
      %v2229 = vsel %vm2208, %v2227, %v2228
      %v2230 = vrot.slane %v2162, 1
      %v2231 = vrot.slane %v2163, 1
      %v2232 = vsel %vm2208, %v2230, %v2231
      %v2233 = vrot.slane %v2164, 1
      %v2234 = vrot.slane %v2165, 1
      %v2235 = vsel %vm2208, %v2233, %v2234
      %v2236 = vrot.slane %v2166, 1
      %v2237 = vrot.slane %v2167, 1
      %v2238 = vsel %vm2208, %v2236, %v2237
      %v2239 = vrot.slane %v2168, 1
      %v2240 = vrot.slane %v2169, 1
      %v2241 = vsel %vm2208, %v2239, %v2240
      %v2242 = vrot.slane %v2170, 1
      %v2243 = vrot.slane %v2171, 1
      %v2244 = vsel %vm2208, %v2242, %v2243
      %v2245 = vrot.slane %v2172, 1
      %v2246 = vrot.slane %v2173, 1
      %v2247 = vsel %vm2208, %v2245, %v2246
      %v2248 = vrot.slane %v2174, 1
      %v2249 = vrot.slane %v2175, 1
      %v2250 = vsel %vm2208, %v2248, %v2249
      %2251 = vrot.lane.b32.xlu0 %v2211, 8
      %v2252 = vpop.permute.xlu0 %2251
      %2253 = vrot.lane.b32.xlu0 %v2210, 8
      %v2254 = vpop.permute.xlu0 %2253
      %2255 = vrot.lane.b32.xlu0 %v2214, 8
      %v2256 = vpop.permute.xlu0 %2255
      %2257 = vrot.lane.b32.xlu0 %v2213, 8
      %v2258 = vpop.permute.xlu0 %2257
      %2259 = vrot.lane.b32.xlu0 %v2217, 8
      %v2260 = vpop.permute.xlu0 %2259
      %2261 = vrot.lane.b32.xlu0 %v2216, 8
      %v2262 = vpop.permute.xlu0 %2261
      %2263 = vrot.lane.b32.xlu0 %v2220, 8
      %v2264 = vpop.permute.xlu0 %2263
      %2265 = vrot.lane.b32.xlu0 %v2219, 8
      %v2266 = vpop.permute.xlu0 %2265
      %2267 = vrot.lane.b32.xlu0 %v2223, 8
      %v2268 = vpop.permute.xlu0 %2267
      %2269 = vrot.lane.b32.xlu0 %v2222, 8
      %v2270 = vpop.permute.xlu0 %2269
      %2271 = vrot.lane.b32.xlu0 %v2226, 8
      %v2272 = vpop.permute.xlu0 %2271
      %2273 = vrot.lane.b32.xlu0 %v2225, 8
      %v2274 = vpop.permute.xlu0 %2273
      %2275 = vrot.lane.b32.xlu0 %v2229, 8
      %v2276 = vpop.permute.xlu0 %2275
      %2277 = vrot.lane.b32.xlu0 %v2228, 8
      %v2278 = vpop.permute.xlu0 %2277
      %2279 = vrot.lane.b32.xlu0 %v2232, 8
      %v2280 = vpop.permute.xlu0 %2279
      %2281 = vrot.lane.b32.xlu0 %v2231, 8
      %v2282 = vpop.permute.xlu0 %2281
      %2283 = vrot.lane.b32.xlu0 %v2235, 8
      %v2284 = vpop.permute.xlu0 %2283
      %2285 = vrot.lane.b32.xlu0 %v2234, 8
      %v2286 = vpop.permute.xlu0 %2285
      %2287 = vrot.lane.b32.xlu0 %v2238, 8
      %v2288 = vpop.permute.xlu0 %2287
      %2289 = vrot.lane.b32.xlu0 %v2237, 8
      %v2290 = vpop.permute.xlu0 %2289
      %2291 = vrot.lane.b32.xlu0 %v2241, 8
      %v2292 = vpop.permute.xlu0 %2291
      %2293 = vrot.lane.b32.xlu0 %v2240, 8
      %v2294 = vpop.permute.xlu0 %2293
      %2295 = vrot.lane.b32.xlu0 %v2244, 8
      %v2296 = vpop.permute.xlu0 %2295
      %2297 = vrot.lane.b32.xlu0 %v2243, 8
      %v2298 = vpop.permute.xlu0 %2297
      %2299 = vrot.lane.b32.xlu0 %v2247, 8
      %v2300 = vpop.permute.xlu0 %2299
      %2301 = vrot.lane.b32.xlu0 %v2246, 8
      %v2302 = vpop.permute.xlu0 %2301
      %2303 = vrot.lane.b32.xlu0 %v2250, 8
      %v2304 = vpop.permute.xlu0 %2303
      %2305 = vrot.lane.b32.xlu0 %v2249, 8
      %v2306 = vpop.permute.xlu0 %2305
      %vm2335 = vcmask 1045504
      %v2336 = vrot.slane %v2148, 2
      %v2337 = vrot.slane %v2149, 2
      %v2338 = vsel %vm2335, %v2336, %v2337
      %v2339 = vrot.slane %v2150, 2
      %v2340 = vrot.slane %v2151, 2
      %v2341 = vsel %vm2335, %v2339, %v2340
      %v2342 = vrot.slane %v2152, 2
      %v2343 = vrot.slane %v2153, 2
      %v2344 = vsel %vm2335, %v2342, %v2343
      %v2345 = vrot.slane %v2154, 2
      %v2346 = vrot.slane %v2155, 2
      %v2347 = vsel %vm2335, %v2345, %v2346
      %v2348 = vrot.slane %v2156, 2
      %v2349 = vrot.slane %v2157, 2
      %v2350 = vsel %vm2335, %v2348, %v2349
      %v2351 = vrot.slane %v2158, 2
      %v2352 = vrot.slane %v2159, 2
      %v2353 = vsel %vm2335, %v2351, %v2352
      %v2354 = vrot.slane %v2160, 2
      %v2355 = vrot.slane %v2161, 2
      %v2356 = vsel %vm2335, %v2354, %v2355
      %v2357 = vrot.slane %v2162, 2
      %v2358 = vrot.slane %v2163, 2
      %v2359 = vsel %vm2335, %v2357, %v2358
      %v2360 = vrot.slane %v2164, 2
      %v2361 = vrot.slane %v2165, 2
      %v2362 = vsel %vm2335, %v2360, %v2361
      %v2363 = vrot.slane %v2166, 2
      %v2364 = vrot.slane %v2167, 2
      %v2365 = vsel %vm2335, %v2363, %v2364
      %v2366 = vrot.slane %v2168, 2
      %v2367 = vrot.slane %v2169, 2
      %v2368 = vsel %vm2335, %v2366, %v2367
      %v2369 = vrot.slane %v2170, 2
      %v2370 = vrot.slane %v2171, 2
      %v2371 = vsel %vm2335, %v2369, %v2370
      %v2372 = vrot.slane %v2172, 2
      %v2373 = vrot.slane %v2173, 2
      %v2374 = vsel %vm2335, %v2372, %v2373
      %v2375 = vrot.slane %v2174, 2
      %v2376 = vrot.slane %v2175, 2
      %v2377 = vsel %vm2335, %v2375, %v2376
      %2378 = vrot.lane.b32.xlu0 %v2338, 16
      %v2379 = vpop.permute.xlu0 %2378
      %2380 = vrot.lane.b32.xlu0 %v2337, 16
      %v2381 = vpop.permute.xlu0 %2380
      %2382 = vrot.lane.b32.xlu0 %v2341, 16
      %v2383 = vpop.permute.xlu0 %2382
      %2384 = vrot.lane.b32.xlu0 %v2340, 16
      %v2385 = vpop.permute.xlu0 %2384
      %2386 = vrot.lane.b32.xlu0 %v2344, 16
      %v2387 = vpop.permute.xlu0 %2386
      %2388 = vrot.lane.b32.xlu0 %v2343, 16
      %v2389 = vpop.permute.xlu0 %2388
      %2390 = vrot.lane.b32.xlu0 %v2347, 16
      %v2391 = vpop.permute.xlu0 %2390
      %2392 = vrot.lane.b32.xlu0 %v2346, 16
      %v2393 = vpop.permute.xlu0 %2392
      %2394 = vrot.lane.b32.xlu0 %v2350, 16
      %v2395 = vpop.permute.xlu0 %2394
      %2396 = vrot.lane.b32.xlu0 %v2349, 16
      %v2397 = vpop.permute.xlu0 %2396
      %2398 = vrot.lane.b32.xlu0 %v2353, 16
      %v2399 = vpop.permute.xlu0 %2398
      %2400 = vrot.lane.b32.xlu0 %v2352, 16
      %v2401 = vpop.permute.xlu0 %2400
      %2402 = vrot.lane.b32.xlu0 %v2356, 16
      %v2403 = vpop.permute.xlu0 %2402
      %2404 = vrot.lane.b32.xlu0 %v2355, 16
      %v2405 = vpop.permute.xlu0 %2404
      %2406 = vrot.lane.b32.xlu0 %v2359, 16
      %v2407 = vpop.permute.xlu0 %2406
      %2408 = vrot.lane.b32.xlu0 %v2358, 16
      %v2409 = vpop.permute.xlu0 %2408
      %2410 = vrot.lane.b32.xlu0 %v2362, 16
      %v2411 = vpop.permute.xlu0 %2410
      %2412 = vrot.lane.b32.xlu0 %v2361, 16
      %v2413 = vpop.permute.xlu0 %2412
      %2414 = vrot.lane.b32.xlu0 %v2365, 16
      %v2415 = vpop.permute.xlu0 %2414
      %2416 = vrot.lane.b32.xlu0 %v2364, 16
      %v2417 = vpop.permute.xlu0 %2416
      %2418 = vrot.lane.b32.xlu0 %v2368, 16
      %v2419 = vpop.permute.xlu0 %2418
      %2420 = vrot.lane.b32.xlu0 %v2367, 16
      %v2421 = vpop.permute.xlu0 %2420
      %2422 = vrot.lane.b32.xlu0 %v2371, 16
      %v2423 = vpop.permute.xlu0 %2422
      %2424 = vrot.lane.b32.xlu0 %v2370, 16
      %v2425 = vpop.permute.xlu0 %2424
      %2426 = vrot.lane.b32.xlu0 %v2374, 16
      %v2427 = vpop.permute.xlu0 %2426
      %2428 = vrot.lane.b32.xlu0 %v2373, 16
      %v2429 = vpop.permute.xlu0 %2428
      %2430 = vrot.lane.b32.xlu0 %v2377, 16
      %v2431 = vpop.permute.xlu0 %2430
      %2432 = vrot.lane.b32.xlu0 %v2376, 16
      %v2433 = vpop.permute.xlu0 %2432
      %2464 = vrot.lane.b32.xlu0 %v2150, 24
      %v2465 = vpop.permute.xlu0 %2464
      %2466 = vrot.lane.b32.xlu0 %v2151, 24
      %v2467 = vpop.permute.xlu0 %2466
      %2468 = vrot.lane.b32.xlu0 %v2152, 24
      %v2469 = vpop.permute.xlu0 %2468
      %2470 = vrot.lane.b32.xlu0 %v2153, 24
      %v2471 = vpop.permute.xlu0 %2470
      %2472 = vrot.lane.b32.xlu0 %v2154, 24
      %v2473 = vpop.permute.xlu0 %2472
      %2474 = vrot.lane.b32.xlu0 %v2155, 24
      %v2475 = vpop.permute.xlu0 %2474
      %2476 = vrot.lane.b32.xlu0 %v2156, 24
      %v2477 = vpop.permute.xlu0 %2476
      %2478 = vrot.lane.b32.xlu0 %v2157, 24
      %v2479 = vpop.permute.xlu0 %2478
      %2480 = vrot.lane.b32.xlu0 %v2158, 24
      %v2481 = vpop.permute.xlu0 %2480
      %2482 = vrot.lane.b32.xlu0 %v2159, 24
      %v2483 = vpop.permute.xlu0 %2482
      %2484 = vrot.lane.b32.xlu0 %v2160, 24
      %v2485 = vpop.permute.xlu0 %2484
      %2486 = vrot.lane.b32.xlu0 %v2161, 24
      %v2487 = vpop.permute.xlu0 %2486
      %2488 = vrot.lane.b32.xlu0 %v2162, 24
      %v2489 = vpop.permute.xlu0 %2488
      %2490 = vrot.lane.b32.xlu0 %v2163, 24
      %v2491 = vpop.permute.xlu0 %2490
      %2492 = vrot.lane.b32.xlu0 %v2164, 24
      %v2493 = vpop.permute.xlu0 %2492
      %2494 = vrot.lane.b32.xlu0 %v2165, 24
      %v2495 = vpop.permute.xlu0 %2494
      %2496 = vrot.lane.b32.xlu0 %v2166, 24
      %v2497 = vpop.permute.xlu0 %2496
      %2498 = vrot.lane.b32.xlu0 %v2167, 24
      %v2499 = vpop.permute.xlu0 %2498
      %2500 = vrot.lane.b32.xlu0 %v2168, 24
      %v2501 = vpop.permute.xlu0 %2500
      %2502 = vrot.lane.b32.xlu0 %v2169, 24
      %v2503 = vpop.permute.xlu0 %2502
      %2504 = vrot.lane.b32.xlu0 %v2170, 24
      %v2505 = vpop.permute.xlu0 %2504
      %2506 = vrot.lane.b32.xlu0 %v2171, 24
      %v2507 = vpop.permute.xlu0 %2506
      %2508 = vrot.lane.b32.xlu0 %v2172, 24
      %v2509 = vpop.permute.xlu0 %2508
      %2510 = vrot.lane.b32.xlu0 %v2173, 24
      %v2511 = vpop.permute.xlu0 %2510
      %2512 = vrot.lane.b32.xlu0 %v2174, 24
      %v2513 = vpop.permute.xlu0 %2512
      %2514 = vrot.lane.b32.xlu0 %v2175, 24
      %v2515 = vpop.permute.xlu0 %2514
      %2516 = vrot.lane.b32.xlu0 %v2176, 24
      %v2517 = vpop.permute.xlu0 %2516
      %2518 = vrot.lane.b32.xlu0 %v2177, 24
      %v2519 = vpop.permute.xlu0 %2518
      %v2548 = vrot.slane %v2176, 1
      %v2549 = vrot.slane %v2177, 1
      %v2550 = vsel %vm2208, %v2548, %v2549
      %2551 = vrot.lane.b32.xlu0 %v2214, 32
      %v2552 = vpop.permute.xlu0 %2551
      %2553 = vrot.lane.b32.xlu0 %v2213, 32
      %v2554 = vpop.permute.xlu0 %2553
      %2555 = vrot.lane.b32.xlu0 %v2217, 32
      %v2556 = vpop.permute.xlu0 %2555
      %2557 = vrot.lane.b32.xlu0 %v2216, 32
      %v2558 = vpop.permute.xlu0 %2557
      %2559 = vrot.lane.b32.xlu0 %v2220, 32
      %v2560 = vpop.permute.xlu0 %2559
      %2561 = vrot.lane.b32.xlu0 %v2219, 32
      %v2562 = vpop.permute.xlu0 %2561
      %2563 = vrot.lane.b32.xlu0 %v2223, 32
      %v2564 = vpop.permute.xlu0 %2563
      %2565 = vrot.lane.b32.xlu0 %v2222, 32
      %v2566 = vpop.permute.xlu0 %2565
      %2567 = vrot.lane.b32.xlu0 %v2226, 32
      %v2568 = vpop.permute.xlu0 %2567
      %2569 = vrot.lane.b32.xlu0 %v2225, 32
      %v2570 = vpop.permute.xlu0 %2569
      %2571 = vrot.lane.b32.xlu0 %v2229, 32
      %v2572 = vpop.permute.xlu0 %2571
      %2573 = vrot.lane.b32.xlu0 %v2228, 32
      %v2574 = vpop.permute.xlu0 %2573
      %2575 = vrot.lane.b32.xlu0 %v2232, 32
      %v2576 = vpop.permute.xlu0 %2575
      %2577 = vrot.lane.b32.xlu0 %v2231, 32
      %v2578 = vpop.permute.xlu0 %2577
      %2579 = vrot.lane.b32.xlu0 %v2235, 32
      %v2580 = vpop.permute.xlu0 %2579
      %2581 = vrot.lane.b32.xlu0 %v2234, 32
      %v2582 = vpop.permute.xlu0 %2581
      %2583 = vrot.lane.b32.xlu0 %v2238, 32
      %v2584 = vpop.permute.xlu0 %2583
      %2585 = vrot.lane.b32.xlu0 %v2237, 32
      %v2586 = vpop.permute.xlu0 %2585
      %2587 = vrot.lane.b32.xlu0 %v2241, 32
      %v2588 = vpop.permute.xlu0 %2587
      %2589 = vrot.lane.b32.xlu0 %v2240, 32
      %v2590 = vpop.permute.xlu0 %2589
      %2591 = vrot.lane.b32.xlu0 %v2244, 32
      %v2592 = vpop.permute.xlu0 %2591
      %2593 = vrot.lane.b32.xlu0 %v2243, 32
      %v2594 = vpop.permute.xlu0 %2593
      %2595 = vrot.lane.b32.xlu0 %v2247, 32
      %v2596 = vpop.permute.xlu0 %2595
      %2597 = vrot.lane.b32.xlu0 %v2246, 32
      %v2598 = vpop.permute.xlu0 %2597
      %2599 = vrot.lane.b32.xlu0 %v2250, 32
      %v2600 = vpop.permute.xlu0 %2599
      %2601 = vrot.lane.b32.xlu0 %v2249, 32
      %v2602 = vpop.permute.xlu0 %2601
      %2603 = vrot.lane.b32.xlu0 %v2550, 32
      %v2604 = vpop.permute.xlu0 %2603
      %2605 = vrot.lane.b32.xlu0 %v2549, 32
      %v2606 = vpop.permute.xlu0 %2605
      %v2635 = vrot.slane %v2176, 2
      %v2636 = vrot.slane %v2177, 2
      %v2637 = vsel %vm2335, %v2635, %v2636
      %2638 = vrot.lane.b32.xlu0 %v2341, 40
      %v2639 = vpop.permute.xlu0 %2638
      %2640 = vrot.lane.b32.xlu0 %v2340, 40
      %v2641 = vpop.permute.xlu0 %2640
      %2642 = vrot.lane.b32.xlu0 %v2344, 40
      %v2643 = vpop.permute.xlu0 %2642
      %2644 = vrot.lane.b32.xlu0 %v2343, 40
      %v2645 = vpop.permute.xlu0 %2644
      %2646 = vrot.lane.b32.xlu0 %v2347, 40
      %v2647 = vpop.permute.xlu0 %2646
      %2648 = vrot.lane.b32.xlu0 %v2346, 40
      %v2649 = vpop.permute.xlu0 %2648
      %2650 = vrot.lane.b32.xlu0 %v2350, 40
      %v2651 = vpop.permute.xlu0 %2650
      %2652 = vrot.lane.b32.xlu0 %v2349, 40
      %v2653 = vpop.permute.xlu0 %2652
      %2654 = vrot.lane.b32.xlu0 %v2353, 40
      %v2655 = vpop.permute.xlu0 %2654
      %2656 = vrot.lane.b32.xlu0 %v2352, 40
      %v2657 = vpop.permute.xlu0 %2656
      %2658 = vrot.lane.b32.xlu0 %v2356, 40
      %v2659 = vpop.permute.xlu0 %2658
      %2660 = vrot.lane.b32.xlu0 %v2355, 40
      %v2661 = vpop.permute.xlu0 %2660
      %2662 = vrot.lane.b32.xlu0 %v2359, 40
      %v2663 = vpop.permute.xlu0 %2662
      %2664 = vrot.lane.b32.xlu0 %v2358, 40
      %v2665 = vpop.permute.xlu0 %2664
      %2666 = vrot.lane.b32.xlu0 %v2362, 40
      %v2667 = vpop.permute.xlu0 %2666
      %2668 = vrot.lane.b32.xlu0 %v2361, 40
      %v2669 = vpop.permute.xlu0 %2668
      %2670 = vrot.lane.b32.xlu0 %v2365, 40
      %v2671 = vpop.permute.xlu0 %2670
      %2672 = vrot.lane.b32.xlu0 %v2364, 40
      %v2673 = vpop.permute.xlu0 %2672
      %2674 = vrot.lane.b32.xlu0 %v2368, 40
      %v2675 = vpop.permute.xlu0 %2674
      %2676 = vrot.lane.b32.xlu0 %v2367, 40
      %v2677 = vpop.permute.xlu0 %2676
      %2678 = vrot.lane.b32.xlu0 %v2371, 40
      %v2679 = vpop.permute.xlu0 %2678
      %2680 = vrot.lane.b32.xlu0 %v2370, 40
      %v2681 = vpop.permute.xlu0 %2680
      %2682 = vrot.lane.b32.xlu0 %v2374, 40
      %v2683 = vpop.permute.xlu0 %2682
      %2684 = vrot.lane.b32.xlu0 %v2373, 40
      %v2685 = vpop.permute.xlu0 %2684
      %2686 = vrot.lane.b32.xlu0 %v2377, 40
      %v2687 = vpop.permute.xlu0 %2686
      %2688 = vrot.lane.b32.xlu0 %v2376, 40
      %v2689 = vpop.permute.xlu0 %2688
      %2690 = vrot.lane.b32.xlu0 %v2637, 40
      %v2691 = vpop.permute.xlu0 %2690
      %2692 = vrot.lane.b32.xlu0 %v2636, 40
      %v2693 = vpop.permute.xlu0 %2692
      %2724 = vrot.lane.b32.xlu0 %v2152, 48
      %v2725 = vpop.permute.xlu0 %2724
      %2726 = vrot.lane.b32.xlu0 %v2153, 48
      %v2727 = vpop.permute.xlu0 %2726
      %2728 = vrot.lane.b32.xlu0 %v2154, 48
      %v2729 = vpop.permute.xlu0 %2728
      %2730 = vrot.lane.b32.xlu0 %v2155, 48
      %v2731 = vpop.permute.xlu0 %2730
      %2732 = vrot.lane.b32.xlu0 %v2156, 48
      %v2733 = vpop.permute.xlu0 %2732
      %2734 = vrot.lane.b32.xlu0 %v2157, 48
      %v2735 = vpop.permute.xlu0 %2734
      %2736 = vrot.lane.b32.xlu0 %v2158, 48
      %v2737 = vpop.permute.xlu0 %2736
      %2738 = vrot.lane.b32.xlu0 %v2159, 48
      %v2739 = vpop.permute.xlu0 %2738
      %2740 = vrot.lane.b32.xlu0 %v2160, 48
      %v2741 = vpop.permute.xlu0 %2740
      %2742 = vrot.lane.b32.xlu0 %v2161, 48
      %v2743 = vpop.permute.xlu0 %2742
      %2744 = vrot.lane.b32.xlu0 %v2162, 48
      %v2745 = vpop.permute.xlu0 %2744
      %2746 = vrot.lane.b32.xlu0 %v2163, 48
      %v2747 = vpop.permute.xlu0 %2746
      %2748 = vrot.lane.b32.xlu0 %v2164, 48
      %v2749 = vpop.permute.xlu0 %2748
      %2750 = vrot.lane.b32.xlu0 %v2165, 48
      %v2751 = vpop.permute.xlu0 %2750
      %2752 = vrot.lane.b32.xlu0 %v2166, 48
      %v2753 = vpop.permute.xlu0 %2752
      %2754 = vrot.lane.b32.xlu0 %v2167, 48
      %v2755 = vpop.permute.xlu0 %2754
      %2756 = vrot.lane.b32.xlu0 %v2168, 48
      %v2757 = vpop.permute.xlu0 %2756
      %2758 = vrot.lane.b32.xlu0 %v2169, 48
      %v2759 = vpop.permute.xlu0 %2758
      %2760 = vrot.lane.b32.xlu0 %v2170, 48
      %v2761 = vpop.permute.xlu0 %2760
      %2762 = vrot.lane.b32.xlu0 %v2171, 48
      %v2763 = vpop.permute.xlu0 %2762
      %2764 = vrot.lane.b32.xlu0 %v2172, 48
      %v2765 = vpop.permute.xlu0 %2764
      %2766 = vrot.lane.b32.xlu0 %v2173, 48
      %v2767 = vpop.permute.xlu0 %2766
      %2768 = vrot.lane.b32.xlu0 %v2174, 48
      %v2769 = vpop.permute.xlu0 %2768
      %2770 = vrot.lane.b32.xlu0 %v2175, 48
      %v2771 = vpop.permute.xlu0 %2770
      %2772 = vrot.lane.b32.xlu0 %v2176, 48
      %v2773 = vpop.permute.xlu0 %2772
      %2774 = vrot.lane.b32.xlu0 %v2177, 48
      %v2775 = vpop.permute.xlu0 %2774
      %2776 = vrot.lane.b32.xlu0 %v2178, 48
      %v2777 = vpop.permute.xlu0 %2776
      %2778 = vrot.lane.b32.xlu0 %v2179, 48
      %v2779 = vpop.permute.xlu0 %2778
      %v2808 = vrot.slane %v2178, 1
      %v2809 = vrot.slane %v2179, 1
      %v2810 = vsel %vm2208, %v2808, %v2809
      %2811 = vrot.lane.b32.xlu0 %v2217, 56
      %v2812 = vpop.permute.xlu0 %2811
      %2813 = vrot.lane.b32.xlu0 %v2216, 56
      %v2814 = vpop.permute.xlu0 %2813
      %2815 = vrot.lane.b32.xlu0 %v2220, 56
      %v2816 = vpop.permute.xlu0 %2815
      %2817 = vrot.lane.b32.xlu0 %v2219, 56
      %v2818 = vpop.permute.xlu0 %2817
      %2819 = vrot.lane.b32.xlu0 %v2223, 56
      %v2820 = vpop.permute.xlu0 %2819
      %2821 = vrot.lane.b32.xlu0 %v2222, 56
      %v2822 = vpop.permute.xlu0 %2821
      %2823 = vrot.lane.b32.xlu0 %v2226, 56
      %v2824 = vpop.permute.xlu0 %2823
      %2825 = vrot.lane.b32.xlu0 %v2225, 56
      %v2826 = vpop.permute.xlu0 %2825
      %2827 = vrot.lane.b32.xlu0 %v2229, 56
      %v2828 = vpop.permute.xlu0 %2827
      %2829 = vrot.lane.b32.xlu0 %v2228, 56
      %v2830 = vpop.permute.xlu0 %2829
      %2831 = vrot.lane.b32.xlu0 %v2232, 56
      %v2832 = vpop.permute.xlu0 %2831
      %2833 = vrot.lane.b32.xlu0 %v2231, 56
      %v2834 = vpop.permute.xlu0 %2833
      %2835 = vrot.lane.b32.xlu0 %v2235, 56
      %v2836 = vpop.permute.xlu0 %2835
      %2837 = vrot.lane.b32.xlu0 %v2234, 56
      %v2838 = vpop.permute.xlu0 %2837
      %2839 = vrot.lane.b32.xlu0 %v2238, 56
      %v2840 = vpop.permute.xlu0 %2839
      %2841 = vrot.lane.b32.xlu0 %v2237, 56
      %v2842 = vpop.permute.xlu0 %2841
      %2843 = vrot.lane.b32.xlu0 %v2241, 56
      %v2844 = vpop.permute.xlu0 %2843
      %2845 = vrot.lane.b32.xlu0 %v2240, 56
      %v2846 = vpop.permute.xlu0 %2845
      %2847 = vrot.lane.b32.xlu0 %v2244, 56
      %v2848 = vpop.permute.xlu0 %2847
      %2849 = vrot.lane.b32.xlu0 %v2243, 56
      %v2850 = vpop.permute.xlu0 %2849
      %2851 = vrot.lane.b32.xlu0 %v2247, 56
      %v2852 = vpop.permute.xlu0 %2851
      %2853 = vrot.lane.b32.xlu0 %v2246, 56
      %v2854 = vpop.permute.xlu0 %2853
      %2855 = vrot.lane.b32.xlu0 %v2250, 56
      %v2856 = vpop.permute.xlu0 %2855
      %2857 = vrot.lane.b32.xlu0 %v2249, 56
      %v2858 = vpop.permute.xlu0 %2857
      %2859 = vrot.lane.b32.xlu0 %v2550, 56
      %v2860 = vpop.permute.xlu0 %2859
      %2861 = vrot.lane.b32.xlu0 %v2549, 56
      %v2862 = vpop.permute.xlu0 %2861
      %2863 = vrot.lane.b32.xlu0 %v2810, 56
      %v2864 = vpop.permute.xlu0 %2863
      %2865 = vrot.lane.b32.xlu0 %v2809, 56
      %v2866 = vpop.permute.xlu0 %2865
      %v2895 = vrot.slane %v2178, 2
      %v2896 = vrot.slane %v2179, 2
      %v2897 = vsel %vm2335, %v2895, %v2896
      %2898 = vrot.lane.b32.xlu0 %v2344, 64
      %v2899 = vpop.permute.xlu0 %2898
      %2900 = vrot.lane.b32.xlu0 %v2343, 64
      %v2901 = vpop.permute.xlu0 %2900
      %2902 = vrot.lane.b32.xlu0 %v2347, 64
      %v2903 = vpop.permute.xlu0 %2902
      %2904 = vrot.lane.b32.xlu0 %v2346, 64
      %v2905 = vpop.permute.xlu0 %2904
      %2906 = vrot.lane.b32.xlu0 %v2350, 64
      %v2907 = vpop.permute.xlu0 %2906
      %2908 = vrot.lane.b32.xlu0 %v2349, 64
      %v2909 = vpop.permute.xlu0 %2908
      %2910 = vrot.lane.b32.xlu0 %v2353, 64
      %v2911 = vpop.permute.xlu0 %2910
      %2912 = vrot.lane.b32.xlu0 %v2352, 64
      %v2913 = vpop.permute.xlu0 %2912
      %2914 = vrot.lane.b32.xlu0 %v2356, 64
      %v2915 = vpop.permute.xlu0 %2914
      %2916 = vrot.lane.b32.xlu0 %v2355, 64
      %v2917 = vpop.permute.xlu0 %2916
      %2918 = vrot.lane.b32.xlu0 %v2359, 64
      %v2919 = vpop.permute.xlu0 %2918
      %2920 = vrot.lane.b32.xlu0 %v2358, 64
      %v2921 = vpop.permute.xlu0 %2920
      %2922 = vrot.lane.b32.xlu0 %v2362, 64
      %v2923 = vpop.permute.xlu0 %2922
      %2924 = vrot.lane.b32.xlu0 %v2361, 64
      %v2925 = vpop.permute.xlu0 %2924
      %2926 = vrot.lane.b32.xlu0 %v2365, 64
      %v2927 = vpop.permute.xlu0 %2926
      %2928 = vrot.lane.b32.xlu0 %v2364, 64
      %v2929 = vpop.permute.xlu0 %2928
      %2930 = vrot.lane.b32.xlu0 %v2368, 64
      %v2931 = vpop.permute.xlu0 %2930
      %2932 = vrot.lane.b32.xlu0 %v2367, 64
      %v2933 = vpop.permute.xlu0 %2932
      %2934 = vrot.lane.b32.xlu0 %v2371, 64
      %v2935 = vpop.permute.xlu0 %2934
      %2936 = vrot.lane.b32.xlu0 %v2370, 64
      %v2937 = vpop.permute.xlu0 %2936
      %2938 = vrot.lane.b32.xlu0 %v2374, 64
      %v2939 = vpop.permute.xlu0 %2938
      %2940 = vrot.lane.b32.xlu0 %v2373, 64
      %v2941 = vpop.permute.xlu0 %2940
      %2942 = vrot.lane.b32.xlu0 %v2377, 64
      %v2943 = vpop.permute.xlu0 %2942
      %2944 = vrot.lane.b32.xlu0 %v2376, 64
      %v2945 = vpop.permute.xlu0 %2944
      %2946 = vrot.lane.b32.xlu0 %v2637, 64
      %v2947 = vpop.permute.xlu0 %2946
      %2948 = vrot.lane.b32.xlu0 %v2636, 64
      %v2949 = vpop.permute.xlu0 %2948
      %2950 = vrot.lane.b32.xlu0 %v2897, 64
      %v2951 = vpop.permute.xlu0 %2950
      %2952 = vrot.lane.b32.xlu0 %v2896, 64
      %v2953 = vpop.permute.xlu0 %2952
      %v2982 = vsel %vm1628, %v2148, %v2252
      %v2983 = vsel %vm1628, %v2149, %v2254
      %v2984 = vsel %vm1628, %v2150, %v2256
      %v2985 = vsel %vm1628, %v2151, %v2258
      %v2986 = vsel %vm1628, %v2152, %v2260
      %v2987 = vsel %vm1628, %v2153, %v2262
      %v2988 = vsel %vm1628, %v2154, %v2264
      %v2989 = vsel %vm1628, %v2155, %v2266
      %v2990 = vsel %vm1628, %v2156, %v2268
      %v2991 = vsel %vm1628, %v2157, %v2270
      %v2992 = vsel %vm1628, %v2158, %v2272
      %v2993 = vsel %vm1628, %v2159, %v2274
      %v2994 = vsel %vm1628, %v2160, %v2276
      %v2995 = vsel %vm1628, %v2161, %v2278
      %v2996 = vsel %vm1628, %v2162, %v2280
      %v2997 = vsel %vm1628, %v2163, %v2282
      %v2998 = vsel %vm1628, %v2164, %v2284
      %v2999 = vsel %vm1628, %v2165, %v2286
      %v3000 = vsel %vm1628, %v2166, %v2288
      %v3001 = vsel %vm1628, %v2167, %v2290
      %v3002 = vsel %vm1628, %v2168, %v2292
      %v3003 = vsel %vm1628, %v2169, %v2294
      %v3004 = vsel %vm1628, %v2170, %v2296
      %v3005 = vsel %vm1628, %v2171, %v2298
      %v3006 = vsel %vm1628, %v2172, %v2300
      %v3007 = vsel %vm1628, %v2173, %v2302
      %v3008 = vsel %vm1628, %v2174, %v2304
      %v3009 = vsel %vm1628, %v2175, %v2306
      %v3010 = vsel %vm1694, %v2982, %v2379
      %v3011 = vsel %vm1694, %v2983, %v2381
      %v3012 = vsel %vm1694, %v2984, %v2383
      %v3013 = vsel %vm1694, %v2985, %v2385
      %v3014 = vsel %vm1694, %v2986, %v2387
      %v3015 = vsel %vm1694, %v2987, %v2389
      %v3016 = vsel %vm1694, %v2988, %v2391
      %v3017 = vsel %vm1694, %v2989, %v2393
      %v3018 = vsel %vm1694, %v2990, %v2395
      %v3019 = vsel %vm1694, %v2991, %v2397
      %v3020 = vsel %vm1694, %v2992, %v2399
      %v3021 = vsel %vm1694, %v2993, %v2401
      %v3022 = vsel %vm1694, %v2994, %v2403
      %v3023 = vsel %vm1694, %v2995, %v2405
      %v3024 = vsel %vm1694, %v2996, %v2407
      %v3025 = vsel %vm1694, %v2997, %v2409
      %v3026 = vsel %vm1694, %v2998, %v2411
      %v3027 = vsel %vm1694, %v2999, %v2413
      %v3028 = vsel %vm1694, %v3000, %v2415
      %v3029 = vsel %vm1694, %v3001, %v2417
      %v3030 = vsel %vm1694, %v3002, %v2419
      %v3031 = vsel %vm1694, %v3003, %v2421
      %v3032 = vsel %vm1694, %v3004, %v2423
      %v3033 = vsel %vm1694, %v3005, %v2425
      %v3034 = vsel %vm1694, %v3006, %v2427
      %v3035 = vsel %vm1694, %v3007, %v2429
      %v3036 = vsel %vm1694, %v3008, %v2431
      %v3037 = vsel %vm1694, %v3009, %v2433
      %v3038 = vsel %vm1760, %v3010, %v2465
      %v3039 = vsel %vm1760, %v3011, %v2467
      %v3040 = vsel %vm1760, %v3012, %v2469
      %v3041 = vsel %vm1760, %v3013, %v2471
      %v3042 = vsel %vm1760, %v3014, %v2473
      %v3043 = vsel %vm1760, %v3015, %v2475
      %v3044 = vsel %vm1760, %v3016, %v2477
      %v3045 = vsel %vm1760, %v3017, %v2479
      %v3046 = vsel %vm1760, %v3018, %v2481
      %v3047 = vsel %vm1760, %v3019, %v2483
      %v3048 = vsel %vm1760, %v3020, %v2485
      %v3049 = vsel %vm1760, %v3021, %v2487
      %v3050 = vsel %vm1760, %v3022, %v2489
      %v3051 = vsel %vm1760, %v3023, %v2491
      %v3052 = vsel %vm1760, %v3024, %v2493
      %v3053 = vsel %vm1760, %v3025, %v2495
      %v3054 = vsel %vm1760, %v3026, %v2497
      %v3055 = vsel %vm1760, %v3027, %v2499
      %v3056 = vsel %vm1760, %v3028, %v2501
      %v3057 = vsel %vm1760, %v3029, %v2503
      %v3058 = vsel %vm1760, %v3030, %v2505
      %v3059 = vsel %vm1760, %v3031, %v2507
      %v3060 = vsel %vm1760, %v3032, %v2509
      %v3061 = vsel %vm1760, %v3033, %v2511
      %v3062 = vsel %vm1760, %v3034, %v2513
      %v3063 = vsel %vm1760, %v3035, %v2515
      %v3064 = vsel %vm1760, %v3036, %v2517
      %v3065 = vsel %vm1760, %v3037, %v2519
      %v3066 = vsel %vm1826, %v3038, %v2552
      %v3067 = vsel %vm1826, %v3039, %v2554
      %v3068 = vsel %vm1826, %v3040, %v2556
      %v3069 = vsel %vm1826, %v3041, %v2558
      %v3070 = vsel %vm1826, %v3042, %v2560
      %v3071 = vsel %vm1826, %v3043, %v2562
      %v3072 = vsel %vm1826, %v3044, %v2564
      %v3073 = vsel %vm1826, %v3045, %v2566
      %v3074 = vsel %vm1826, %v3046, %v2568
      %v3075 = vsel %vm1826, %v3047, %v2570
      %v3076 = vsel %vm1826, %v3048, %v2572
      %v3077 = vsel %vm1826, %v3049, %v2574
      %v3078 = vsel %vm1826, %v3050, %v2576
      %v3079 = vsel %vm1826, %v3051, %v2578
      %v3080 = vsel %vm1826, %v3052, %v2580
      %v3081 = vsel %vm1826, %v3053, %v2582
      %v3082 = vsel %vm1826, %v3054, %v2584
      %v3083 = vsel %vm1826, %v3055, %v2586
      %v3084 = vsel %vm1826, %v3056, %v2588
      %v3085 = vsel %vm1826, %v3057, %v2590
      %v3086 = vsel %vm1826, %v3058, %v2592
      %v3087 = vsel %vm1826, %v3059, %v2594
      %v3088 = vsel %vm1826, %v3060, %v2596
      %v3089 = vsel %vm1826, %v3061, %v2598
      %v3090 = vsel %vm1826, %v3062, %v2600
      %v3091 = vsel %vm1826, %v3063, %v2602
      %v3092 = vsel %vm1826, %v3064, %v2604
      %v3093 = vsel %vm1826, %v3065, %v2606
      %vm3094 = vcmask 326656
      %v3095 = vsel %vm3094, %v3066, %v2639
      %v3096 = vsel %vm3094, %v3067, %v2641
      %v3097 = vsel %vm3094, %v3068, %v2643
      %v3098 = vsel %vm3094, %v3069, %v2645
      %v3099 = vsel %vm3094, %v3070, %v2647
      %v3100 = vsel %vm3094, %v3071, %v2649
      %v3101 = vsel %vm3094, %v3072, %v2651
      %v3102 = vsel %vm3094, %v3073, %v2653
      %v3103 = vsel %vm3094, %v3074, %v2655
      %v3104 = vsel %vm3094, %v3075, %v2657
      %v3105 = vsel %vm3094, %v3076, %v2659
      %v3106 = vsel %vm3094, %v3077, %v2661
      %v3107 = vsel %vm3094, %v3078, %v2663
      %v3108 = vsel %vm3094, %v3079, %v2665
      %v3109 = vsel %vm3094, %v3080, %v2667
      %v3110 = vsel %vm3094, %v3081, %v2669
      %v3111 = vsel %vm3094, %v3082, %v2671
      %v3112 = vsel %vm3094, %v3083, %v2673
      %v3113 = vsel %vm3094, %v3084, %v2675
      %v3114 = vsel %vm3094, %v3085, %v2677
      %v3115 = vsel %vm3094, %v3086, %v2679
      %v3116 = vsel %vm3094, %v3087, %v2681
      %v3117 = vsel %vm3094, %v3088, %v2683
      %v3118 = vsel %vm3094, %v3089, %v2685
      %v3119 = vsel %vm3094, %v3090, %v2687
      %v3120 = vsel %vm3094, %v3091, %v2689
      %v3121 = vsel %vm3094, %v3092, %v2691
      %v3122 = vsel %vm3094, %v3093, %v2693
      %vm3123 = vcmask 392192
      %v3124 = vsel %vm3123, %v3095, %v2725
      %v3125 = vsel %vm3123, %v3096, %v2727
      %v3126 = vsel %vm3123, %v3097, %v2729
      %v3127 = vsel %vm3123, %v3098, %v2731
      %v3128 = vsel %vm3123, %v3099, %v2733
      %v3129 = vsel %vm3123, %v3100, %v2735
      %v3130 = vsel %vm3123, %v3101, %v2737
      %v3131 = vsel %vm3123, %v3102, %v2739
      %v3132 = vsel %vm3123, %v3103, %v2741
      %v3133 = vsel %vm3123, %v3104, %v2743
      %v3134 = vsel %vm3123, %v3105, %v2745
      %v3135 = vsel %vm3123, %v3106, %v2747
      %v3136 = vsel %vm3123, %v3107, %v2749
      %v3137 = vsel %vm3123, %v3108, %v2751
      %v3138 = vsel %vm3123, %v3109, %v2753
      %v3139 = vsel %vm3123, %v3110, %v2755
      %v3140 = vsel %vm3123, %v3111, %v2757
      %v3141 = vsel %vm3123, %v3112, %v2759
      %v3142 = vsel %vm3123, %v3113, %v2761
      %v3143 = vsel %vm3123, %v3114, %v2763
      %v3144 = vsel %vm3123, %v3115, %v2765
      %v3145 = vsel %vm3123, %v3116, %v2767
      %v3146 = vsel %vm3123, %v3117, %v2769
      %v3147 = vsel %vm3123, %v3118, %v2771
      %v3148 = vsel %vm3123, %v3119, %v2773
      %v3149 = vsel %vm3123, %v3120, %v2775
      %v3150 = vsel %vm3123, %v3121, %v2777
      %v3151 = vsel %vm3123, %v3122, %v2779
      %vm3152 = vcmask 457728
      %v3153 = vsel %vm3152, %v3124, %v2812
      %v3154 = vsel %vm3152, %v3125, %v2814
      %v3155 = vsel %vm3152, %v3126, %v2816
      %v3156 = vsel %vm3152, %v3127, %v2818
      %v3157 = vsel %vm3152, %v3128, %v2820
      %v3158 = vsel %vm3152, %v3129, %v2822
      %v3159 = vsel %vm3152, %v3130, %v2824
      %v3160 = vsel %vm3152, %v3131, %v2826
      %v3161 = vsel %vm3152, %v3132, %v2828
      %v3162 = vsel %vm3152, %v3133, %v2830
      %v3163 = vsel %vm3152, %v3134, %v2832
      %v3164 = vsel %vm3152, %v3135, %v2834
      %v3165 = vsel %vm3152, %v3136, %v2836
      %v3166 = vsel %vm3152, %v3137, %v2838
      %v3167 = vsel %vm3152, %v3138, %v2840
      %v3168 = vsel %vm3152, %v3139, %v2842
      %v3169 = vsel %vm3152, %v3140, %v2844
      %v3170 = vsel %vm3152, %v3141, %v2846
      %v3171 = vsel %vm3152, %v3142, %v2848
      %v3172 = vsel %vm3152, %v3143, %v2850
      %v3173 = vsel %vm3152, %v3144, %v2852
      %v3174 = vsel %vm3152, %v3145, %v2854
      %v3175 = vsel %vm3152, %v3146, %v2856
      %v3176 = vsel %vm3152, %v3147, %v2858
      %v3177 = vsel %vm3152, %v3148, %v2860
      %v3178 = vsel %vm3152, %v3149, %v2862
      %v3179 = vsel %vm3152, %v3150, %v2864
      %v3180 = vsel %vm3152, %v3151, %v2866
      %vm3181 = vcmask 523264
      %v3182 = vsel %vm3181, %v3153, %v2899
      %v3183 = vsel %vm3181, %v3154, %v2901
      %v3184 = vsel %vm3181, %v3155, %v2903
      %v3185 = vsel %vm3181, %v3156, %v2905
      %v3186 = vsel %vm3181, %v3157, %v2907
      %v3187 = vsel %vm3181, %v3158, %v2909
      %v3188 = vsel %vm3181, %v3159, %v2911
      %v3189 = vsel %vm3181, %v3160, %v2913
      %v3190 = vsel %vm3181, %v3161, %v2915
      %v3191 = vsel %vm3181, %v3162, %v2917
      %v3192 = vsel %vm3181, %v3163, %v2919
      %v3193 = vsel %vm3181, %v3164, %v2921
      %v3194 = vsel %vm3181, %v3165, %v2923
      %v3195 = vsel %vm3181, %v3166, %v2925
      %v3196 = vsel %vm3181, %v3167, %v2927
      %v3197 = vsel %vm3181, %v3168, %v2929
      %v3198 = vsel %vm3181, %v3169, %v2931
      %v3199 = vsel %vm3181, %v3170, %v2933
      %v3200 = vsel %vm3181, %v3171, %v2935
      %v3201 = vsel %vm3181, %v3172, %v2937
      %v3202 = vsel %vm3181, %v3173, %v2939
      %v3203 = vsel %vm3181, %v3174, %v2941
      %v3204 = vsel %vm3181, %v3175, %v2943
      %v3205 = vsel %vm3181, %v3176, %v2945
      %v3206 = vsel %vm3181, %v3177, %v2947
      %v3207 = vsel %vm3181, %v3178, %v2949
      %v3208 = vsel %vm3181, %v3179, %v2951
      %v3209 = vsel %vm3181, %v3180, %v2953
      %v3238 = vrot.slane %v3182, 2
      %v3239 = vrot.slane %v3182, 4
      %v3240 = vrot.slane %v3182, 6
      %v3241 = vrot.slane %v3183, 2
      %v3242 = vrot.slane %v3183, 4
      %v3243 = vrot.slane %v3184, 2
      %v3244 = vrot.slane %v3184, 4
      %v3245 = vrot.slane %v3184, 6
      %v3246 = vrot.slane %v3185, 2
      %v3247 = vrot.slane %v3185, 4
      %v3248 = vrot.slane %v3186, 2
      %v3249 = vrot.slane %v3186, 4
      %v3250 = vrot.slane %v3186, 6
      %v3251 = vrot.slane %v3187, 2
      %v3252 = vrot.slane %v3187, 4
      %v3253 = vrot.slane %v3188, 2
      %v3254 = vrot.slane %v3188, 4
      %v3255 = vrot.slane %v3188, 6
      %v3256 = vrot.slane %v3189, 2
      %v3257 = vrot.slane %v3189, 4
      %v3258 = vrot.slane %v3190, 2
      %v3259 = vrot.slane %v3190, 4
      %v3260 = vrot.slane %v3190, 6
      %v3261 = vrot.slane %v3191, 2
      %v3262 = vrot.slane %v3191, 4
      %v3263 = vrot.slane %v3192, 2
      %v3264 = vrot.slane %v3192, 4
      %v3265 = vrot.slane %v3192, 6
      %v3266 = vrot.slane %v3193, 2
      %v3267 = vrot.slane %v3193, 4
      %v3268 = vrot.slane %v3194, 2
      %v3269 = vrot.slane %v3194, 4
      %v3270 = vrot.slane %v3194, 6
      %v3271 = vrot.slane %v3195, 2
      %v3272 = vrot.slane %v3195, 4
      %v3273 = vrot.slane %v3196, 2
      %v3274 = vrot.slane %v3196, 4
      %v3275 = vrot.slane %v3196, 6
      %v3276 = vrot.slane %v3197, 2
      %v3277 = vrot.slane %v3197, 4
      %v3278 = vrot.slane %v3198, 2
      %v3279 = vrot.slane %v3198, 4
      %v3280 = vrot.slane %v3198, 6
      %v3281 = vrot.slane %v3199, 2
      %v3282 = vrot.slane %v3199, 4
      %v3283 = vrot.slane %v3200, 2
      %v3284 = vrot.slane %v3200, 4
      %v3285 = vrot.slane %v3200, 6
      %v3286 = vrot.slane %v3201, 2
      %v3287 = vrot.slane %v3201, 4
      %v3288 = vrot.slane %v3202, 2
      %v3289 = vrot.slane %v3202, 4
      %v3290 = vrot.slane %v3202, 6
      %v3291 = vrot.slane %v3203, 2
      %v3292 = vrot.slane %v3203, 4
      %v3293 = vrot.slane %v3204, 2
      %v3294 = vrot.slane %v3204, 4
      %v3295 = vrot.slane %v3204, 6
      %v3296 = vrot.slane %v3205, 2
      %v3297 = vrot.slane %v3205, 4
      %v3298 = vrot.slane %v3206, 2
      %v3299 = vrot.slane %v3206, 4
      %v3300 = vrot.slane %v3206, 6
      %v3301 = vrot.slane %v3207, 2
      %v3302 = vrot.slane %v3207, 4
      %v3303 = vrot.slane %v3208, 2
      %v3304 = vrot.slane %v3208, 4
      %v3305 = vrot.slane %v3208, 6
      %v3306 = vrot.slane %v3209, 2
      %v3307 = vrot.slane %v3209, 4
      %v3308 = vld [vmem:[%s3] sm:$0xff]
      %v3309 = vld [vmem:[%s3 + $0x8] sm:$0xff]
      %v3310 = vld [vmem:[%s3 + $0x10] sm:$0xff]
      %v3311 = vld [vmem:[%s3 + $0x18] sm:$0xff]
      %v3312 = vld [vmem:[%s3 + $0x20] sm:$0xff]
      %v3313 = vld [vmem:[%s3 + $0x28] sm:$0xff]
      %v3314 = vld [vmem:[%s3 + $0x30] sm:$0xff]
      %v3315 = vld [vmem:[%s3 + $0x38] sm:$0xff]
      %v3316 = vld [vmem:[%s3 + $0x40] sm:$0xff]
      %v3317 = vld [vmem:[%s4] sm:$0x1]
      %v3319 = vperm.slane %v3317, 0
      %3321 = vst [vmem:[#allocation1] ss:$4 sm:$0xff] %v3182
      %s3322 = scalar_lea.vmem [#allocation1], 1
      %3323 = vst [vmem:[%s3322] ss:$4 sm:$0xff] %v3238
      %s3324 = scalar_lea.vmem [#allocation1], 2
      %3325 = vst [vmem:[%s3324] ss:$4 sm:$0xff] %v3239
      %s3326 = scalar_lea.vmem [#allocation1], 3
      %3327 = vst [vmem:[%s3326] ss:$4 sm:$0xff] %v3240
      %s3328 = scalar_lea.vmem [#allocation1], 32
      %3329 = vst [vmem:[%s3328] ss:$4 sm:$0xff] %v3183
      %s3330 = scalar_lea.vmem [#allocation1], 33
      %3331 = vst [vmem:[%s3330] ss:$4 sm:$0xff] %v3241
      %s3332 = scalar_lea.vmem [#allocation1], 34
      %3333 = vst [vmem:[%s3332] ss:$4 sm:$0xff] %v3242
      %s3334 = scalar_lea.vmem [#allocation1], 35
      %3335 = vst [vmem:[%s3334] ss:$4 sm:$0xff] %v3184
      %v3336 = vld.sshfl [vmem:[#allocation1] sm:$0xff pattern:$0x73625140]
      %v3337 = vld.sshfl [vmem:[#allocation1 + $0x20] sm:$0xff pattern:$0x73625140]
      %3338 = vst [vmem:[#allocation1] ss:$4 sm:$0xff] %v3243
      %3339 = vst [vmem:[%s3322] ss:$4 sm:$0xff] %v3244
      %3340 = vst [vmem:[%s3324] ss:$4 sm:$0xff] %v3245
      %3341 = vst [vmem:[%s3326] ss:$4 sm:$0xff] %v3185
      %3342 = vst [vmem:[%s3328] ss:$4 sm:$0xff] %v3246
      %3343 = vst [vmem:[%s3330] ss:$4 sm:$0xff] %v3247
      %3344 = vst [vmem:[%s3332] ss:$4 sm:$0xff] %v3186
      %3345 = vst [vmem:[%s3334] ss:$4 sm:$0xff] %v3248
      %v3346 = vld.sshfl [vmem:[#allocation1] sm:$0xff pattern:$0x73625140]
      %v3347 = vld.sshfl [vmem:[#allocation1 + $0x20] sm:$0xff pattern:$0x73625140]
      %3348 = vst [vmem:[#allocation1] ss:$4 sm:$0xff] %v3249
      %3349 = vst [vmem:[%s3322] ss:$4 sm:$0xff] %v3250
      %3350 = vst [vmem:[%s3324] ss:$4 sm:$0xff] %v3187
      %3351 = vst [vmem:[%s3326] ss:$4 sm:$0xff] %v3251
      %3352 = vst [vmem:[%s3328] ss:$4 sm:$0xff] %v3252
      %3353 = vst [vmem:[%s3330] ss:$4 sm:$0xff] %v3188
      %3354 = vst [vmem:[%s3332] ss:$4 sm:$0xff] %v3253
      %3355 = vst [vmem:[%s3334] ss:$4 sm:$0xff] %v3254
      %v3356 = vld.sshfl [vmem:[#allocation1] sm:$0xff pattern:$0x73625140]
      %v3357 = vld.sshfl [vmem:[#allocation1 + $0x20] sm:$0xff pattern:$0x73625140]
      %3358 = vst [vmem:[#allocation1] ss:$4 sm:$0xff] %v3255
      %3359 = vst [vmem:[%s3322] ss:$4 sm:$0xff] %v3189
      %3360 = vst [vmem:[%s3324] ss:$4 sm:$0xff] %v3256
      %3361 = vst [vmem:[%s3326] ss:$4 sm:$0xff] %v3257
      %3362 = vst [vmem:[%s3328] ss:$4 sm:$0xff] %v3190
      %3363 = vst [vmem:[%s3330] ss:$4 sm:$0xff] %v3258
      %3364 = vst [vmem:[%s3332] ss:$4 sm:$0xff] %v3259
      %3365 = vst [vmem:[%s3334] ss:$4 sm:$0xff] %v3260
      %v3366 = vld.sshfl [vmem:[#allocation1] sm:$0xff pattern:$0x73625140]
      %v3367 = vld.sshfl [vmem:[#allocation1 + $0x20] sm:$0xff pattern:$0x73625140]
      %3368 = vst [vmem:[#allocation1] ss:$4 sm:$0xff] %v3191
      %3369 = vst [vmem:[%s3322] ss:$4 sm:$0xff] %v3261
      %3370 = vst [vmem:[%s3324] ss:$4 sm:$0xff] %v3262
      %3371 = vst [vmem:[%s3326] ss:$4 sm:$0xff] %v3192
      %3372 = vst [vmem:[%s3328] ss:$4 sm:$0xff] %v3263
      %3373 = vst [vmem:[%s3330] ss:$4 sm:$0xff] %v3264
      %3374 = vst [vmem:[%s3332] ss:$4 sm:$0xff] %v3265
      %3375 = vst [vmem:[%s3334] ss:$4 sm:$0xff] %v3193
      %v3376 = vld.sshfl [vmem:[#allocation1] sm:$0xff pattern:$0x73625140]
      %v3377 = vld.sshfl [vmem:[#allocation1 + $0x20] sm:$0xff pattern:$0x73625140]
      %3378 = vst [vmem:[#allocation1] ss:$4 sm:$0xff] %v3266
      %3379 = vst [vmem:[%s3322] ss:$4 sm:$0xff] %v3267
      %3380 = vst [vmem:[%s3324] ss:$4 sm:$0xff] %v3194
      %3381 = vst [vmem:[%s3326] ss:$4 sm:$0xff] %v3268
      %3382 = vst [vmem:[%s3328] ss:$4 sm:$0xff] %v3269
      %3383 = vst [vmem:[%s3330] ss:$4 sm:$0xff] %v3270
      %3384 = vst [vmem:[%s3332] ss:$4 sm:$0xff] %v3195
      %3385 = vst [vmem:[%s3334] ss:$4 sm:$0xff] %v3271
      %v3386 = vld.sshfl [vmem:[#allocation1] sm:$0xff pattern:$0x73625140]
      %v3387 = vld.sshfl [vmem:[#allocation1 + $0x20] sm:$0xff pattern:$0x73625140]
      %3388 = vst [vmem:[#allocation1] ss:$4 sm:$0xff] %v3272
      %3389 = vst [vmem:[%s3322] ss:$4 sm:$0xff] %v3196
      %3390 = vst [vmem:[%s3324] ss:$4 sm:$0xff] %v3273
      %3391 = vst [vmem:[%s3326] ss:$4 sm:$0xff] %v3274
      %3392 = vst [vmem:[%s3328] ss:$4 sm:$0xff] %v3275
      %3393 = vst [vmem:[%s3330] ss:$4 sm:$0xff] %v3197
      %3394 = vst [vmem:[%s3332] ss:$4 sm:$0xff] %v3276
      %3395 = vst [vmem:[%s3334] ss:$4 sm:$0xff] %v3277
      %v3396 = vld.sshfl [vmem:[#allocation1] sm:$0xff pattern:$0x73625140]
      %v3397 = vld.sshfl [vmem:[#allocation1 + $0x20] sm:$0xff pattern:$0x73625140]
      %3398 = vst [vmem:[#allocation1] ss:$4 sm:$0xff] %v3198
      %3399 = vst [vmem:[%s3322] ss:$4 sm:$0xff] %v3278
      %3400 = vst [vmem:[%s3324] ss:$4 sm:$0xff] %v3279
      %3401 = vst [vmem:[%s3326] ss:$4 sm:$0xff] %v3280
      %3402 = vst [vmem:[%s3328] ss:$4 sm:$0xff] %v3199
      %3403 = vst [vmem:[%s3330] ss:$4 sm:$0xff] %v3281
      %3404 = vst [vmem:[%s3332] ss:$4 sm:$0xff] %v3282
      %3405 = vst [vmem:[%s3334] ss:$4 sm:$0xff] %v3200
      %v3406 = vld.sshfl [vmem:[#allocation1] sm:$0xff pattern:$0x73625140]
      %v3407 = vld.sshfl [vmem:[#allocation1 + $0x20] sm:$0xff pattern:$0x73625140]
      %3408 = vst [vmem:[#allocation1] ss:$4 sm:$0xff] %v3283
      %3409 = vst [vmem:[%s3322] ss:$4 sm:$0xff] %v3284
      %3410 = vst [vmem:[%s3324] ss:$4 sm:$0xff] %v3285
      %3411 = vst [vmem:[%s3326] ss:$4 sm:$0xff] %v3201
      %3412 = vst [vmem:[%s3328] ss:$4 sm:$0xff] %v3286
      %3413 = vst [vmem:[%s3330] ss:$4 sm:$0xff] %v3287
      %3414 = vst [vmem:[%s3332] ss:$4 sm:$0xff] %v3202
      %3415 = vst [vmem:[%s3334] ss:$4 sm:$0xff] %v3288
      %v3416 = vld.sshfl [vmem:[#allocation1] sm:$0xff pattern:$0x73625140]
      %v3417 = vld.sshfl [vmem:[#allocation1 + $0x20] sm:$0xff pattern:$0x73625140]
      %3418 = vst [vmem:[#allocation1] ss:$4 sm:$0xff] %v3289
      %3419 = vst [vmem:[%s3322] ss:$4 sm:$0xff] %v3290
      %3420 = vst [vmem:[%s3324] ss:$4 sm:$0xff] %v3203
      %3421 = vst [vmem:[%s3326] ss:$4 sm:$0xff] %v3291
      %3422 = vst [vmem:[%s3328] ss:$4 sm:$0xff] %v3292
      %3423 = vst [vmem:[%s3330] ss:$4 sm:$0xff] %v3204
      %3424 = vst [vmem:[%s3332] ss:$4 sm:$0xff] %v3293
      %3425 = vst [vmem:[%s3334] ss:$4 sm:$0xff] %v3294
      %v3426 = vld.sshfl [vmem:[#allocation1] sm:$0xff pattern:$0x73625140]
      %v3427 = vld.sshfl [vmem:[#allocation1 + $0x20] sm:$0xff pattern:$0x73625140]
      %3428 = vst [vmem:[#allocation1] ss:$4 sm:$0xff] %v3295
      %3429 = vst [vmem:[%s3322] ss:$4 sm:$0xff] %v3205
      %3430 = vst [vmem:[%s3324] ss:$4 sm:$0xff] %v3296
      %3431 = vst [vmem:[%s3326] ss:$4 sm:$0xff] %v3297
      %3432 = vst [vmem:[%s3328] ss:$4 sm:$0xff] %v3206
      %3433 = vst [vmem:[%s3330] ss:$4 sm:$0xff] %v3298
      %3434 = vst [vmem:[%s3332] ss:$4 sm:$0xff] %v3299
      %3435 = vst [vmem:[%s3334] ss:$4 sm:$0xff] %v3300
      %v3436 = vld.sshfl [vmem:[#allocation1] sm:$0xff pattern:$0x73625140]
      %v3437 = vld.sshfl [vmem:[#allocation1 + $0x20] sm:$0xff pattern:$0x73625140]
      %3438 = vst [vmem:[#allocation1] ss:$4 sm:$0xff] %v3207
      %3439 = vst [vmem:[%s3322] ss:$4 sm:$0xff] %v3301
      %3440 = vst [vmem:[%s3324] ss:$4 sm:$0xff] %v3302
      %3441 = vst [vmem:[%s3326] ss:$4 sm:$0xff] %v3208
      %3442 = vst [vmem:[%s3328] ss:$4 sm:$0xff] %v3303
      %3443 = vst [vmem:[%s3330] ss:$4 sm:$0xff] %v3304
      %3444 = vst [vmem:[%s3332] ss:$4 sm:$0xff] %v3305
      %3445 = vst [vmem:[%s3334] ss:$4 sm:$0xff] %v3209
      %v3446 = vld.sshfl [vmem:[#allocation1] sm:$0xff pattern:$0x73625140]
      %v3447 = vld.sshfl [vmem:[#allocation1 + $0x20] sm:$0xff pattern:$0x73625140]
      %3448 = vst [vmem:[#allocation1] ss:$4 sm:$0xff] %v3306
      %3449 = vst [vmem:[%s3322] ss:$4 sm:$0xff] %v3307
      %v3450 = vld.sshfl [vmem:[#allocation1] sm:$0xff pattern:$0x73625140]
      %vm3451 = vcmask 588800
      %v3452 = vsel %vm3451, %v3336, 0
      %v3454 = vsel %vm3451, %v3337, 0
      %v3456 = vsel %vm3451, %v3346, 0
      %v3458 = vsel %vm3451, %v3347, 0
      %v3460 = vsel %vm3451, %v3356, 0
      %v3462 = vsel %vm3451, %v3357, 0
      %v3464 = vsel %vm3451, %v3366, 0
      %v3466 = vsel %vm3451, %v3367, 0
      %v3468 = vsel %vm3451, %v3376, 0
      %v3470 = vsel %vm3451, %v3377, 0
      %v3472 = vsel %vm3451, %v3386, 0
      %v3474 = vsel %vm3451, %v3387, 0
      %v3476 = vsel %vm3451, %v3396, 0
      %v3478 = vsel %vm3451, %v3397, 0
      %v3480 = vsel %vm3451, %v3406, 0
      %v3482 = vsel %vm3451, %v3407, 0
      %v3484 = vsel %vm3451, %v3416, 0
      %v3486 = vsel %vm3451, %v3417, 0
      %v3488 = vsel %vm3451, %v3426, 0
      %v3490 = vsel %vm3451, %v3427, 0
      %v3492 = vsel %vm3451, %v3436, 0
      %v3494 = vsel %vm3451, %v3437, 0
      %v3496 = vsel %vm3451, %v3446, 0
      %v3498 = vsel %vm3451, %v3447, 0
      %v3500 = vsel %vm3451, %v3450, 0
      %3502 = vmatpush.msra.mxu0 0.0
      %3503 = vmatpush.msra.mxu0 0.0
      %3504 = vmatpush.msra.mxu0 0.0
      %3505 = vmatpush.msra.mxu0 0.0
      %3506 = vmatpush.msra.mxu0 0.0
      %3507 = vmatpush.msra.mxu0 0.0
      %3508 = vmatpush.msra.mxu0 0.0
      %3509 = vmatpush.msra.mxu0 %v3316
      %3510 = vmatpush.msra.mxu0 %v3315
      %3511 = vmatpush.msra.mxu0 %v3314
      %3512 = vmatpush.msra.mxu0 %v3313
      %3513 = vmatpush.msra.mxu0 %v3312
      %3514 = vmatpush.msra.mxu0 %v3311
      %3515 = vmatpush.msra.mxu0 %v3310
      %3516 = vmatpush.msra.mxu0 %v3309
      %3517 = vmatpush.msra.mxu0 %v3308
      %3518 = vmatmul.f32.gmra.mxu0 %v3452
      %v3519 = vpop.f32.mrf.mxu0
      %v3520 = vadd.f32 %v3319, %v3519
      %3521 = vmatmul.f32.gmra.mxu0 %v3454
      %v3522 = vpop.f32.mrf.mxu0
      %v3523 = vadd.f32 %v3319, %v3522
      %3524 = vmatmul.f32.gmra.mxu0 %v3456
      %v3525 = vpop.f32.mrf.mxu0
      %v3526 = vadd.f32 %v3319, %v3525
      %3527 = vmatmul.f32.gmra.mxu0 %v3458
      %v3528 = vpop.f32.mrf.mxu0
      %v3529 = vadd.f32 %v3319, %v3528
      %3530 = vmatmul.f32.gmra.mxu0 %v3460
      %v3531 = vpop.f32.mrf.mxu0
      %v3532 = vadd.f32 %v3319, %v3531
      %3533 = vmatmul.f32.gmra.mxu0 %v3462
      %v3534 = vpop.f32.mrf.mxu0
      %v3535 = vadd.f32 %v3319, %v3534
      %3536 = vmatmul.f32.gmra.mxu0 %v3464
      %v3537 = vpop.f32.mrf.mxu0
      %v3538 = vadd.f32 %v3319, %v3537
      %3539 = vmatmul.f32.gmra.mxu0 %v3466
      %v3540 = vpop.f32.mrf.mxu0
      %v3541 = vadd.f32 %v3319, %v3540
      %3542 = vmatmul.f32.gmra.mxu0 %v3468
      %v3543 = vpop.f32.mrf.mxu0
      %v3544 = vadd.f32 %v3319, %v3543
      %3545 = vmatmul.f32.gmra.mxu0 %v3470
      %v3546 = vpop.f32.mrf.mxu0
      %v3547 = vadd.f32 %v3319, %v3546
      %3548 = vmatmul.f32.gmra.mxu0 %v3472
      %v3549 = vpop.f32.mrf.mxu0
      %v3550 = vadd.f32 %v3319, %v3549
      %3551 = vmatmul.f32.gmra.mxu0 %v3474
      %v3552 = vpop.f32.mrf.mxu0
      %v3553 = vadd.f32 %v3319, %v3552
      %3554 = vmatmul.f32.gmra.mxu0 %v3476
      %v3555 = vpop.f32.mrf.mxu0
      %v3556 = vadd.f32 %v3319, %v3555
      %3557 = vmatmul.f32.gmra.mxu0 %v3478
      %v3558 = vpop.f32.mrf.mxu0
      %v3559 = vadd.f32 %v3319, %v3558
      %3560 = vmatmul.f32.gmra.mxu0 %v3480
      %v3561 = vpop.f32.mrf.mxu0
      %v3562 = vadd.f32 %v3319, %v3561
      %3563 = vmatmul.f32.gmra.mxu0 %v3482
      %v3564 = vpop.f32.mrf.mxu0
      %v3565 = vadd.f32 %v3319, %v3564
      %3566 = vmatmul.f32.gmra.mxu0 %v3484
      %v3567 = vpop.f32.mrf.mxu0
      %v3568 = vadd.f32 %v3319, %v3567
      %3569 = vmatmul.f32.gmra.mxu0 %v3486
      %v3570 = vpop.f32.mrf.mxu0
      %v3571 = vadd.f32 %v3319, %v3570
      %3572 = vmatmul.f32.gmra.mxu0 %v3488
      %v3573 = vpop.f32.mrf.mxu0
      %v3574 = vadd.f32 %v3319, %v3573
      %3575 = vmatmul.f32.gmra.mxu0 %v3490
      %v3576 = vpop.f32.mrf.mxu0
      %v3577 = vadd.f32 %v3319, %v3576
      %3578 = vmatmul.f32.gmra.mxu0 %v3492
      %v3579 = vpop.f32.mrf.mxu0
      %v3580 = vadd.f32 %v3319, %v3579
      %3581 = vmatmul.f32.gmra.mxu0 %v3494
      %v3582 = vpop.f32.mrf.mxu0
      %v3583 = vadd.f32 %v3319, %v3582
      %3584 = vmatmul.f32.gmra.mxu0 %v3496
      %v3585 = vpop.f32.mrf.mxu0
      %v3586 = vadd.f32 %v3319, %v3585
      %3587 = vmatmul.f32.gmra.mxu0 %v3498
      %v3588 = vpop.f32.mrf.mxu0
      %v3589 = vadd.f32 %v3319, %v3588
      %3590 = vmatmul.f32.gmra.mxu0 %v3500
      %v3591 = vpop.f32.mrf.mxu0
      %v3592 = vadd.f32 %v3319, %v3591
      %3593 = vdwg.mxu0
      %s3594 = sld [smem:[#allocation3]]
      %vm3595 = vcmp.ge.f32.partialorder %v3520, 0.0
      %vm3596 = vcmp.ge.f32.partialorder %v3523, 0.0
      %vm3597 = vcmp.ge.f32.partialorder %v3526, 0.0
      %vm3598 = vcmp.ge.f32.partialorder %v3529, 0.0
      %vm3599 = vcmp.ge.f32.partialorder %v3532, 0.0
      %vm3600 = vcmp.ge.f32.partialorder %v3535, 0.0
      %vm3601 = vcmp.ge.f32.partialorder %v3538, 0.0
      %vm3602 = vcmp.ge.f32.partialorder %v3541, 0.0
      %vm3603 = vcmp.ge.f32.partialorder %v3544, 0.0
      %vm3604 = vcmp.ge.f32.partialorder %v3547, 0.0
      %vm3605 = vcmp.ge.f32.partialorder %v3550, 0.0
      %vm3606 = vcmp.ge.f32.partialorder %v3553, 0.0
      %vm3607 = vcmp.ge.f32.partialorder %v3556, 0.0
      %vm3608 = vcmp.ge.f32.partialorder %v3559, 0.0
      %vm3609 = vcmp.ge.f32.partialorder %v3562, 0.0
      %vm3610 = vcmp.ge.f32.partialorder %v3565, 0.0
      %vm3611 = vcmp.ge.f32.partialorder %v3568, 0.0
      %vm3612 = vcmp.ge.f32.partialorder %v3571, 0.0
      %vm3613 = vcmp.ge.f32.partialorder %v3574, 0.0
      %vm3614 = vcmp.ge.f32.partialorder %v3577, 0.0
      %vm3615 = vcmp.ge.f32.partialorder %v3580, 0.0
      %vm3616 = vcmp.ge.f32.partialorder %v3583, 0.0
      %vm3617 = vcmp.ge.f32.partialorder %v3586, 0.0
      %vm3618 = vcmp.ge.f32.partialorder %v3589, 0.0
      %vm3619 = vcmp.ge.f32.partialorder %v3592, 0.0
      %v3620 = vstv %s3594
      %v3621 = vmul.f32 %v3520, %v3620
      %v3622 = vmul.f32 %v3523, %v3620
      %v3623 = vmul.f32 %v3526, %v3620
      %v3624 = vmul.f32 %v3529, %v3620
      %v3625 = vmul.f32 %v3532, %v3620
      %v3626 = vmul.f32 %v3535, %v3620
      %v3627 = vmul.f32 %v3538, %v3620
      %v3628 = vmul.f32 %v3541, %v3620
      %v3629 = vmul.f32 %v3544, %v3620
      %v3630 = vmul.f32 %v3547, %v3620
      %v3631 = vmul.f32 %v3550, %v3620
      %v3632 = vmul.f32 %v3553, %v3620
      %v3633 = vmul.f32 %v3556, %v3620
      %v3634 = vmul.f32 %v3559, %v3620
      %v3635 = vmul.f32 %v3562, %v3620
      %v3636 = vmul.f32 %v3565, %v3620
      %v3637 = vmul.f32 %v3568, %v3620
      %v3638 = vmul.f32 %v3571, %v3620
      %v3639 = vmul.f32 %v3574, %v3620
      %v3640 = vmul.f32 %v3577, %v3620
      %v3641 = vmul.f32 %v3580, %v3620
      %v3642 = vmul.f32 %v3583, %v3620
      %v3643 = vmul.f32 %v3586, %v3620
      %v3644 = vmul.f32 %v3589, %v3620
      %v3645 = vmul.f32 %v3592, %v3620
      %v3646 = vsel %vm3595, %v3520, %v3621
      %v3647 = vsel %vm3596, %v3523, %v3622
      %v3648 = vsel %vm3597, %v3526, %v3623
      %v3649 = vsel %vm3598, %v3529, %v3624
      %v3650 = vsel %vm3599, %v3532, %v3625
      %v3651 = vsel %vm3600, %v3535, %v3626
      %v3652 = vsel %vm3601, %v3538, %v3627
      %v3653 = vsel %vm3602, %v3541, %v3628
      %v3654 = vsel %vm3603, %v3544, %v3629
      %v3655 = vsel %vm3604, %v3547, %v3630
      %v3656 = vsel %vm3605, %v3550, %v3631
      %v3657 = vsel %vm3606, %v3553, %v3632
      %v3658 = vsel %vm3607, %v3556, %v3633
      %v3659 = vsel %vm3608, %v3559, %v3634
      %v3660 = vsel %vm3609, %v3562, %v3635
      %v3661 = vsel %vm3610, %v3565, %v3636
      %v3662 = vsel %vm3611, %v3568, %v3637
      %v3663 = vsel %vm3612, %v3571, %v3638
      %v3664 = vsel %vm3613, %v3574, %v3639
      %v3665 = vsel %vm3614, %v3577, %v3640
      %v3666 = vsel %vm3615, %v3580, %v3641
      %v3667 = vsel %vm3616, %v3583, %v3642
      %v3668 = vsel %vm3617, %v3586, %v3643
      %v3669 = vsel %vm3618, %v3589, %v3644
      %v3670 = vsel %vm3619, %v3592, %v3645
      %3671 = vst [vmem:[%s280] sm:$0xff] %v3646
      %3672 = vst [vmem:[%s280 + $0x8] sm:$0xff] %v3647
      %3673 = vst [vmem:[%s280 + $0x10] sm:$0xff] %v3648
      %3674 = vst [vmem:[%s280 + $0x18] sm:$0xff] %v3649
      %3675 = vst [vmem:[%s280 + $0x20] sm:$0xff] %v3650
      %3676 = vst [vmem:[%s280 + $0x28] sm:$0xff] %v3651
      %3677 = vst [vmem:[%s280 + $0x30] sm:$0xff] %v3652
      %3678 = vst [vmem:[%s280 + $0x38] sm:$0xff] %v3653
      %3679 = vst [vmem:[%s280 + $0x40] sm:$0xff] %v3654
      %3680 = vst [vmem:[%s280 + $0x48] sm:$0xff] %v3655
      %3681 = vst [vmem:[%s280 + $0x50] sm:$0xff] %v3656
      %3682 = vst [vmem:[%s280 + $0x58] sm:$0xff] %v3657
      %3683 = vst [vmem:[%s280 + $0x60] sm:$0xff] %v3658
      %3684 = vst [vmem:[%s280 + $0x68] sm:$0xff] %v3659
      %3685 = vst [vmem:[%s280 + $0x70] sm:$0xff] %v3660
      %3686 = vst [vmem:[%s280 + $0x78] sm:$0xff] %v3661
      %3687 = vst [vmem:[%s280 + $0x80] sm:$0xff] %v3662
      %3688 = vst [vmem:[%s280 + $0x88] sm:$0xff] %v3663
      %3689 = vst [vmem:[%s280 + $0x90] sm:$0xff] %v3664
      %3690 = vst [vmem:[%s280 + $0x98] sm:$0xff] %v3665
      %3691 = vst [vmem:[%s280 + $0xa0] sm:$0xff] %v3666
      %3692 = vst [vmem:[%s280 + $0xa8] sm:$0xff] %v3667
      %3693 = vst [vmem:[%s280 + $0xb0] sm:$0xff] %v3668
      %3694 = vst [vmem:[%s280 + $0xb8] sm:$0xff] %v3669
      %3695 = vst [vmem:[%s280 + $0xc0] sm:$0xf] %v3670
      %p3696 = scmp.lt.s32.totalorder %s20, 1
      %s3697 = scalar_select %p3696, %s20, 1
      %s3698 = smul.addr %s3697, 25
      %s3699 = smul.addr %s3698, 8
      %s3700 = scalar_lea.vmem %s7, %s3699
      // Predicated region
      $region49: #{basic_block_pallas.1} parent=47 // pred_check
        %p3701 = pneg %p190
      $region50: #{basic_block_pallas.1} parent=47 // pred_check_branch
        %3703 = sbr.rel (%p3701) target = $region52
      $region51: #{basic_block_pallas.1} parent=47 // pred_region
        _
      $region52: #{basic_block_pallas.1} parent=47 // pred_fallthru
        _
    $region48: #{basic_block_pallas.1} parent=5 // pred_fallthru
      _
    %p3704 = scmp.le.s32.totalorder 2, %s15
    // Predicated region
    $region53: #{basic_block_pallas.1} parent=5 // pred_check
      %p3705 = pneg %p3704
    $region54: #{basic_block_pallas.1} parent=5 // pred_check_branch
      %3707 = sbr.rel (%p3705) target = $region56
    $region55: #{basic_block_pallas.1} parent=5 // pred_region
      %s3708 = ssub.s32 %s15, 2
      // Predicated region
      $region57: #{basic_block_pallas.1} parent=55 // pred_check
        %p3709 = pneg %p196
      $region58: #{basic_block_pallas.1} parent=55 // pred_check_branch
        %3711 = sbr.rel (%p3709) target = $region60
      $region59: #{basic_block_pallas.1} parent=55 // pred_region
        %p3712 = scmp.lt.s32.totalorder %s21, 1
        %s3713 = scalar_select %p3712, %s21, 1
        %s3714 = smul.addr %s3713, 25
        %s3715 = smul.addr %s3714, 8
        %s3716 = scalar_lea.vmem %s7, %s3715
      $region60: #{basic_block_pallas.1} parent=55 // pred_fallthru
        _
    $region56: #{basic_block_pallas.1} parent=5 // pred_fallthru
      _
  $region6: #{basic_block_pallas.1} parent=0 // loop_footer
    %s19 = sadd.s32 1, %s15
  $region7: #{basic_block_pallas.1} parent=0 // loop_footer_branch
    %14 = sbr.rel target = $region3
  $region8: #{basic_block_pallas.1} parent=0 // loop_exit
    _

</llo_original>
